<compile_context>
chip_gen: v7x
topology: tpu7x:2x2x1
jax: 0.10.0
libtpu: 0.0.40
codegen_flags: <defaults>
</compile_context>

<pallas_src>
import math
import functools

import jax
import jax.numpy as jnp
from jax import lax
from jax.experimental import pallas as pl
from jax.experimental.pallas import tpu as pltpu


# Large negative, finite, dtype-aware mask value (exp underflows to 0, no NaNs).
_MASK_VALUE = -0.7 * float(jnp.finfo(jnp.float32).max)


# ----------------------------- shared helpers --------------------------------


def _layernorm(z, w, b, eps=1e-5):
    mu = jnp.mean(z, axis=-1, keepdims=True)
    var = jnp.mean((z - mu) ** 2, axis=-1, keepdims=True)
    return (z - mu) * lax.rsqrt(var + eps) * w + b


def _gelu_tanh(z):
    # GELU(approximate='tanh'):  0.5*x*(1+tanh(sqrt(2/pi)*(x+0.044715*x^3)))
    c = math.sqrt(2.0 / math.pi)
    return 0.5 * z * (1.0 + jnp.tanh(c * (z + 0.044715 * z * z * z)))


def _vmem_limit_bytes():
    # Generation-aware VMEM budget: ~3/4 of physical per-core VMEM
    # (v5e/v6e: 128 MiB -> 96 MiB; v7x: 64 MiB -> 48 MiB).
    try:
        cap = int(pltpu.get_tpu_info().vmem_capacity_bytes)
        return int(min((cap * 3) // 4, 100 * 1024 * 1024))
    except Exception:
        return 48 * 1024 * 1024


# ----------------------- kernel 1: LN1 + fused QKV ----------------------------


def ln_qkv_kernel(x_ref, ln1w_ref, ln1b_ref, wqkv_ref, bqkv_ref,
                  q_ref, k_ref, v_ref, *, n_head: int):
    C = x_ref.shape[-1]
    hd = C // n_head
    h = _layernorm(x_ref[0], ln1w_ref[0], ln1b_ref[0])               # (TQ, C) f32
    y = jnp.dot(h.astype(jnp.bfloat16), wqkv_ref[...],
                preferred_element_type=jnp.float32) + bqkv_ref[0]    # (TQ, 3C)

    # softmax scale is already folded into the Q columns of wqkv/bqkv.
    def to_heads(t):                        # (TQ, C) -> (H, TQ, hd), once per tile
        return jnp.transpose(
            t.reshape(t.shape[0], n_head, hd), (1, 0, 2)).astype(jnp.bfloat16)

    q_ref[0] = to_heads(y[:, :C])
    k_ref[0] = to_heads(y[:, C:2 * C])
    v_ref[0] = to_heads(y[:, 2 * C:])


# --- kernel 2: flash attention + proj + residual + LN2 + MLP + residual -------


def attn_mlp_kernel(x_ref, q_ref, k_ref, v_ref,
                    wproj_ref, bproj_ref, ln2w_ref, ln2b_ref,
                    wfc_ref, bfc_ref, wfcp_ref, bfcp_ref,
                    out_ref,
                    m_ref, l_ref, acc_ref,
                    *, block_q: int, block_kv: int):
    qi = pl.program_id(1)
    ki = pl.program_id(2)
    nk = pl.num_programs(2)

    @pl.when(ki == 0)
    def _init():
        m_ref[...] = jnp.full(m_ref.shape, _MASK_VALUE, jnp.float32)
        l_ref[...] = jnp.zeros(l_ref.shape, jnp.float32)
        acc_ref[...] = jnp.zeros(acc_ref.shape, jnp.float32)

    # Global coordinates of this (query-tile, kv-tile) pair.
    q_first = qi * block_q
    q_last = q_first + (block_q - 1)
    kv_first = ki * block_kv
    kv_last = kv_first + (block_kv - 1)

    def flash_step(apply_mask):
        q_h = q_ref[0]                      # (H, TQ, hd) bf16, pre-scaled
        k_h = k_ref[0]                      # (H, TK, hd) bf16
        v_h = v_ref[0]                      # (H, TK, hd) bf16

        # batched over heads on the MXU, f32 accumulation
        s = jnp.einsum('hqd,hkd->hqk', q_h, k_h,
                       preferred_element_type=jnp.float32)

        if apply_mask:                      # only diagonal tiles pay for the mask
            row = q_first + lax.broadcasted_iota(
                jnp.int32, (block_q, block_kv), 0)
            col = kv_first + lax.broadcasted_iota(
                jnp.int32, (block_q, block_kv), 1)
            s = jnp.where(row >= col, s, _MASK_VALUE)

        # online softmax update (f32)
        # TODO(synk): on v6e/v7x consider bf16 exp here if the EUP is the
        # saturating slot (not applicable on v5e).
        m_prev = m_ref[...]
        m_new = jnp.maximum(m_prev, jnp.max(s, axis=-1, keepdims=True))
        alpha = jnp.exp(m_prev - m_new)
        p = jnp.exp(s - m_new)
        l_ref[...] = alpha * l_ref[...] + jnp.sum(p, axis=-1, keepdims=True)
        acc_ref[...] = alpha * acc_ref[...] + jnp.einsum(
            'hqk,hkd->hqd', p.astype(jnp.bfloat16), v_h,
            preferred_element_type=jnp.float32)
        m_ref[...] = m_new

    # Fully below the diagonal: no mask needed.
    @pl.when(kv_last <= q_first)
    def _below_diag():
        flash_step(apply_mask=False)

    # Diagonal-crossing tile: apply the causal mask.
    @pl.when(jnp.logical_and(kv_first <= q_last, kv_last > q_first))
    def _diag():
        flash_step(apply_mask=True)

    # Tiles fully above the diagonal are skipped entirely (and their K/V DMAs
    # are suppressed in the wrapper by clamping the K/V index map).

    @pl.when(ki == nk - 1)
    def _finalize():
        x = x_ref[0]                                           # (TQ, C) f32
        inv_l = pl.reciprocal(l_ref[...], approx=True)         # EUP slot, ~free
        y = (acc_ref[...] * inv_l).astype(jnp.bfloat16)        # (H, TQ, hd)

        # head-major projection: avoids the transpose+reshape of the accumulator
        attn = jnp.einsum('hqd,hdc->hqc', y, wproj_ref[...],
                          preferred_element_type=jnp.float32)  # (H, TQ, C)
        attn = jnp.sum(attn, axis=0) + bproj_ref[0]            # (TQ, C)
        x = x + attn                                           # residual 1

        h2 = _layernorm(x, ln2w_ref[0], ln2b_ref[0])
        f = jnp.dot(h2.astype(jnp.bfloat16), wfc_ref[...],
                    preferred_element_type=jnp.float32) + bfc_ref[0]
        f = _gelu_tanh(f)
        f = jnp.dot(f.astype(jnp.bfloat16), wfcp_ref[...],
                    preferred_element_type=jnp.float32) + bfcp_ref[0]
        out_ref[0] = (x + f).astype(out_ref.dtype)             # residual 2


# ----------------------------- wrapper ----------------------------------------


def gpt2_block(x, params, n_head, *, block_q=None, block_kv=None,
               single_buffer_weights=True):
    (ln1w, ln1b, wattn, battn, wproj, bproj,
     ln2w, ln2b, wfc, bfc, wfcp, bfcp) = params
    B, T, C = x.shape
    assert C % n_head == 0
    hd = C // n_head

    tq = min(T, 256) if block_q is None else block_q
    tk = min(T, 256) if block_kv is None else block_kv
    assert T % tq == 0 and T % tk == 0
    nq, nk = T // tq, T // tk

    # Fold the 1/sqrt(hd) softmax scale into the Q columns of the fused QKV
    # projection (done once on the weights, zero kernel cost).
    scale = 1.0 / math.sqrt(hd)
    wqkv = jnp.concatenate([wattn[:, :C] * scale, wattn[:, C:]], axis=1)
    bqkv = jnp.concatenate([battn[:, :C] * scale, battn[:, C:]], axis=1)

    # bf16 weights: halves DMA bytes / VMEM residency, feeds the MXU at bf16 rate.
    wqkv_bf = wqkv.astype(jnp.bfloat16)
    wproj_h_bf = wproj.reshape(n_head, hd, C).astype(jnp.bfloat16)  # head-major
    wfc_bf = wfc.astype(jnp.bfloat16)
    wfcp_bf = wfcp.astype(jnp.bfloat16)

    f32, bf16 = jnp.float32, jnp.bfloat16
    vmem_limit = _vmem_limit_bytes()

    def cparams(sem):
        return pltpu.CompilerParams(dimension_semantics=sem,
                                    vmem_limit_bytes=vmem_limit)

    def wspec(shape, grid_rank):
        # Constant-index weight/bias block: single-buffer it (it is DMA'd once).
        nz = (0,) * len(shape)
        idx = (lambda b, i: nz) if grid_rank == 2 else (lambda b, i, j: nz)
        if single_buffer_weights:
            try:
                return pl.BlockSpec(shape, idx, pipeline_mode=pl.Buffered(1))
            except TypeError:
                pass
        return pl.BlockSpec(shape, idx)

    # ---- kernel 1: LN1 + fused QKV projection (head-major outputs) -----------
    qkv_cost = pl.CostEstimate(
        flops=2 * B * T * C * 3 * C,
        transcendentals=B * T,
        bytes_accessed=B * T * C * 4 + 3 * B * T * C * 2 + C * 3 * C * 2)

    qkv_out_specs = tuple(
        pl.BlockSpec((1, n_head, tq, hd), lambda b, i: (b, 0, i, 0))
        for _ in range(3))

    q, k, v = pl.pallas_call(
        functools.partial(ln_qkv_kernel, n_head=n_head),
        out_shape=tuple(jax.ShapeDtypeStruct((B, n_head, T, hd), bf16)
                        for _ in range(3)),
        grid_spec=pltpu.PrefetchScalarGridSpec(
            num_scalar_prefetch=0,
            grid=(B, nq),
            in_specs=[
                pl.BlockSpec((1, tq, C), lambda b, i: (b, i, 0)),   # x
                wspec((1, C), 2),                                   # ln1 w
                wspec((1, C), 2),                                   # ln1 b
                wspec((C, 3 * C), 2),                               # wqkv (bf16)
                wspec((1, 3 * C), 2),                               # bqkv
            ],
            out_specs=qkv_out_specs,
        ),
        compiler_params=cparams(("parallel", "parallel")),
        cost_estimate=qkv_cost,
    )(x, ln1w, ln1b, wqkv_bf, bqkv)

    # ---- kernel 2: flash attention + proj + residual + LN2 + MLP + residual --
    def kv_map(b, i, j):
        # Clamp the KV block index to the causal diagonal: above-diagonal steps
        # keep the same block index, so Pallas reuses the resident buffer and
        # issues no HBM->VMEM DMA (compute is skipped by pl.when in-kernel).
        j_max = ((i + 1) * tq - 1) // tk
        return (b, 0, jnp.minimum(j, j_max), 0)

    attn_cost = pl.CostEstimate(
        flops=B * (2 * T * T * C + 2 * T * C * C + 16 * T * C * C),
        transcendentals=B * (n_head * T * T // 2 + 4 * T * C),
        bytes_accessed=(2 * B * T * C * 4 + 3 * B * T * C * 2
                        + (C * C + 8 * C * C) * 2))

    # TODO(synk): for C >= ~1280 on v7x (64 MiB VMEM), split the MLP into its
    # own pallas_call tiled over the 4C hidden dim so wfc/wfcp are streamed
    # instead of fully resident.
    return pl.pallas_call(
        functools.partial(attn_mlp_kernel, block_q=tq, block_kv=tk),
        out_shape=jax.ShapeDtypeStruct((B, T, C), f32),
        grid_spec=pltpu.PrefetchScalarGridSpec(
            num_scalar_prefetch=0,
            grid=(B, nq, nk),
            in_specs=[
                pl.BlockSpec((1, tq, C), lambda b, i, j: (b, i, 0)),            # x
                pl.BlockSpec((1, n_head, tq, hd), lambda b, i, j: (b, 0, i, 0)),  # q
                pl.BlockSpec((1, n_head, tk, hd), kv_map),                      # k
                pl.BlockSpec((1, n_head, tk, hd), kv_map),                      # v
                wspec((n_head, hd, C), 3),                                      # wproj (head-major)
                wspec((1, C), 3),                                               # bproj
                wspec((1, C), 3),                                               # ln2 w
                wspec((1, C), 3),                                               # ln2 b
                wspec((C, 4 * C), 3),                                           # wfc
                wspec((1, 4 * C), 3),                                           # bfc
                wspec((4 * C, C), 3),                                           # wfcp
                wspec((1, C), 3),                                               # bfcp
            ],
            out_specs=pl.BlockSpec((1, tq, C), lambda b, i, j: (b, i, 0)),
            scratch_shapes=[
                pltpu.VMEM((n_head, tq, 1), f32),    # running max  m
                pltpu.VMEM((n_head, tq, 1), f32),    # running sum  l
                pltpu.VMEM((n_head, tq, hd), f32),   # output accumulator
            ],
        ),
        compiler_params=cparams(("parallel", "parallel", "arbitrary")),
        cost_estimate=attn_cost,
    )(x, q, k, v, wproj_h_bf, bproj, ln2w, ln2b, wfc_bf, bfc, wfcp_bf, bfcp)


def _run_block(x, params, n_head, block_q, block_kv):
    try:
        out = gpt2_block(x, params, n_head, block_q=block_q, block_kv=block_kv)
        return jax.block_until_ready(out)
    except Exception:
        # Fallback if this jax version rejects single-buffered weight blocks.
        out = gpt2_block(x, params, n_head, block_q=block_q, block_kv=block_kv,
                         single_buffer_weights=False)
        return jax.block_until_ready(out)


# ----------------------------- reference (pure JAX) ---------------------------


def gpt2_block_ref(x, params, n_head):
    (ln1w, ln1b, wattn, battn, wproj, bproj,
     ln2w, ln2b, wfc, bfc, wfcp, bfcp) = params
    B, T, C = x.shape
    hd = C // n_head

    def ln(z, w, b):
        mu = z.mean(-1, keepdims=True)
        var = ((z - mu) ** 2).mean(-1, keepdims=True)
        return (z - mu) / jnp.sqrt(var + 1e-5) * w[0] + b[0]

    h = ln(x, ln1w, ln1b)
    qkv = h @ wattn + battn[0]
    q, k, v = jnp.split(qkv, 3, axis=-1)
    q = q.reshape(B, T, n_head, hd).transpose(0, 2, 1, 3)
    k = k.reshape(B, T, n_head, hd).transpose(0, 2, 1, 3)
    v = v.reshape(B, T, n_head, hd).transpose(0, 2, 1, 3)
    s = jnp.einsum("bhqd,bhkd->bhqk", q, k) / math.sqrt(hd)
    mask = jnp.tril(jnp.ones((T, T), bool))
    s = jnp.where(mask, s, -jnp.inf)
    p = jax.nn.softmax(s, axis=-1)
    y = jnp.einsum("bhqk,bhkd->bhqd", p, v).transpose(0, 2, 1, 3).reshape(B, T, C)
    x = x + y @ wproj + bproj[0]

    h2 = ln(x, ln2w, ln2b)
    c = math.sqrt(2.0 / math.pi)
    f = h2 @ wfc + bfc[0]
    f = 0.5 * f * (1.0 + jnp.tanh(c * (f + 0.044715 * f ** 3)))
    x = x + f @ wfcp + bfcp[0]
    return x


# ----------------------------- main -------------------------------------------


def _make_params(key, C):
    ks = jax.random.split(key, 12)
    n = jax.random.normal
    return (
        1.0 + 0.1 * n(ks[0], (1, C), jnp.float32),       # ln1 w
        0.1 * n(ks[1], (1, C), jnp.float32),             # ln1 b
        0.02 * n(ks[2], (C, 3 * C), jnp.float32),        # c_attn W^T
        0.01 * n(ks[3], (1, 3 * C), jnp.float32),        # c_attn b
        0.02 * n(ks[4], (C, C), jnp.float32),            # c_proj W^T
        0.01 * n(ks[5], (1, C), jnp.float32),            # c_proj b
        1.0 + 0.1 * n(ks[6], (1, C), jnp.float32),       # ln2 w
        0.1 * n(ks[7], (1, C), jnp.float32),             # ln2 b
        0.02 * n(ks[8], (C, 4 * C), jnp.float32),        # c_fc W^T
        0.01 * n(ks[9], (1, 4 * C), jnp.float32),        # c_fc b
        0.02 * n(ks[10], (4 * C, C), jnp.float32),       # mlp c_proj W^T
        0.01 * n(ks[11], (1, C), jnp.float32),           # mlp c_proj b
    )


if __name__ == "__main__":
    # Two small configs:
    #   (a) tiny tiles exercising below/diagonal/above causal tile paths,
    #   (b) a lane-dense (C=128) config with bigger tiles / real layouts.
    configs = [
        # B,  T,   C,   H, tq, tk
        (2, 32, 32, 4, 16, 16),
        (2, 128, 128, 4, 64, 64),
    ]

    key = jax.random.PRNGKey(0)
    for (B, T, C, H, tq, tk) in configs:
        kp, kx, key = jax.random.split(key, 3)
        params = _make_params(kp, C)
        x = jax.random.normal(kx, (B, T, C), jnp.float32)

        out = _run_block(x, params, H, tq, tk)
        ref = gpt2_block_ref(x, params, H)

        assert out.shape == (B, T, C)
        max_err = float(jnp.max(jnp.abs(out - ref)))
        # bf16 matmul inputs with f32 accumulation -> relaxed tolerance vs f32 ref
        assert jnp.allclose(out, ref, rtol=2e-2, atol=2e-2), \
            f"mismatch vs reference for (B,T,C,H)=({B},{T},{C},{H}): " \
            f"max abs err {max_err}"

    print("KERNEL_OK")
</pallas_src>

<mosaic_0001>
module attributes {stable_mosaic.version = 11 : i64} {
  func.func @ln_qkv_kernel(%arg0: i32, %arg1: i32, %arg2: memref<1x16x32xf32, #tpu.memory_space<vmem>>, %arg3: memref<1x32xf32, #tpu.memory_space<vmem>>, %arg4: memref<1x32xf32, #tpu.memory_space<vmem>>, %arg5: memref<32x96xbf16, #tpu.memory_space<vmem>>, %arg6: memref<1x96xf32, #tpu.memory_space<vmem>>, %arg7: memref<1x4x16x8xbf16, #tpu.memory_space<vmem>>, %arg8: memref<1x4x16x8xbf16, #tpu.memory_space<vmem>>, %arg9: memref<1x4x16x8xbf16, #tpu.memory_space<vmem>>) attributes {dimension_semantics = [#tpu.dimension_semantics<parallel>, #tpu.dimension_semantics<parallel>], iteration_bounds = array<i64: 2, 2>, scalar_prefetch = 0 : i64, scratch_operands = 0 : i64, tpu.core_type = #tpu.core_type<tc>, window_params = [{transform_indices = @transform_0, window_bounds = array<i64: 1, 16, 32>}, {pipeline_mode = #tpu.pipeline_mode<synchronous>, transform_indices = @transform_1, window_bounds = array<i64: 1, 32>}, {pipeline_mode = #tpu.pipeline_mode<synchronous>, transform_indices = @transform_2, window_bounds = array<i64: 1, 32>}, {pipeline_mode = #tpu.pipeline_mode<synchronous>, transform_indices = @transform_3, window_bounds = array<i64: 32, 96>}, {pipeline_mode = #tpu.pipeline_mode<synchronous>, transform_indices = @transform_4, window_bounds = array<i64: 1, 96>}, {transform_indices = @transform_5, window_bounds = array<i64: 1, 4, 16, 8>}, {transform_indices = @transform_6, window_bounds = array<i64: 1, 4, 16, 8>}, {transform_indices = @transform_7, window_bounds = array<i64: 1, 4, 16, 8>}]} {
    %c0 = arith.constant 0 : index
    %c0_0 = arith.constant 0 : index
    %c0_1 = arith.constant 0 : index
    %0 = vector.load %arg2[%c0, %c0_0, %c0_1] : memref<1x16x32xf32, #tpu.memory_space<vmem>>, vector<1x16x32xf32>
    %1 = vector.shape_cast %0 : vector<1x16x32xf32> to vector<16x32xf32>
    %c0_2 = arith.constant 0 : index
    %c0_3 = arith.constant 0 : index
    %2 = vector.load %arg3[%c0_2, %c0_3] : memref<1x32xf32, #tpu.memory_space<vmem>>, vector<1x32xf32>
    %3 = vector.shape_cast %2 : vector<1x32xf32> to vector<32xf32>
    %c0_4 = arith.constant 0 : index
    %c0_5 = arith.constant 0 : index
    %4 = vector.load %arg4[%c0_4, %c0_5] : memref<1x32xf32, #tpu.memory_space<vmem>>, vector<1x32xf32>
    %5 = vector.shape_cast %4 : vector<1x32xf32> to vector<32xf32>
    %cst = arith.constant dense<0.000000e+00> : vector<16xf32>
    %6 = vector.multi_reduction <add>, %1, %cst [1] : vector<16x32xf32> to vector<16xf32>
    %7 = vector.shape_cast %6 : vector<16xf32> to vector<16x1xf32>
    %cst_6 = arith.constant 3.200000e+01 : f32
    %8 = vector.broadcast %cst_6 : f32 to vector<16x1xf32>
    %9 = arith.divf %7, %8 : vector<16x1xf32>
    %10 = vector.broadcast %9 : vector<16x1xf32> to vector<16x32xf32>
    %11 = arith.subf %1, %10 : vector<16x32xf32>
    %12 = arith.mulf %11, %11 : vector<16x32xf32>
    %cst_7 = arith.constant dense<0.000000e+00> : vector<16xf32>
    %13 = vector.multi_reduction <add>, %12, %cst_7 [1] : vector<16x32xf32> to vector<16xf32>
    %14 = vector.shape_cast %13 : vector<16xf32> to vector<16x1xf32>
    %cst_8 = arith.constant 3.200000e+01 : f32
    %15 = vector.broadcast %cst_8 : f32 to vector<16x1xf32>
    %16 = arith.divf %14, %15 : vector<16x1xf32>
    %17 = vector.broadcast %9 : vector<16x1xf32> to vector<16x32xf32>
    %18 = arith.subf %1, %17 : vector<16x32xf32>
    %cst_9 = arith.constant 9.99999974E-6 : f32
    %19 = vector.broadcast %cst_9 : f32 to vector<16x1xf32>
    %20 = arith.addf %16, %19 : vector<16x1xf32>
    %21 = math.rsqrt %20 : vector<16x1xf32>
    %22 = vector.broadcast %21 : vector<16x1xf32> to vector<16x32xf32>
    %23 = arith.mulf %18, %22 : vector<16x32xf32>
    %24 = vector.shape_cast %3 : vector<32xf32> to vector<1x32xf32>
    %25 = vector.broadcast %24 : vector<1x32xf32> to vector<16x32xf32>
    %26 = arith.mulf %23, %25 : vector<16x32xf32>
    %27 = vector.shape_cast %5 : vector<32xf32> to vector<1x32xf32>
    %28 = vector.broadcast %27 : vector<1x32xf32> to vector<16x32xf32>
    %29 = arith.addf %26, %28 : vector<16x32xf32>
    %30 = arith.truncf %29 : vector<16x32xf32> to vector<16x32xbf16>
    %c0_10 = arith.constant 0 : index
    %c0_11 = arith.constant 0 : index
    %31 = vector.load %arg5[%c0_10, %c0_11] : memref<32x96xbf16, #tpu.memory_space<vmem>>, vector<32x96xbf16>
    %cst_12 = arith.constant dense<0.000000e+00> : vector<16x96xf32>
    %32 = tpu.matmul %30, %31, %cst_12 {dimension_numbers = #tpu.dot_dimension_numbers<[1], [0], [0], [1], [0, 0, 1, 1], [], []>} : vector<16x32xbf16>, vector<32x96xbf16>, vector<16x96xf32> -> vector<16x96xf32>
    %c0_13 = arith.constant 0 : index
    %c0_14 = arith.constant 0 : index
    %33 = vector.load %arg6[%c0_13, %c0_14] : memref<1x96xf32, #tpu.memory_space<vmem>>, vector<1x96xf32>
    %34 = vector.shape_cast %33 : vector<1x96xf32> to vector<96xf32>
    %35 = vector.shape_cast %34 : vector<96xf32> to vector<1x96xf32>
    %36 = vector.broadcast %35 : vector<1x96xf32> to vector<16x96xf32>
    %37 = arith.addf %32, %36 : vector<16x96xf32>
    %38 = vector.extract_strided_slice %37 {offsets = [0, 0], sizes = [16, 32], strides = [1, 1]} : vector<16x96xf32> to vector<16x32xf32>
    %39 = vector.shape_cast %38 : vector<16x32xf32> to vector<16x4x8xf32>
    %40 = tpu.transpose %39, [1, 0, 2] : vector<16x4x8xf32> -> vector<4x16x8xf32>
    %41 = arith.truncf %40 : vector<4x16x8xf32> to vector<4x16x8xbf16>
    %c0_15 = arith.constant 0 : index
    %c0_16 = arith.constant 0 : index
    %c0_17 = arith.constant 0 : index
    %c0_18 = arith.constant 0 : index
    %42 = vector.load %arg7[%c0_15, %c0_16, %c0_17, %c0_18] : memref<1x4x16x8xbf16, #tpu.memory_space<vmem>>, vector<1x4x16x8xbf16>
    %43 = vector.shape_cast %42 : vector<1x4x16x8xbf16> to vector<4x16x8xbf16>
    %44 = vector.shape_cast %41 : vector<4x16x8xbf16> to vector<1x4x16x8xbf16>
    tpu.vector_store %arg7[%c0_15, %c0_16, %c0_17, %c0_18], %44 {strides = array<i32>} : memref<1x4x16x8xbf16, #tpu.memory_space<vmem>>, vector<1x4x16x8xbf16>,
    %45 = vector.extract_strided_slice %37 {offsets = [0, 32], sizes = [16, 32], strides = [1, 1]} : vector<16x96xf32> to vector<16x32xf32>
    %46 = vector.shape_cast %45 : vector<16x32xf32> to vector<16x4x8xf32>
    %47 = tpu.transpose %46, [1, 0, 2] : vector<16x4x8xf32> -> vector<4x16x8xf32>
    %48 = arith.truncf %47 : vector<4x16x8xf32> to vector<4x16x8xbf16>
    %c0_19 = arith.constant 0 : index
    %c0_20 = arith.constant 0 : index
    %c0_21 = arith.constant 0 : index
    %c0_22 = arith.constant 0 : index
    %49 = vector.load %arg8[%c0_19, %c0_20, %c0_21, %c0_22] : memref<1x4x16x8xbf16, #tpu.memory_space<vmem>>, vector<1x4x16x8xbf16>
    %50 = vector.shape_cast %49 : vector<1x4x16x8xbf16> to vector<4x16x8xbf16>
    %51 = vector.shape_cast %48 : vector<4x16x8xbf16> to vector<1x4x16x8xbf16>
    tpu.vector_store %arg8[%c0_19, %c0_20, %c0_21, %c0_22], %51 {strides = array<i32>} : memref<1x4x16x8xbf16, #tpu.memory_space<vmem>>, vector<1x4x16x8xbf16>,
    %52 = vector.extract_strided_slice %37 {offsets = [0, 64], sizes = [16, 32], strides = [1, 1]} : vector<16x96xf32> to vector<16x32xf32>
    %53 = vector.shape_cast %52 : vector<16x32xf32> to vector<16x4x8xf32>
    %54 = tpu.transpose %53, [1, 0, 2] : vector<16x4x8xf32> -> vector<4x16x8xf32>
    %55 = arith.truncf %54 : vector<4x16x8xf32> to vector<4x16x8xbf16>
    %c0_23 = arith.constant 0 : index
    %c0_24 = arith.constant 0 : index
    %c0_25 = arith.constant 0 : index
    %c0_26 = arith.constant 0 : index
    %56 = vector.load %arg9[%c0_23, %c0_24, %c0_25, %c0_26] : memref<1x4x16x8xbf16, #tpu.memory_space<vmem>>, vector<1x4x16x8xbf16>
    %57 = vector.shape_cast %56 : vector<1x4x16x8xbf16> to vector<4x16x8xbf16>
    %58 = vector.shape_cast %55 : vector<4x16x8xbf16> to vector<1x4x16x8xbf16>
    tpu.vector_store %arg9[%c0_23, %c0_24, %c0_25, %c0_26], %58 {strides = array<i32>} : memref<1x4x16x8xbf16, #tpu.memory_space<vmem>>, vector<1x4x16x8xbf16>,
    return
  }
  func.func @transform_0(%arg0: i32, %arg1: i32) -> (i32, i32, i32) {
    %c0_i32 = arith.constant 0 : i32
    %c0_i32_0 = arith.constant 0 : i32
    return %arg0, %arg1, %c0_i32 : i32, i32, i32
  }
  func.func @transform_1(%arg0: i32, %arg1: i32) -> (i32, i32) {
    %c0_i32 = arith.constant 0 : i32
    %c0_i32_0 = arith.constant 0 : i32
    %c0_i32_1 = arith.constant 0 : i32
    return %c0_i32, %c0_i32_0 : i32, i32
  }
  func.func @transform_2(%arg0: i32, %arg1: i32) -> (i32, i32) {
    %c0_i32 = arith.constant 0 : i32
    %c0_i32_0 = arith.constant 0 : i32
    %c0_i32_1 = arith.constant 0 : i32
    return %c0_i32, %c0_i32_0 : i32, i32
  }
  func.func @transform_3(%arg0: i32, %arg1: i32) -> (i32, i32) {
    %c0_i32 = arith.constant 0 : i32
    %c0_i32_0 = arith.constant 0 : i32
    %c0_i32_1 = arith.constant 0 : i32
    return %c0_i32, %c0_i32_0 : i32, i32
  }
  func.func @transform_4(%arg0: i32, %arg1: i32) -> (i32, i32) {
    %c0_i32 = arith.constant 0 : i32
    %c0_i32_0 = arith.constant 0 : i32
    %c0_i32_1 = arith.constant 0 : i32
    return %c0_i32, %c0_i32_0 : i32, i32
  }
  func.func @transform_5(%arg0: i32, %arg1: i32) -> (i32, i32, i32, i32) {
    %c0_i32 = arith.constant 0 : i32
    %c0_i32_0 = arith.constant 0 : i32
    %c0_i32_1 = arith.constant 0 : i32
    return %arg0, %c0_i32, %arg1, %c0_i32_0 : i32, i32, i32, i32
  }
  func.func @transform_6(%arg0: i32, %arg1: i32) -> (i32, i32, i32, i32) {
    %c0_i32 = arith.constant 0 : i32
    %c0_i32_0 = arith.constant 0 : i32
    %c0_i32_1 = arith.constant 0 : i32
    return %arg0, %c0_i32, %arg1, %c0_i32_0 : i32, i32, i32, i32
  }
  func.func @transform_7(%arg0: i32, %arg1: i32) -> (i32, i32, i32, i32) {
    %c0_i32 = arith.constant 0 : i32
    %c0_i32_0 = arith.constant 0 : i32
    %c0_i32_1 = arith.constant 0 : i32
    return %arg0, %c0_i32, %arg1, %c0_i32_0 : i32, i32, i32, i32
  }
}

module attributes {stable_mosaic.version = 11 : i64} {
  func.func @ln_qkv_kernel(%arg0: i32, %arg1: i32, %arg2: memref<1x16x32xf32, #tpu.memory_space<vmem>>, %arg3: memref<1x32xf32, #tpu.memory_space<vmem>>, %arg4: memref<1x32xf32, #tpu.memory_space<vmem>>, %arg5: memref<32x96xbf16, #tpu.memory_space<vmem>>, %arg6: memref<1x96xf32, #tpu.memory_space<vmem>>, %arg7: memref<1x4x16x8xbf16, #tpu.memory_space<vmem>>, %arg8: memref<1x4x16x8xbf16, #tpu.memory_space<vmem>>, %arg9: memref<1x4x16x8xbf16, #tpu.memory_space<vmem>>) attributes {dimension_semantics = [#tpu.dimension_semantics<parallel>, #tpu.dimension_semantics<parallel>], iteration_bounds = array<i64: 2, 2>, scalar_prefetch = 0 : i64, scratch_operands = 0 : i64, tpu.core_type = #tpu.core_type<tc>, window_params = [{transform_indices = @transform_0, window_bounds = array<i64: 1, 16, 32>}, {pipeline_mode = #tpu.pipeline_mode<synchronous>, transform_indices = @transform_1, window_bounds = array<i64: 1, 32>}, {pipeline_mode = #tpu.pipeline_mode<synchronous>, transform_indices = @transform_2, window_bounds = array<i64: 1, 32>}, {pipeline_mode = #tpu.pipeline_mode<synchronous>, transform_indices = @transform_3, window_bounds = array<i64: 32, 96>}, {pipeline_mode = #tpu.pipeline_mode<synchronous>, transform_indices = @transform_4, window_bounds = array<i64: 1, 96>}, {transform_indices = @transform_5, window_bounds = array<i64: 1, 4, 16, 8>}, {transform_indices = @transform_6, window_bounds = array<i64: 1, 4, 16, 8>}, {transform_indices = @transform_7, window_bounds = array<i64: 1, 4, 16, 8>}]} {
    %c0 = arith.constant 0 : index
    %c0_0 = arith.constant 0 : index
    %c0_1 = arith.constant 0 : index
    %0 = vector.load %arg2[%c0, %c0_0, %c0_1] : memref<1x16x32xf32, #tpu.memory_space<vmem>>, vector<1x16x32xf32>
    %1 = vector.shape_cast %0 : vector<1x16x32xf32> to vector<16x32xf32>
    %c0_2 = arith.constant 0 : index
    %c0_3 = arith.constant 0 : index
    %2 = vector.load %arg3[%c0_2, %c0_3] : memref<1x32xf32, #tpu.memory_space<vmem>>, vector<1x32xf32>
    %3 = vector.shape_cast %2 : vector<1x32xf32> to vector<32xf32>
    %c0_4 = arith.constant 0 : index
    %c0_5 = arith.constant 0 : index
    %4 = vector.load %arg4[%c0_4, %c0_5] : memref<1x32xf32, #tpu.memory_space<vmem>>, vector<1x32xf32>
    %5 = vector.shape_cast %4 : vector<1x32xf32> to vector<32xf32>
    %cst = arith.constant dense<0.000000e+00> : vector<16xf32>
    %6 = vector.multi_reduction <add>, %1, %cst [1] : vector<16x32xf32> to vector<16xf32>
    %7 = vector.shape_cast %6 : vector<16xf32> to vector<16x1xf32>
    %cst_6 = arith.constant 3.200000e+01 : f32
    %8 = vector.broadcast %cst_6 : f32 to vector<16x1xf32>
    %9 = arith.divf %7, %8 : vector<16x1xf32>
    %10 = vector.broadcast %9 : vector<16x1xf32> to vector<16x32xf32>
    %11 = arith.subf %1, %10 : vector<16x32xf32>
    %12 = arith.mulf %11, %11 : vector<16x32xf32>
    %cst_7 = arith.constant dense<0.000000e+00> : vector<16xf32>
    %13 = vector.multi_reduction <add>, %12, %cst_7 [1] : vector<16x32xf32> to vector<16xf32>
    %14 = vector.shape_cast %13 : vector<16xf32> to vector<16x1xf32>
    %cst_8 = arith.constant 3.200000e+01 : f32
    %15 = vector.broadcast %cst_8 : f32 to vector<16x1xf32>
    %16 = arith.divf %14, %15 : vector<16x1xf32>
    %17 = vector.broadcast %9 : vector<16x1xf32> to vector<16x32xf32>
    %18 = arith.subf %1, %17 : vector<16x32xf32>
    %cst_9 = arith.constant 9.99999974E-6 : f32
    %19 = vector.broadcast %cst_9 : f32 to vector<16x1xf32>
    %20 = arith.addf %16, %19 : vector<16x1xf32>
    %21 = math.rsqrt %20 : vector<16x1xf32>
    %22 = vector.broadcast %21 : vector<16x1xf32> to vector<16x32xf32>
    %23 = arith.mulf %18, %22 : vector<16x32xf32>
    %24 = vector.shape_cast %3 : vector<32xf32> to vector<1x32xf32>
    %25 = vector.broadcast %24 : vector<1x32xf32> to vector<16x32xf32>
    %26 = arith.mulf %23, %25 : vector<16x32xf32>
    %27 = vector.shape_cast %5 : vector<32xf32> to vector<1x32xf32>
    %28 = vector.broadcast %27 : vector<1x32xf32> to vector<16x32xf32>
    %29 = arith.addf %26, %28 : vector<16x32xf32>
    %30 = arith.truncf %29 : vector<16x32xf32> to vector<16x32xbf16>
    %c0_10 = arith.constant 0 : index
    %c0_11 = arith.constant 0 : index
    %31 = vector.load %arg5[%c0_10, %c0_11] : memref<32x96xbf16, #tpu.memory_space<vmem>>, vector<32x96xbf16>
    %cst_12 = arith.constant dense<0.000000e+00> : vector<16x96xf32>
    %32 = tpu.matmul %30, %31, %cst_12 {dimension_numbers = #tpu.dot_dimension_numbers<[1], [0], [0], [1], [0, 0, 1, 1], [], []>} : vector<16x32xbf16>, vector<32x96xbf16>, vector<16x96xf32> -> vector<16x96xf32>
    %c0_13 = arith.constant 0 : index
    %c0_14 = arith.constant 0 : index
    %33 = vector.load %arg6[%c0_13, %c0_14] : memref<1x96xf32, #tpu.memory_space<vmem>>, vector<1x96xf32>
    %34 = vector.shape_cast %33 : vector<1x96xf32> to vector<96xf32>
    %35 = vector.shape_cast %34 : vector<96xf32> to vector<1x96xf32>
    %36 = vector.broadcast %35 : vector<1x96xf32> to vector<16x96xf32>
    %37 = arith.addf %32, %36 : vector<16x96xf32>
    %38 = vector.extract_strided_slice %37 {offsets = [0, 0], sizes = [16, 32], strides = [1, 1]} : vector<16x96xf32> to vector<16x32xf32>
    %39 = vector.shape_cast %38 : vector<16x32xf32> to vector<16x4x8xf32>
    %40 = tpu.transpose %39, [1, 0, 2] : vector<16x4x8xf32> -> vector<4x16x8xf32>
    %41 = arith.truncf %40 : vector<4x16x8xf32> to vector<4x16x8xbf16>
    %c0_15 = arith.constant 0 : index
    %c0_16 = arith.constant 0 : index
    %c0_17 = arith.constant 0 : index
    %c0_18 = arith.constant 0 : index
    %42 = vector.load %arg7[%c0_15, %c0_16, %c0_17, %c0_18] : memref<1x4x16x8xbf16, #tpu.memory_space<vmem>>, vector<1x4x16x8xbf16>
    %43 = vector.shape_cast %42 : vector<1x4x16x8xbf16> to vector<4x16x8xbf16>
    %44 = vector.shape_cast %41 : vector<4x16x8xbf16> to vector<1x4x16x8xbf16>
    tpu.vector_store %arg7[%c0_15, %c0_16, %c0_17, %c0_18], %44 {strides = array<i32>} : memref<1x4x16x8xbf16, #tpu.memory_space<vmem>>, vector<1x4x16x8xbf16>,
    %45 = vector.extract_strided_slice %37 {offsets = [0, 32], sizes = [16, 32], strides = [1, 1]} : vector<16x96xf32> to vector<16x32xf32>
    %46 = vector.shape_cast %45 : vector<16x32xf32> to vector<16x4x8xf32>
    %47 = tpu.transpose %46, [1, 0, 2] : vector<16x4x8xf32> -> vector<4x16x8xf32>
    %48 = arith.truncf %47 : vector<4x16x8xf32> to vector<4x16x8xbf16>
    %c0_19 = arith.constant 0 : index
    %c0_20 = arith.constant 0 : index
    %c0_21 = arith.constant 0 : index
    %c0_22 = arith.constant 0 : index
    %49 = vector.load %arg8[%c0_19, %c0_20, %c0_21, %c0_22] : memref<1x4x16x8xbf16, #tpu.memory_space<vmem>>, vector<1x4x16x8xbf16>
    %50 = vector.shape_cast %49 : vector<1x4x16x8xbf16> to vector<4x16x8xbf16>
    %51 = vector.shape_cast %48 : vector<4x16x8xbf16> to vector<1x4x16x8xbf16>
    tpu.vector_store %arg8[%c0_19, %c0_20, %c0_21, %c0_22], %51 {strides = array<i32>} : memref<1x4x16x8xbf16, #tpu.memory_space<vmem>>, vector<1x4x16x8xbf16>,
    %52 = vector.extract_strided_slice %37 {offsets = [0, 64], sizes = [16, 32], strides = [1, 1]} : vector<16x96xf32> to vector<16x32xf32>
    %53 = vector.shape_cast %52 : vector<16x32xf32> to vector<16x4x8xf32>
    %54 = tpu.transpose %53, [1, 0, 2] : vector<16x4x8xf32> -> vector<4x16x8xf32>
    %55 = arith.truncf %54 : vector<4x16x8xf32> to vector<4x16x8xbf16>
    %c0_23 = arith.constant 0 : index
    %c0_24 = arith.constant 0 : index
    %c0_25 = arith.constant 0 : index
    %c0_26 = arith.constant 0 : index
    %56 = vector.load %arg9[%c0_23, %c0_24, %c0_25, %c0_26] : memref<1x4x16x8xbf16, #tpu.memory_space<vmem>>, vector<1x4x16x8xbf16>
    %57 = vector.shape_cast %56 : vector<1x4x16x8xbf16> to vector<4x16x8xbf16>
    %58 = vector.shape_cast %55 : vector<4x16x8xbf16> to vector<1x4x16x8xbf16>
    tpu.vector_store %arg9[%c0_23, %c0_24, %c0_25, %c0_26], %58 {strides = array<i32>} : memref<1x4x16x8xbf16, #tpu.memory_space<vmem>>, vector<1x4x16x8xbf16>,
    return
  }
  func.func @transform_0(%arg0: i32, %arg1: i32) -> (i32, i32, i32) {
    %c0_i32 = arith.constant 0 : i32
    %c0_i32_0 = arith.constant 0 : i32
    return %arg0, %arg1, %c0_i32 : i32, i32, i32
  }
  func.func @transform_1(%arg0: i32, %arg1: i32) -> (i32, i32) {
    %c0_i32 = arith.constant 0 : i32
    %c0_i32_0 = arith.constant 0 : i32
    %c0_i32_1 = arith.constant 0 : i32
    return %c0_i32, %c0_i32_0 : i32, i32
  }
  func.func @transform_2(%arg0: i32, %arg1: i32) -> (i32, i32) {
    %c0_i32 = arith.constant 0 : i32
    %c0_i32_0 = arith.constant 0 : i32
    %c0_i32_1 = arith.constant 0 : i32
    return %c0_i32, %c0_i32_0 : i32, i32
  }
  func.func @transform_3(%arg0: i32, %arg1: i32) -> (i32, i32) {
    %c0_i32 = arith.constant 0 : i32
    %c0_i32_0 = arith.constant 0 : i32
    %c0_i32_1 = arith.constant 0 : i32
    return %c0_i32, %c0_i32_0 : i32, i32
  }
  func.func @transform_4(%arg0: i32, %arg1: i32) -> (i32, i32) {
    %c0_i32 = arith.constant 0 : i32
    %c0_i32_0 = arith.constant 0 : i32
    %c0_i32_1 = arith.constant 0 : i32
    return %c0_i32, %c0_i32_0 : i32, i32
  }
  func.func @transform_5(%arg0: i32, %arg1: i32) -> (i32, i32, i32, i32) {
    %c0_i32 = arith.constant 0 : i32
    %c0_i32_0 = arith.constant 0 : i32
    %c0_i32_1 = arith.constant 0 : i32
    return %arg0, %c0_i32, %arg1, %c0_i32_0 : i32, i32, i32, i32
  }
  func.func @transform_6(%arg0: i32, %arg1: i32) -> (i32, i32, i32, i32) {
    %c0_i32 = arith.constant 0 : i32
    %c0_i32_0 = arith.constant 0 : i32
    %c0_i32_1 = arith.constant 0 : i32
    return %arg0, %c0_i32, %arg1, %c0_i32_0 : i32, i32, i32, i32
  }
  func.func @transform_7(%arg0: i32, %arg1: i32) -> (i32, i32, i32, i32) {
    %c0_i32 = arith.constant 0 : i32
    %c0_i32_0 = arith.constant 0 : i32
    %c0_i32_1 = arith.constant 0 : i32
    return %arg0, %c0_i32, %arg1, %c0_i32_0 : i32, i32, i32, i32
  }
}

</mosaic_0001>

<llo_original>
// kernel: tpu_custom_call.1
$region0: #{tpu_custom_call.1}
  #allocation0 [shape = 'u32[]', space=smem, size = 0x4, offset = 0x4, fixed_abs, tag = 'smem constant byte address 0x4 - core index']
  #allocation1 [shape = 'u32[144,128]{1,0:T(1,128)}', space=vmem, size = 0x12000, scoped, tag = 'internal scratch']
  %s0 = inlined_call_operand.hbm [shape: f32[2,32,32], index: 0, kind: input, shape index: {}]
  %s1 = inlined_call_operand.vmem [shape: f32[1,32], index: 1, kind: input, shape index: {}]
  %s2 = inlined_call_operand.vmem [shape: f32[1,32], index: 2, kind: input, shape index: {}]
  %s3 = inlined_call_operand.hbm [shape: bf16[32,96], index: 3, kind: input, shape index: {}]
  %s4 = inlined_call_operand.vmem [shape: f32[1,96], index: 4, kind: input, shape index: {}]
  %s5 = inlined_call_operand.vmem [shape: bf16[2,4,32,8], index: 5, kind: output, shape index: {0}]
  %s6 = inlined_call_operand.vmem [shape: bf16[2,4,32,8], index: 6, kind: output, shape index: {1}]
  %s7 = inlined_call_operand.vmem [shape: bf16[2,4,32,8], index: 7, kind: output, shape index: {2}]
  %8 = xla_tuple %s5, %s6, %s7
  %s9 = sld [smem:[#allocation0]]
  $region188: #{tpu_custom_call.1} parent=0
    _
  %s11 = ssub.s32 1, %s9
  %s12 = scalar_select 0, %s11, %s9
  $region1: #{tpu_custom_call.1} parent=0
    #allocation2 [shape = 'u8[16384]{0}', space=vmem, size = 0x4000, scoped, tag = 'input window, operand 0']
    #allocation3 [shape = 's32[2]{0}', space=sflag, size = 0x8, scoped, tag = 'scoped memory for tpu_custom_call.1']
    #allocation4 [shape = 'u8[8192]{0}', space=vmem, size = 0x2000, scoped, tag = 'input window, operand 3, single buffered']
    #allocation5 [shape = 's32[1]{0}', space=sflag, size = 0x4, scoped, tag = 'scoped memory for tpu_custom_call.1']
    #allocation6 [shape = 'u8[32768]{0}', space=vmem, size = 0x8000, scoped, tag = 'output window, operand 0']
    #allocation7 [shape = 'u8[32768]{0}', space=vmem, size = 0x8000, scoped, tag = 'output window, operand 1']
    #allocation8 [shape = 'u8[32768]{0}', space=vmem, size = 0x8000, scoped, tag = 'output window, operand 2']
    %13 = vsyncpa [#allocation3], 0
    %s14 = scalar_lea.sflag [#allocation3], 1
    %15 = vsyncpa %s14, 0
    %16 = vsyncpa [#allocation5], 0
    loop: start=0, step=1, limit=6
    $region2: #{tpu_custom_call.1} parent=1 // loop_pre_header
      _
    $region3: #{tpu_custom_call.1} parent=1 // loop_header
      %s18 = sphi 0, %s22
      %p19 = scmp.ge.s32.totalorder %s18, 6
      %s25 = sphi 0, %s37
      %s26 = sphi 0, %s33
      %s27 = sphi 0, %s25
      %s28 = sphi 0, %s26
      %s29 = sphi 0, %s27
      %s30 = sphi 0, %s28
      %s42 = sphi 0, %s44
      %s45 = sphi 0, %s42
      %s46 = sphi 0, %s45
      %s62 = sphi 0, %s46
      %s66 = sphi 0, %s66
      %s68 = sphi 0, %s66
      %s69 = sphi 0, %s68
      %s83 = sphi 0, %s69
      %s87 = sphi 0, %s87
      %s89 = sphi 0, %s87
      %s90 = sphi 0, %s89
      %s104 = sphi 0, %s90
      %s108 = sphi 0, %s108
      %s110 = sphi 0, %s108
      %s111 = sphi 0, %s110
      %s125 = sphi 0, %s111
      %s129 = sphi 0, %s129
      %s131 = sphi 0, %s129
      %s132 = sphi 0, %s131
      %s146 = sphi 0, %s132
      %s154 = sphi 0, %s156
      %s157 = sphi 0, %s154
      %s158 = sphi 0, %s157
      %s174 = sphi 0, %s158
      %s182 = sphi 0, %s184
      %s185 = sphi 0, %s182
      %s186 = sphi 0, %s185
      %s202 = sphi 0, %s186
      %s210 = sphi 0, %s212
      %s213 = sphi 0, %s210
      %s214 = sphi 0, %s213
      %s230 = sphi 0, %s214
    $region4: #{tpu_custom_call.1} parent=1 // loop_header_branch
      %21 = sbr.rel (%p19) target = $region8
    $region5: #{tpu_custom_call.1} parent=1 // loop_body
      %s23 = ssub.s32 %s18, 1
      %s24 = ssub.s32 %s18, 2
      %s31 = sadd.s32 1, %s26
      %p32 = scmp.ge.s32.totalorder %s31, 2
      %s33 = scalar_select %p32, 0, %s31
      %s34 = sadd.s32 1, %s25
      %s35 = scalar_select %p32, %s34, %s25
      %p36 = scmp.ge.s32.totalorder %s35, 2
      %s37 = scalar_select %p36, 0, %s35
      %s38 = ssub.s32 %s25, %s37
      %s39 = ssub.s32 %s26, %s33
      %s40 = sor.u32 %s38, %s39
      %p41 = scmp.eq.s32.totalorder %s40, 0
      %s43 = sadd.s32 %s42, 1
      %s44 = scalar_select %p41, %s42, %s43
      %p47 = pneg %p41
      %p48 = scmp.eq.s32.totalorder %s18, 3
      %p49 = por %p47, %p48
      %p50 = scmp.ne.s32.totalorder %s42, %s45
      %p51 = scmp.eq.s32.totalorder %s18, 0
      %p52 = por %p50, %p51
      %p53 = scmp.ne.s32.totalorder %s42, %s45
      %p54 = scmp.eq.s32.totalorder %s23, 3
      %p55 = por %p53, %p54
      %p56 = scmp.ne.s32.totalorder %s45, %s46
      %p57 = scmp.eq.s32.totalorder %s23, 0
      %p58 = por %p56, %p57
      %p59 = scmp.ne.s32.totalorder %s45, %s46
      %p60 = scmp.eq.s32.totalorder %s24, 3
      %p61 = por %p59, %p60
      %p63 = scmp.ne.s32.totalorder %s46, %s62
      %p64 = scmp.eq.s32.totalorder %s24, 0
      %p65 = por %p63, %p64
      %s67 = sadd.s32 %s66, 1
      %p70 = scmp.eq.s32.totalorder %s18, 3
      %p71 = scmp.ne.s32.totalorder %s66, %s68
      %p72 = scmp.eq.s32.totalorder %s18, 0
      %p73 = por %p71, %p72
      %p74 = scmp.ne.s32.totalorder %s66, %s68
      %p75 = scmp.eq.s32.totalorder %s23, 3
      %p76 = por %p74, %p75
      %p77 = scmp.ne.s32.totalorder %s68, %s69
      %p78 = scmp.eq.s32.totalorder %s23, 0
      %p79 = por %p77, %p78
      %p80 = scmp.ne.s32.totalorder %s68, %s69
      %p81 = scmp.eq.s32.totalorder %s24, 3
      %p82 = por %p80, %p81
      %p84 = scmp.ne.s32.totalorder %s69, %s83
      %p85 = scmp.eq.s32.totalorder %s24, 0
      %p86 = por %p84, %p85
      %s88 = sadd.s32 %s87, 1
      %p91 = scmp.eq.s32.totalorder %s18, 3
      %p92 = scmp.ne.s32.totalorder %s87, %s89
      %p93 = scmp.eq.s32.totalorder %s18, 0
      %p94 = por %p92, %p93
      %p95 = scmp.ne.s32.totalorder %s87, %s89
      %p96 = scmp.eq.s32.totalorder %s23, 3
      %p97 = por %p95, %p96
      %p98 = scmp.ne.s32.totalorder %s89, %s90
      %p99 = scmp.eq.s32.totalorder %s23, 0
      %p100 = por %p98, %p99
      %p101 = scmp.ne.s32.totalorder %s89, %s90
      %p102 = scmp.eq.s32.totalorder %s24, 3
      %p103 = por %p101, %p102
      %p105 = scmp.ne.s32.totalorder %s90, %s104
      %p106 = scmp.eq.s32.totalorder %s24, 0
      %p107 = por %p105, %p106
      %s109 = sadd.s32 %s108, 1
      %p112 = scmp.eq.s32.totalorder %s18, 3
      %p113 = scmp.ne.s32.totalorder %s108, %s110
      %p114 = scmp.eq.s32.totalorder %s18, 0
      %p115 = por %p113, %p114
      %p116 = scmp.ne.s32.totalorder %s108, %s110
      %p117 = scmp.eq.s32.totalorder %s23, 3
      %p118 = por %p116, %p117
      %p119 = scmp.ne.s32.totalorder %s110, %s111
      %p120 = scmp.eq.s32.totalorder %s23, 0
      %p121 = por %p119, %p120
      %p122 = scmp.ne.s32.totalorder %s110, %s111
      %p123 = scmp.eq.s32.totalorder %s24, 3
      %p124 = por %p122, %p123
      %p126 = scmp.ne.s32.totalorder %s111, %s125
      %p127 = scmp.eq.s32.totalorder %s24, 0
      %p128 = por %p126, %p127
      %s130 = sadd.s32 %s129, 1
      %p133 = scmp.eq.s32.totalorder %s18, 3
      %p134 = scmp.ne.s32.totalorder %s129, %s131
      %p135 = scmp.eq.s32.totalorder %s18, 0
      %p136 = por %p134, %p135
      %p137 = scmp.ne.s32.totalorder %s129, %s131
      %p138 = scmp.eq.s32.totalorder %s23, 3
      %p139 = por %p137, %p138
      %p140 = scmp.ne.s32.totalorder %s131, %s132
      %p141 = scmp.eq.s32.totalorder %s23, 0
      %p142 = por %p140, %p141
      %p143 = scmp.ne.s32.totalorder %s131, %s132
      %p144 = scmp.eq.s32.totalorder %s24, 3
      %p145 = por %p143, %p144
      %p147 = scmp.ne.s32.totalorder %s132, %s146
      %p148 = scmp.eq.s32.totalorder %s24, 0
      %p149 = por %p147, %p148
      %s150 = ssub.s32 %s25, %s37
      %s151 = ssub.s32 %s26, %s33
      %s152 = sor.u32 %s150, %s151
      %p153 = scmp.eq.s32.totalorder %s152, 0
      %s155 = sadd.s32 %s154, 1
      %s156 = scalar_select %p153, %s154, %s155
      %p159 = pneg %p153
      %p160 = scmp.eq.s32.totalorder %s18, 3
      %p161 = por %p159, %p160
      %p162 = scmp.ne.s32.totalorder %s154, %s157
      %p163 = scmp.eq.s32.totalorder %s18, 0
      %p164 = por %p162, %p163
      %p165 = scmp.ne.s32.totalorder %s154, %s157
      %p166 = scmp.eq.s32.totalorder %s23, 3
      %p167 = por %p165, %p166
      %p168 = scmp.ne.s32.totalorder %s157, %s158
      %p169 = scmp.eq.s32.totalorder %s23, 0
      %p170 = por %p168, %p169
      %p171 = scmp.ne.s32.totalorder %s157, %s158
      %p172 = scmp.eq.s32.totalorder %s24, 3
      %p173 = por %p171, %p172
      %p175 = scmp.ne.s32.totalorder %s158, %s174
      %p176 = scmp.eq.s32.totalorder %s24, 0
      %p177 = por %p175, %p176
      %s178 = ssub.s32 %s25, %s37
      %s179 = ssub.s32 %s26, %s33
      %s180 = sor.u32 %s178, %s179
      %p181 = scmp.eq.s32.totalorder %s180, 0
      %s183 = sadd.s32 %s182, 1
      %s184 = scalar_select %p181, %s182, %s183
      %p187 = pneg %p181
      %p188 = scmp.eq.s32.totalorder %s18, 3
      %p189 = por %p187, %p188
      %p190 = scmp.ne.s32.totalorder %s182, %s185
      %p191 = scmp.eq.s32.totalorder %s18, 0
      %p192 = por %p190, %p191
      %p193 = scmp.ne.s32.totalorder %s182, %s185
      %p194 = scmp.eq.s32.totalorder %s23, 3
      %p195 = por %p193, %p194
      %p196 = scmp.ne.s32.totalorder %s185, %s186
      %p197 = scmp.eq.s32.totalorder %s23, 0
      %p198 = por %p196, %p197
      %p199 = scmp.ne.s32.totalorder %s185, %s186
      %p200 = scmp.eq.s32.totalorder %s24, 3
      %p201 = por %p199, %p200
      %p203 = scmp.ne.s32.totalorder %s186, %s202
      %p204 = scmp.eq.s32.totalorder %s24, 0
      %p205 = por %p203, %p204
      %s206 = ssub.s32 %s25, %s37
      %s207 = ssub.s32 %s26, %s33
      %s208 = sor.u32 %s206, %s207
      %p209 = scmp.eq.s32.totalorder %s208, 0
      %s211 = sadd.s32 %s210, 1
      %s212 = scalar_select %p209, %s210, %s211
      %p215 = pneg %p209
      %p216 = scmp.eq.s32.totalorder %s18, 3
      %p217 = por %p215, %p216
      %p218 = scmp.ne.s32.totalorder %s210, %s213
      %p219 = scmp.eq.s32.totalorder %s18, 0
      %p220 = por %p218, %p219
      %p221 = scmp.ne.s32.totalorder %s210, %s213
      %p222 = scmp.eq.s32.totalorder %s23, 3
      %p223 = por %p221, %p222
      %p224 = scmp.ne.s32.totalorder %s213, %s214
      %p225 = scmp.eq.s32.totalorder %s23, 0
      %p226 = por %p224, %p225
      %p227 = scmp.ne.s32.totalorder %s213, %s214
      %p228 = scmp.eq.s32.totalorder %s24, 3
      %p229 = por %p227, %p228
      %p231 = scmp.ne.s32.totalorder %s214, %s230
      %p232 = scmp.eq.s32.totalorder %s24, 0
      %p233 = por %p231, %p232
      %p234 = scmp.le.s32.totalorder 1, %s18
      %p235 = scmp.lt.s32.totalorder %s18, 5
      %p236 = pnand %p234, %p235
      %p237 = pneg %p236
      // Predicated region
      $region9: #{tpu_custom_call.1} parent=5 // pred_check
        _
      $region10: #{tpu_custom_call.1} parent=5 // pred_check_branch
        %239 = sbr.rel (%p236) target = $region12
      $region11: #{tpu_custom_call.1} parent=5 // pred_region
        %s240 = ssub.s32 %s18, 1
        // Predicated region
        $region13: #{tpu_custom_call.1} parent=11 // pred_check
          %p241 = pneg %p79
        $region14: #{tpu_custom_call.1} parent=11 // pred_check_branch
          %243 = sbr.rel (%p241) target = $region16
        $region15: #{tpu_custom_call.1} parent=11 // pred_region
          _
        $region16: #{tpu_custom_call.1} parent=11 // pred_fallthru
          _
        // Predicated region
        $region17: #{tpu_custom_call.1} parent=11 // pred_check
          %p244 = pneg %p100
        $region18: #{tpu_custom_call.1} parent=11 // pred_check_branch
          %246 = sbr.rel (%p244) target = $region20
        $region19: #{tpu_custom_call.1} parent=11 // pred_region
          _
        $region20: #{tpu_custom_call.1} parent=11 // pred_fallthru
          _
        // Predicated region
        $region21: #{tpu_custom_call.1} parent=11 // pred_check
          %p247 = pneg %p121
        $region22: #{tpu_custom_call.1} parent=11 // pred_check_branch
          %249 = sbr.rel (%p247) target = $region24
        $region23: #{tpu_custom_call.1} parent=11 // pred_region
          %s251 = ssub.s32 256, 256
          %252 = vsyncadd [#allocation5], %s251
          %s253 = sshll.u32 [#allocation4], 4
          %s254 = int_to_ptr.vmem [resolvable:$true] %s253
          %259 = dma.hbm_to_vmem [thread:$0]  %s3, 256, %s254, [#allocation5], 64, 64, 4
        $region24: #{tpu_custom_call.1} parent=11 // pred_fallthru
          _
        // Predicated region
        $region25: #{tpu_custom_call.1} parent=11 // pred_check
          %p260 = pneg %p142
        $region26: #{tpu_custom_call.1} parent=11 // pred_check_branch
          %262 = sbr.rel (%p260) target = $region28
        $region27: #{tpu_custom_call.1} parent=11 // pred_region
          _
        $region28: #{tpu_custom_call.1} parent=11 // pred_fallthru
          _
      $region12: #{tpu_custom_call.1} parent=5 // pred_fallthru
        _
      %p263 = scmp.lt.s32.totalorder %s18, 4
      // Predicated region
      $region29: #{tpu_custom_call.1} parent=5 // pred_check
        %p264 = pneg %p263
      $region30: #{tpu_custom_call.1} parent=5 // pred_check_branch
        %266 = sbr.rel (%p264) target = $region32
      $region31: #{tpu_custom_call.1} parent=5 // pred_region
        // Predicated region
        $region33: #{tpu_custom_call.1} parent=31 // pred_check
          %p267 = pneg %p52
        $region34: #{tpu_custom_call.1} parent=31 // pred_check_branch
          %269 = sbr.rel (%p267) target = $region36
        $region35: #{tpu_custom_call.1} parent=31 // pred_region
          %s270 = sand.u32 %s42, 1
          %s271 = scalar_lea.sflag [#allocation3], %s270
          %s272 = sand.u32 %s42, 1
          %s273 = smul.addr %s272, 16
          %s274 = scalar_lea.vmem [#allocation2], %s273
          %s275 = smul.u32 2, %s26
          %s277 = ssub.s32 256, 256
          %278 = vsyncadd %s271, %s277
          %s279 = smul.addr %s25, 4
          %s280 = sadd.s32 %s275, %s279
          %s281 = smul.addr %s280, 128
          %s282 = scalar_lea.hbm %s0, %s281
          %s283 = sshll.u32 %s274, 4
          %s284 = int_to_ptr.vmem [resolvable:$true] %s283
          %289 = dma.hbm_to_vmem [thread:$0]  %s282, 256, %s284, %s271, 128, 128, 8
        $region36: #{tpu_custom_call.1} parent=31 // pred_fallthru
          _
      $region32: #{tpu_custom_call.1} parent=5 // pred_fallthru
        _
      %p290 = scmp.le.s32.totalorder 1, %s18
      %p291 = scmp.lt.s32.totalorder %s18, 5
      %p292 = pnand %p290, %p291
      %p293 = pneg %p292
      // Predicated region
      $region37: #{tpu_custom_call.1} parent=5 // pred_check
        _
      $region38: #{tpu_custom_call.1} parent=5 // pred_check_branch
        %295 = sbr.rel (%p292) target = $region40
      $region39: #{tpu_custom_call.1} parent=5 // pred_region
        %s296 = ssub.s32 %s18, 1
        %s297 = sand.u32 %s45, 1
        %s298 = scalar_lea.sflag [#allocation3], %s297
        %s299 = sand.u32 %s45, 1
        %s300 = smul.addr %s299, 16
        %s301 = scalar_lea.vmem [#allocation2], %s300
        // Predicated region
        $region41: #{tpu_custom_call.1} parent=39 // pred_check
          %p302 = pneg %p58
        $region42: #{tpu_custom_call.1} parent=39 // pred_check_branch
          %304 = sbr.rel (%p302) target = $region44
        $region43: #{tpu_custom_call.1} parent=39 // pred_region
          %305 = dma.done %s298, 256
        $region44: #{tpu_custom_call.1} parent=39 // pred_fallthru
          _
        // Predicated region
        $region45: #{tpu_custom_call.1} parent=39 // pred_check
          %p306 = pneg %p121
        $region46: #{tpu_custom_call.1} parent=39 // pred_check_branch
          %308 = sbr.rel (%p306) target = $region48
        $region47: #{tpu_custom_call.1} parent=39 // pred_region
          %309 = dma.done [#allocation5], 256
        $region48: #{tpu_custom_call.1} parent=39 // pred_fallthru
          _
        %s310 = sand.u32 %s45, 1
        %s311 = scalar_lea.sflag [#allocation3], %s310
        %s312 = sand.u32 %s45, 1
        %s313 = smul.addr %s312, 16
        %s314 = scalar_lea.vmem [#allocation2], %s313
        %p315 = pneg %p58
        %p316 = pneg %p55
        %p317 = pneg %p79
        %p318 = pneg %p76
        %p319 = pneg %p100
        %p320 = pneg %p97
        %p321 = pneg %p121
        %p322 = pneg %p118
        %p323 = pneg %p142
        %p324 = pneg %p139
        %p325 = pneg %p170
        %p326 = pneg %p167
        %s327 = sand.u32 %s157, 1
        %s328 = sand.u32 %s157, 1
        %s329 = smul.addr %s328, 32
        %s330 = scalar_lea.vmem [#allocation6], %s329
        %p331 = pneg %p198
        %p332 = pneg %p195
        %s333 = sand.u32 %s185, 1
        %s334 = sand.u32 %s185, 1
        %s335 = smul.addr %s334, 32
        %s336 = scalar_lea.vmem [#allocation7], %s335
        %p337 = pneg %p226
        %p338 = pneg %p223
        %s339 = sand.u32 %s213, 1
        %s340 = sand.u32 %s213, 1
        %s341 = smul.addr %s340, 32
        %s342 = scalar_lea.vmem [#allocation8], %s341
        %s343 = smul.u32 2, %s28
        %s344 = smul.u32 2, %s28
        %s345 = smul.u32 2, %s28
        %s346 = smul.u32 2, %s28
        %v348 = vld [vmem:[%s301] sm:$0xff]
        %v349 = vld [vmem:[%s301 + $0x8] sm:$0xff]
        %v350 = vld [vmem:[%s1] sm:$0x1]
        %v351 = vld [vmem:[%s2] sm:$0x1]
        %vm352 = vcmask 261120
        %v353 = vsel %vm352, %v348, 0.0
        %354 = vadd.xlane.f32.xlu0 %v353
        %v355 = vpop.xlane.xlu0 %354
        %v356 = vsel %vm352, %v349, 0.0
        %357 = vadd.xlane.f32.xlu0 %v356
        %v358 = vpop.xlane.xlu0 %357
        %v359 = vrcp.pop 32.0
        %v360 = vmul.f32 %v355, %v359
        %v361 = vmul.f32 %v358, %v359
        %v362 = vsub.f32 %v348, %v360
        %v363 = vsub.f32 %v349, %v361
        %v364 = vmul.f32 %v362, %v362
        %v365 = vmul.f32 %v363, %v363
        %v366 = vsel %vm352, %v364, 0.0
        %367 = vadd.xlane.f32.xlu0 %v366
        %v368 = vpop.xlane.xlu0 %367
        %v369 = vsel %vm352, %v365, 0.0
        %370 = vadd.xlane.f32.xlu0 %v369
        %v371 = vpop.xlane.xlu0 %370
        %v372 = vmul.f32 %v368, %v359
        %v373 = vmul.f32 %v371, %v359
        %v374 = vadd.f32 %v372, 1e-05
        %v375 = vadd.f32 %v373, 1e-05
        %v376 = vrsqrt.pop %v374
        %v377 = vrsqrt.pop %v375
        %v378 = vmul.f32 %v362, %v376
        %v379 = vmul.f32 %v363, %v377
        %v381 = vlaneseq
        %v382 = vshrl.u32 %v381, 7
        %v383 = vsub.s32 0, %v382
        %v384 = vrot.slane %v350, %v383
        %v386 = vmul.f32 %v378, %v384
        %v387 = vmul.f32 %v379, %v384
        %v389 = vlaneseq
        %v390 = vshrl.u32 %v389, 7
        %v391 = vsub.s32 0, %v390
        %v392 = vrot.slane %v351, %v391
        %v394 = vadd.f32 %v386, %v392
        %v395 = vadd.f32 %v387, %v392
        %v396 = vpack.c.bf16 %v395, %v394
        %v397 = vld [vmem:[#allocation4] sm:$0xf]
        %v398 = vld [vmem:[#allocation4 + $0x4] sm:$0xf]
        %v399 = vld [vmem:[#allocation4 + $0x8] sm:$0xf]
        %v400 = vld [vmem:[#allocation4 + $0xc] sm:$0xf]
        %v401 = vld [vmem:[%s4] sm:$0x1]
        %v403 = vlaneseq
        %v404 = vshrl.u32 %v403, 7
        %v405 = vsub.s32 0, %v404
        %v406 = vrot.slane %v401, %v405
        %v412 = vunpack.c.l.b16 %v397
        %v413 = vunpack.c.l.b16 %v398
        %v414 = vunpack.c.l.b16 %v399
        %v415 = vunpack.c.l.b16 %v400
        %v416 = vpack.c.b16 %v413, %v412
        %v417 = vpack.c.b16 %v415, %v414
        %v421 = vsel %vm352, %v396, 0
        %423 = vmatprep.subr.bf16.mxu0 0
        %424 = vmatpush1.bf16.msra.mxu0 %v416
        %425 = vmatprep.subr.bf16.mxu0 0
        %426 = vmatpush1.bf16.msra.mxu0 %v417
        %427 = vmatprep.subr.bf16.mxu0 0
        %428 = vmatpush1.bf16.msra.mxu0 0
        %429 = vmatprep.subr.bf16.mxu0 0
        %430 = vmatpush1.bf16.msra.mxu0 0
        %431 = vmatprep.subr.bf16.mxu0 0
        %432 = vmatpush1.bf16.msra.mxu0 0
        %433 = vmatprep.subr.bf16.mxu0 0
        %434 = vmatpush1.bf16.msra.mxu0 0
        %435 = vmatprep.subr.bf16.mxu0 0
        %436 = vmatpush1.bf16.msra.mxu0 0
        %437 = vmatprep.subr.bf16.mxu0 0
        %438 = vmatpush1.bf16.msra.mxu0 0
        %439 = vmatprep.subr.bf16.mxu0 0
        %440 = vmatpush1.bf16.msra.mxu0 0
        %441 = vmatprep.subr.bf16.mxu0 0
        %442 = vmatpush1.bf16.msra.mxu0 0
        %443 = vmatprep.subr.bf16.mxu0 0
        %444 = vmatpush1.bf16.msra.mxu0 0
        %445 = vmatprep.subr.bf16.mxu0 0
        %446 = vmatpush1.bf16.msra.mxu0 0
        %447 = vmatprep.subr.bf16.mxu0 0
        %448 = vmatpush1.bf16.msra.mxu0 0
        %449 = vmatprep.subr.bf16.mxu0 0
        %450 = vmatpush1.bf16.msra.mxu0 0
        %451 = vmatprep.subr.bf16.mxu0 0
        %452 = vmatpush1.bf16.msra.mxu0 0
        %453 = vmatprep.subr.bf16.mxu0 0
        %454 = vmatpush1.bf16.msra.mxu0 0
        %455 = vmatprep.mubr.bf16.mxu0 0
        %456 = vmatmul.mubr.bf16.gmra.mrb[0].mxu0 %v421
        %v457 = vpop.f32.mrb[0].mxu0
        %v458 = vadd.f32 %v406, %v457
        %v459 = vpop.f32.mrb[0].mxu0
        %v460 = vpop.f32.mrb[0].mxu0
        %v461 = vadd.f32 %v406, %v460
        %v462 = vpop.f32.mrb[0].mxu0
        %463 = vdwg.mxu0
        %466 = vrot.lane.b32.xlu0 %v458, 120
        %v467 = vpop.permute.xlu0 %466
        %468 = vrot.lane.b32.xlu0 %v461, 120
        %v469 = vpop.permute.xlu0 %468
        %472 = vrot.lane.b32.xlu0 %v458, 112
        %v473 = vpop.permute.xlu0 %472
        %474 = vrot.lane.b32.xlu0 %v461, 112
        %v475 = vpop.permute.xlu0 %474
        %478 = vrot.lane.b32.xlu0 %v458, 104
        %v479 = vpop.permute.xlu0 %478
        %480 = vrot.lane.b32.xlu0 %v461, 104
        %v481 = vpop.permute.xlu0 %480
        %v484 = vcombine.low %v458, %v473
        %v485 = vcombine.high %v458, %v473
        %v487 = vunpack.c.l.s4 1983009808
        %v488 = vunpack.c.0.s8 %v487
        %v489 = vlaneseq
        %v490 = vshrl.u32 %v489, 7
        %v491 = vsub.s32 %v488, %v490
        %v492 = vrot.slane %v484, %v491
        %v494 = vunpack.c.l.s4 1983009808
        %v495 = vunpack.c.0.s8 %v494
        %v496 = vlaneseq
        %v497 = vshrl.u32 %v496, 7
        %v498 = vsub.s32 %v495, %v497
        %v499 = vrot.slane %v485, %v498
        %v500 = vcombine.low %v467, %v479
        %v501 = vcombine.high %v467, %v479
        %v503 = vunpack.c.l.s4 1983009808
        %v504 = vunpack.c.0.s8 %v503
        %v505 = vlaneseq
        %v506 = vshrl.u32 %v505, 7
        %v507 = vsub.s32 %v504, %v506
        %v508 = vrot.slane %v500, %v507
        %v510 = vunpack.c.l.s4 1983009808
        %v511 = vunpack.c.0.s8 %v510
        %v512 = vlaneseq
        %v513 = vshrl.u32 %v512, 7
        %v514 = vsub.s32 %v511, %v513
        %v515 = vrot.slane %v501, %v514
        %v516 = vcombine.low %v492, %v508
        %v517 = vcombine.high %v492, %v508
        %v519 = vunpack.c.l.s4 1934713408
        %v520 = vunpack.c.0.s8 %v519
        %v521 = vlaneseq
        %v522 = vshrl.u32 %v521, 7
        %v523 = vsub.s32 %v520, %v522
        %v524 = vrot.slane %v516, %v523
        %v526 = vunpack.c.l.s4 1934713408
        %v527 = vunpack.c.0.s8 %v526
        %v528 = vlaneseq
        %v529 = vshrl.u32 %v528, 7
        %v530 = vsub.s32 %v527, %v529
        %v531 = vrot.slane %v517, %v530
        %v532 = vcombine.low %v499, %v515
        %v533 = vcombine.high %v499, %v515
        %v535 = vunpack.c.l.s4 1934713408
        %v536 = vunpack.c.0.s8 %v535
        %v537 = vlaneseq
        %v538 = vshrl.u32 %v537, 7
        %v539 = vsub.s32 %v536, %v538
        %v540 = vrot.slane %v532, %v539
        %v542 = vunpack.c.l.s4 1934713408
        %v543 = vunpack.c.0.s8 %v542
        %v544 = vlaneseq
        %v545 = vshrl.u32 %v544, 7
        %v546 = vsub.s32 %v543, %v545
        %v547 = vrot.slane %v533, %v546
        %v548 = vcombine.high %v524, 0.0
        %v549 = vcombine.high %v531, 0.0
        %v550 = vcombine.high %v540, 0.0
        %v551 = vcombine.high %v547, 0.0
        %v552 = vcombine.low %v461, %v475
        %v553 = vcombine.high %v461, %v475
        %v555 = vunpack.c.l.s4 1983009808
        %v556 = vunpack.c.0.s8 %v555
        %v557 = vlaneseq
        %v558 = vshrl.u32 %v557, 7
        %v559 = vsub.s32 %v556, %v558
        %v560 = vrot.slane %v552, %v559
        %v562 = vunpack.c.l.s4 1983009808
        %v563 = vunpack.c.0.s8 %v562
        %v564 = vlaneseq
        %v565 = vshrl.u32 %v564, 7
        %v566 = vsub.s32 %v563, %v565
        %v567 = vrot.slane %v553, %v566
        %v568 = vcombine.low %v469, %v481
        %v569 = vcombine.high %v469, %v481
        %v571 = vunpack.c.l.s4 1983009808
        %v572 = vunpack.c.0.s8 %v571
        %v573 = vlaneseq
        %v574 = vshrl.u32 %v573, 7
        %v575 = vsub.s32 %v572, %v574
        %v576 = vrot.slane %v568, %v575
        %v578 = vunpack.c.l.s4 1983009808
        %v579 = vunpack.c.0.s8 %v578
        %v580 = vlaneseq
        %v581 = vshrl.u32 %v580, 7
        %v582 = vsub.s32 %v579, %v581
        %v583 = vrot.slane %v569, %v582
        %v584 = vcombine.low %v560, %v576
        %v585 = vcombine.high %v560, %v576
        %v587 = vunpack.c.l.s4 1934713408
        %v588 = vunpack.c.0.s8 %v587
        %v589 = vlaneseq
        %v590 = vshrl.u32 %v589, 7
        %v591 = vsub.s32 %v588, %v590
        %v592 = vrot.slane %v584, %v591
        %v594 = vunpack.c.l.s4 1934713408
        %v595 = vunpack.c.0.s8 %v594
        %v596 = vlaneseq
        %v597 = vshrl.u32 %v596, 7
        %v598 = vsub.s32 %v595, %v597
        %v599 = vrot.slane %v585, %v598
        %v600 = vcombine.low %v567, %v583
        %v601 = vcombine.high %v567, %v583
        %v603 = vunpack.c.l.s4 1934713408
        %v604 = vunpack.c.0.s8 %v603
        %v605 = vlaneseq
        %v606 = vshrl.u32 %v605, 7
        %v607 = vsub.s32 %v604, %v606
        %v608 = vrot.slane %v600, %v607
        %v610 = vunpack.c.l.s4 1934713408
        %v611 = vunpack.c.0.s8 %v610
        %v612 = vlaneseq
        %v613 = vshrl.u32 %v612, 7
        %v614 = vsub.s32 %v611, %v613
        %v615 = vrot.slane %v601, %v614
        %v616 = vcombine.high %v592, 0.0
        %v617 = vcombine.high %v599, 0.0
        %v618 = vcombine.high %v608, 0.0
        %v619 = vcombine.high %v615, 0.0
        %v620 = vcombine.low %v524, %v531
        %v622 = vunpack.c.l.s4 1983009808
        %v623 = vunpack.c.0.s8 %v622
        %v624 = vlaneseq
        %v625 = vshrl.u32 %v624, 7
        %v626 = vsub.s32 %v623, %v625
        %v627 = vrot.slane %v620, %v626
        %v628 = vcombine.low %v548, %v549
        %v630 = vunpack.c.l.s4 1983009808
        %v631 = vunpack.c.0.s8 %v630
        %v632 = vlaneseq
        %v633 = vshrl.u32 %v632, 7
        %v634 = vsub.s32 %v631, %v633
        %v635 = vrot.slane %v628, %v634
        %v636 = vcombine.low %v540, %v547
        %v638 = vunpack.c.l.s4 1983009808
        %v639 = vunpack.c.0.s8 %v638
        %v640 = vlaneseq
        %v641 = vshrl.u32 %v640, 7
        %v642 = vsub.s32 %v639, %v641
        %v643 = vrot.slane %v636, %v642
        %v644 = vcombine.low %v550, %v551
        %v646 = vunpack.c.l.s4 1983009808
        %v647 = vunpack.c.0.s8 %v646
        %v648 = vlaneseq
        %v649 = vshrl.u32 %v648, 7
        %v650 = vsub.s32 %v647, %v649
        %v651 = vrot.slane %v644, %v650
        %v652 = vcombine.low %v627, %v635
        %v653 = vcombine.high %v627, %v635
        %v655 = vunpack.c.l.s4 1934713408
        %v656 = vunpack.c.0.s8 %v655
        %v657 = vlaneseq
        %v658 = vshrl.u32 %v657, 7
        %v659 = vsub.s32 %v656, %v658
        %v660 = vrot.slane %v652, %v659
        %v662 = vunpack.c.l.s4 1934713408
        %v663 = vunpack.c.0.s8 %v662
        %v664 = vlaneseq
        %v665 = vshrl.u32 %v664, 7
        %v666 = vsub.s32 %v663, %v665
        %v667 = vrot.slane %v653, %v666
        %v668 = vcombine.low %v643, %v651
        %v669 = vcombine.high %v643, %v651
        %v671 = vunpack.c.l.s4 1934713408
        %v672 = vunpack.c.0.s8 %v671
        %v673 = vlaneseq
        %v674 = vshrl.u32 %v673, 7
        %v675 = vsub.s32 %v672, %v674
        %v676 = vrot.slane %v668, %v675
        %v678 = vunpack.c.l.s4 1934713408
        %v679 = vunpack.c.0.s8 %v678
        %v680 = vlaneseq
        %v681 = vshrl.u32 %v680, 7
        %v682 = vsub.s32 %v679, %v681
        %v683 = vrot.slane %v669, %v682
        %v684 = vcombine.low %v660, %v676
        %v685 = vcombine.high %v660, %v676
        %v686 = vcombine.low %v667, %v683
        %v687 = vcombine.high %v667, %v683
        %v688 = vcombine.low %v592, %v599
        %v690 = vunpack.c.l.s4 1983009808
        %v691 = vunpack.c.0.s8 %v690
        %v692 = vlaneseq
        %v693 = vshrl.u32 %v692, 7
        %v694 = vsub.s32 %v691, %v693
        %v695 = vrot.slane %v688, %v694
        %v696 = vcombine.low %v616, %v617
        %v698 = vunpack.c.l.s4 1983009808
        %v699 = vunpack.c.0.s8 %v698
        %v700 = vlaneseq
        %v701 = vshrl.u32 %v700, 7
        %v702 = vsub.s32 %v699, %v701
        %v703 = vrot.slane %v696, %v702
        %v704 = vcombine.low %v608, %v615
        %v706 = vunpack.c.l.s4 1983009808
        %v707 = vunpack.c.0.s8 %v706
        %v708 = vlaneseq
        %v709 = vshrl.u32 %v708, 7
        %v710 = vsub.s32 %v707, %v709
        %v711 = vrot.slane %v704, %v710
        %v712 = vcombine.low %v618, %v619
        %v714 = vunpack.c.l.s4 1983009808
        %v715 = vunpack.c.0.s8 %v714
        %v716 = vlaneseq
        %v717 = vshrl.u32 %v716, 7
        %v718 = vsub.s32 %v715, %v717
        %v719 = vrot.slane %v712, %v718
        %v720 = vcombine.low %v695, %v703
        %v721 = vcombine.high %v695, %v703
        %v723 = vunpack.c.l.s4 1934713408
        %v724 = vunpack.c.0.s8 %v723
        %v725 = vlaneseq
        %v726 = vshrl.u32 %v725, 7
        %v727 = vsub.s32 %v724, %v726
        %v728 = vrot.slane %v720, %v727
        %v730 = vunpack.c.l.s4 1934713408
        %v731 = vunpack.c.0.s8 %v730
        %v732 = vlaneseq
        %v733 = vshrl.u32 %v732, 7
        %v734 = vsub.s32 %v731, %v733
        %v735 = vrot.slane %v721, %v734
        %v736 = vcombine.low %v711, %v719
        %v737 = vcombine.high %v711, %v719
        %v739 = vunpack.c.l.s4 1934713408
        %v740 = vunpack.c.0.s8 %v739
        %v741 = vlaneseq
        %v742 = vshrl.u32 %v741, 7
        %v743 = vsub.s32 %v740, %v742
        %v744 = vrot.slane %v736, %v743
        %v746 = vunpack.c.l.s4 1934713408
        %v747 = vunpack.c.0.s8 %v746
        %v748 = vlaneseq
        %v749 = vshrl.u32 %v748, 7
        %v750 = vsub.s32 %v747, %v749
        %v751 = vrot.slane %v737, %v750
        %v752 = vcombine.low %v728, %v744
        %v753 = vcombine.high %v728, %v744
        %v754 = vcombine.low %v735, %v751
        %v755 = vcombine.high %v735, %v751
        %v756 = vpack.c.bf16 %v752, %v684
        %v757 = vpack.c.bf16 %v753, %v685
        %v758 = vpack.c.bf16 %v754, %v686
        %v759 = vpack.c.bf16 %v755, %v687
        %v764 = vunpack.c.l.b16 %v756
        %v765 = vunpack.c.h.b16 %v756
        %v766 = vunpack.c.l.b16 %v757
        %v767 = vunpack.c.h.b16 %v757
        %v768 = vunpack.c.l.b16 %v758
        %v769 = vunpack.c.h.b16 %v758
        %v770 = vunpack.c.l.b16 %v759
        %v771 = vunpack.c.h.b16 %v759
        %v772 = vpack.c.b16 %v764, %v764
        %v773 = vpack.c.b16 %v765, %v765
        %v774 = vpack.c.b16 %v766, %v766
        %v775 = vpack.c.b16 %v767, %v767
        %v776 = vpack.c.b16 %v768, %v768
        %v777 = vpack.c.b16 %v769, %v769
        %v778 = vpack.c.b16 %v770, %v770
        %v779 = vpack.c.b16 %v771, %v771
        %vm788 = vcmask 60416
        %789 = vst.msk [vmem:[%s330] sm:$0xf] %vm788, %v772
        %790 = vst.msk [vmem:[%s330 + $0x4] sm:$0xf] %vm788, %v773
        %791 = vst.msk [vmem:[%s330 + $0x8] sm:$0xf] %vm788, %v774
        %792 = vst.msk [vmem:[%s330 + $0xc] sm:$0xf] %vm788, %v775
        %793 = vst.msk [vmem:[%s330 + $0x10] sm:$0xf] %vm788, %v776
        %794 = vst.msk [vmem:[%s330 + $0x14] sm:$0xf] %vm788, %v777
        %795 = vst.msk [vmem:[%s330 + $0x18] sm:$0xf] %vm788, %v778
        %796 = vst.msk [vmem:[%s330 + $0x1c] sm:$0xf] %vm788, %v779
        %797 = vrot.lane.b32.xlu0 %v458, 96
        %v798 = vpop.permute.xlu0 %797
        %799 = vrot.lane.b32.xlu0 %v461, 96
        %v800 = vpop.permute.xlu0 %799
        %801 = vrot.lane.b32.xlu0 %v467, 96
        %v802 = vpop.permute.xlu0 %801
        %803 = vrot.lane.b32.xlu0 %v469, 96
        %v804 = vpop.permute.xlu0 %803
        %805 = vrot.lane.b32.xlu0 %v473, 96
        %v806 = vpop.permute.xlu0 %805
        %807 = vrot.lane.b32.xlu0 %v475, 96
        %v808 = vpop.permute.xlu0 %807
        %809 = vrot.lane.b32.xlu0 %v479, 96
        %v810 = vpop.permute.xlu0 %809
        %811 = vrot.lane.b32.xlu0 %v481, 96
        %v812 = vpop.permute.xlu0 %811
        %v821 = vcombine.low %v798, %v806
        %v822 = vcombine.high %v798, %v806
        %v824 = vunpack.c.l.s4 1983009808
        %v825 = vunpack.c.0.s8 %v824
        %v826 = vlaneseq
        %v827 = vshrl.u32 %v826, 7
        %v828 = vsub.s32 %v825, %v827
        %v829 = vrot.slane %v821, %v828
        %v831 = vunpack.c.l.s4 1983009808
        %v832 = vunpack.c.0.s8 %v831
        %v833 = vlaneseq
        %v834 = vshrl.u32 %v833, 7
        %v835 = vsub.s32 %v832, %v834
        %v836 = vrot.slane %v822, %v835
        %v837 = vcombine.low %v802, %v810
        %v838 = vcombine.high %v802, %v810
        %v840 = vunpack.c.l.s4 1983009808
        %v841 = vunpack.c.0.s8 %v840
        %v842 = vlaneseq
        %v843 = vshrl.u32 %v842, 7
        %v844 = vsub.s32 %v841, %v843
        %v845 = vrot.slane %v837, %v844
        %v847 = vunpack.c.l.s4 1983009808
        %v848 = vunpack.c.0.s8 %v847
        %v849 = vlaneseq
        %v850 = vshrl.u32 %v849, 7
        %v851 = vsub.s32 %v848, %v850
        %v852 = vrot.slane %v838, %v851
        %v853 = vcombine.low %v829, %v845
        %v854 = vcombine.high %v829, %v845
        %v856 = vunpack.c.l.s4 1934713408
        %v857 = vunpack.c.0.s8 %v856
        %v858 = vlaneseq
        %v859 = vshrl.u32 %v858, 7
        %v860 = vsub.s32 %v857, %v859
        %v861 = vrot.slane %v853, %v860
        %v863 = vunpack.c.l.s4 1934713408
        %v864 = vunpack.c.0.s8 %v863
        %v865 = vlaneseq
        %v866 = vshrl.u32 %v865, 7
        %v867 = vsub.s32 %v864, %v866
        %v868 = vrot.slane %v854, %v867
        %v869 = vcombine.low %v836, %v852
        %v870 = vcombine.high %v836, %v852
        %v872 = vunpack.c.l.s4 1934713408
        %v873 = vunpack.c.0.s8 %v872
        %v874 = vlaneseq
        %v875 = vshrl.u32 %v874, 7
        %v876 = vsub.s32 %v873, %v875
        %v877 = vrot.slane %v869, %v876
        %v879 = vunpack.c.l.s4 1934713408
        %v880 = vunpack.c.0.s8 %v879
        %v881 = vlaneseq
        %v882 = vshrl.u32 %v881, 7
        %v883 = vsub.s32 %v880, %v882
        %v884 = vrot.slane %v870, %v883
        %v885 = vcombine.high %v861, 0.0
        %v886 = vcombine.high %v868, 0.0
        %v887 = vcombine.high %v877, 0.0
        %v888 = vcombine.high %v884, 0.0
        %v889 = vcombine.low %v800, %v808
        %v890 = vcombine.high %v800, %v808
        %v892 = vunpack.c.l.s4 1983009808
        %v893 = vunpack.c.0.s8 %v892
        %v894 = vlaneseq
        %v895 = vshrl.u32 %v894, 7
        %v896 = vsub.s32 %v893, %v895
        %v897 = vrot.slane %v889, %v896
        %v899 = vunpack.c.l.s4 1983009808
        %v900 = vunpack.c.0.s8 %v899
        %v901 = vlaneseq
        %v902 = vshrl.u32 %v901, 7
        %v903 = vsub.s32 %v900, %v902
        %v904 = vrot.slane %v890, %v903
        %v905 = vcombine.low %v804, %v812
        %v906 = vcombine.high %v804, %v812
        %v908 = vunpack.c.l.s4 1983009808
        %v909 = vunpack.c.0.s8 %v908
        %v910 = vlaneseq
        %v911 = vshrl.u32 %v910, 7
        %v912 = vsub.s32 %v909, %v911
        %v913 = vrot.slane %v905, %v912
        %v915 = vunpack.c.l.s4 1983009808
        %v916 = vunpack.c.0.s8 %v915
        %v917 = vlaneseq
        %v918 = vshrl.u32 %v917, 7
        %v919 = vsub.s32 %v916, %v918
        %v920 = vrot.slane %v906, %v919
        %v921 = vcombine.low %v897, %v913
        %v922 = vcombine.high %v897, %v913
        %v924 = vunpack.c.l.s4 1934713408
        %v925 = vunpack.c.0.s8 %v924
        %v926 = vlaneseq
        %v927 = vshrl.u32 %v926, 7
        %v928 = vsub.s32 %v925, %v927
        %v929 = vrot.slane %v921, %v928
        %v931 = vunpack.c.l.s4 1934713408
        %v932 = vunpack.c.0.s8 %v931
        %v933 = vlaneseq
        %v934 = vshrl.u32 %v933, 7
        %v935 = vsub.s32 %v932, %v934
        %v936 = vrot.slane %v922, %v935
        %v937 = vcombine.low %v904, %v920
        %v938 = vcombine.high %v904, %v920
        %v940 = vunpack.c.l.s4 1934713408
        %v941 = vunpack.c.0.s8 %v940
        %v942 = vlaneseq
        %v943 = vshrl.u32 %v942, 7
        %v944 = vsub.s32 %v941, %v943
        %v945 = vrot.slane %v937, %v944
        %v947 = vunpack.c.l.s4 1934713408
        %v948 = vunpack.c.0.s8 %v947
        %v949 = vlaneseq
        %v950 = vshrl.u32 %v949, 7
        %v951 = vsub.s32 %v948, %v950
        %v952 = vrot.slane %v938, %v951
        %v953 = vcombine.high %v929, 0.0
        %v954 = vcombine.high %v936, 0.0
        %v955 = vcombine.high %v945, 0.0
        %v956 = vcombine.high %v952, 0.0
        %v957 = vcombine.low %v861, %v868
        %v959 = vunpack.c.l.s4 1983009808
        %v960 = vunpack.c.0.s8 %v959
        %v961 = vlaneseq
        %v962 = vshrl.u32 %v961, 7
        %v963 = vsub.s32 %v960, %v962
        %v964 = vrot.slane %v957, %v963
        %v965 = vcombine.low %v885, %v886
        %v967 = vunpack.c.l.s4 1983009808
        %v968 = vunpack.c.0.s8 %v967
        %v969 = vlaneseq
        %v970 = vshrl.u32 %v969, 7
        %v971 = vsub.s32 %v968, %v970
        %v972 = vrot.slane %v965, %v971
        %v973 = vcombine.low %v877, %v884
        %v975 = vunpack.c.l.s4 1983009808
        %v976 = vunpack.c.0.s8 %v975
        %v977 = vlaneseq
        %v978 = vshrl.u32 %v977, 7
        %v979 = vsub.s32 %v976, %v978
        %v980 = vrot.slane %v973, %v979
        %v981 = vcombine.low %v887, %v888
        %v983 = vunpack.c.l.s4 1983009808
        %v984 = vunpack.c.0.s8 %v983
        %v985 = vlaneseq
        %v986 = vshrl.u32 %v985, 7
        %v987 = vsub.s32 %v984, %v986
        %v988 = vrot.slane %v981, %v987
        %v989 = vcombine.low %v964, %v972
        %v990 = vcombine.high %v964, %v972
        %v992 = vunpack.c.l.s4 1934713408
        %v993 = vunpack.c.0.s8 %v992
        %v994 = vlaneseq
        %v995 = vshrl.u32 %v994, 7
        %v996 = vsub.s32 %v993, %v995
        %v997 = vrot.slane %v989, %v996
        %v999 = vunpack.c.l.s4 1934713408
        %v1000 = vunpack.c.0.s8 %v999
        %v1001 = vlaneseq
        %v1002 = vshrl.u32 %v1001, 7
        %v1003 = vsub.s32 %v1000, %v1002
        %v1004 = vrot.slane %v990, %v1003
        %v1005 = vcombine.low %v980, %v988
        %v1006 = vcombine.high %v980, %v988
        %v1008 = vunpack.c.l.s4 1934713408
        %v1009 = vunpack.c.0.s8 %v1008
        %v1010 = vlaneseq
        %v1011 = vshrl.u32 %v1010, 7
        %v1012 = vsub.s32 %v1009, %v1011
        %v1013 = vrot.slane %v1005, %v1012
        %v1015 = vunpack.c.l.s4 1934713408
        %v1016 = vunpack.c.0.s8 %v1015
        %v1017 = vlaneseq
        %v1018 = vshrl.u32 %v1017, 7
        %v1019 = vsub.s32 %v1016, %v1018
        %v1020 = vrot.slane %v1006, %v1019
        %v1021 = vcombine.low %v997, %v1013
        %v1022 = vcombine.high %v997, %v1013
        %v1023 = vcombine.low %v1004, %v1020
        %v1024 = vcombine.high %v1004, %v1020
        %v1025 = vcombine.low %v929, %v936
        %v1027 = vunpack.c.l.s4 1983009808
        %v1028 = vunpack.c.0.s8 %v1027
        %v1029 = vlaneseq
        %v1030 = vshrl.u32 %v1029, 7
        %v1031 = vsub.s32 %v1028, %v1030
        %v1032 = vrot.slane %v1025, %v1031
        %v1033 = vcombine.low %v953, %v954
        %v1035 = vunpack.c.l.s4 1983009808
        %v1036 = vunpack.c.0.s8 %v1035
        %v1037 = vlaneseq
        %v1038 = vshrl.u32 %v1037, 7
        %v1039 = vsub.s32 %v1036, %v1038
        %v1040 = vrot.slane %v1033, %v1039
        %v1041 = vcombine.low %v945, %v952
        %v1043 = vunpack.c.l.s4 1983009808
        %v1044 = vunpack.c.0.s8 %v1043
        %v1045 = vlaneseq
        %v1046 = vshrl.u32 %v1045, 7
        %v1047 = vsub.s32 %v1044, %v1046
        %v1048 = vrot.slane %v1041, %v1047
        %v1049 = vcombine.low %v955, %v956
        %v1051 = vunpack.c.l.s4 1983009808
        %v1052 = vunpack.c.0.s8 %v1051
        %v1053 = vlaneseq
        %v1054 = vshrl.u32 %v1053, 7
        %v1055 = vsub.s32 %v1052, %v1054
        %v1056 = vrot.slane %v1049, %v1055
        %v1057 = vcombine.low %v1032, %v1040
        %v1058 = vcombine.high %v1032, %v1040
        %v1060 = vunpack.c.l.s4 1934713408
        %v1061 = vunpack.c.0.s8 %v1060
        %v1062 = vlaneseq
        %v1063 = vshrl.u32 %v1062, 7
        %v1064 = vsub.s32 %v1061, %v1063
        %v1065 = vrot.slane %v1057, %v1064
        %v1067 = vunpack.c.l.s4 1934713408
        %v1068 = vunpack.c.0.s8 %v1067
        %v1069 = vlaneseq
        %v1070 = vshrl.u32 %v1069, 7
        %v1071 = vsub.s32 %v1068, %v1070
        %v1072 = vrot.slane %v1058, %v1071
        %v1073 = vcombine.low %v1048, %v1056
        %v1074 = vcombine.high %v1048, %v1056
        %v1076 = vunpack.c.l.s4 1934713408
        %v1077 = vunpack.c.0.s8 %v1076
        %v1078 = vlaneseq
        %v1079 = vshrl.u32 %v1078, 7
        %v1080 = vsub.s32 %v1077, %v1079
        %v1081 = vrot.slane %v1073, %v1080
        %v1083 = vunpack.c.l.s4 1934713408
        %v1084 = vunpack.c.0.s8 %v1083
        %v1085 = vlaneseq
        %v1086 = vshrl.u32 %v1085, 7
        %v1087 = vsub.s32 %v1084, %v1086
        %v1088 = vrot.slane %v1074, %v1087
        %v1089 = vcombine.low %v1065, %v1081
        %v1090 = vcombine.high %v1065, %v1081
        %v1091 = vcombine.low %v1072, %v1088
        %v1092 = vcombine.high %v1072, %v1088
        %v1093 = vpack.c.bf16 %v1089, %v1021
        %v1094 = vpack.c.bf16 %v1090, %v1022
        %v1095 = vpack.c.bf16 %v1091, %v1023
        %v1096 = vpack.c.bf16 %v1092, %v1024
        %v1101 = vunpack.c.l.b16 %v1093
        %v1102 = vunpack.c.h.b16 %v1093
        %v1103 = vunpack.c.l.b16 %v1094
        %v1104 = vunpack.c.h.b16 %v1094
        %v1105 = vunpack.c.l.b16 %v1095
        %v1106 = vunpack.c.h.b16 %v1095
        %v1107 = vunpack.c.l.b16 %v1096
        %v1108 = vunpack.c.h.b16 %v1096
        %v1109 = vpack.c.b16 %v1101, %v1101
        %v1110 = vpack.c.b16 %v1102, %v1102
        %v1111 = vpack.c.b16 %v1103, %v1103
        %v1112 = vpack.c.b16 %v1104, %v1104
        %v1113 = vpack.c.b16 %v1105, %v1105
        %v1114 = vpack.c.b16 %v1106, %v1106
        %v1115 = vpack.c.b16 %v1107, %v1107
        %v1116 = vpack.c.b16 %v1108, %v1108
        %1125 = vst.msk [vmem:[%s336] sm:$0xf] %vm788, %v1109
        %1126 = vst.msk [vmem:[%s336 + $0x4] sm:$0xf] %vm788, %v1110
        %1127 = vst.msk [vmem:[%s336 + $0x8] sm:$0xf] %vm788, %v1111
        %1128 = vst.msk [vmem:[%s336 + $0xc] sm:$0xf] %vm788, %v1112
        %1129 = vst.msk [vmem:[%s336 + $0x10] sm:$0xf] %vm788, %v1113
        %1130 = vst.msk [vmem:[%s336 + $0x14] sm:$0xf] %vm788, %v1114
        %1131 = vst.msk [vmem:[%s336 + $0x18] sm:$0xf] %vm788, %v1115
        %1132 = vst.msk [vmem:[%s336 + $0x1c] sm:$0xf] %vm788, %v1116
        %1133 = vrot.lane.b32.xlu0 %v458, 64
        %v1134 = vpop.permute.xlu0 %1133
        %1135 = vrot.lane.b32.xlu0 %v461, 64
        %v1136 = vpop.permute.xlu0 %1135
        %1137 = vrot.lane.b32.xlu0 %v467, 64
        %v1138 = vpop.permute.xlu0 %1137
        %1139 = vrot.lane.b32.xlu0 %v469, 64
        %v1140 = vpop.permute.xlu0 %1139
        %1141 = vrot.lane.b32.xlu0 %v473, 64
        %v1142 = vpop.permute.xlu0 %1141
        %1143 = vrot.lane.b32.xlu0 %v475, 64
        %v1144 = vpop.permute.xlu0 %1143
        %1145 = vrot.lane.b32.xlu0 %v479, 64
        %v1146 = vpop.permute.xlu0 %1145
        %1147 = vrot.lane.b32.xlu0 %v481, 64
        %v1148 = vpop.permute.xlu0 %1147
        %v1157 = vcombine.low %v1134, %v1142
        %v1158 = vcombine.high %v1134, %v1142
        %v1160 = vunpack.c.l.s4 1983009808
        %v1161 = vunpack.c.0.s8 %v1160
        %v1162 = vlaneseq
        %v1163 = vshrl.u32 %v1162, 7
        %v1164 = vsub.s32 %v1161, %v1163
        %v1165 = vrot.slane %v1157, %v1164
        %v1167 = vunpack.c.l.s4 1983009808
        %v1168 = vunpack.c.0.s8 %v1167
        %v1169 = vlaneseq
        %v1170 = vshrl.u32 %v1169, 7
        %v1171 = vsub.s32 %v1168, %v1170
        %v1172 = vrot.slane %v1158, %v1171
        %v1173 = vcombine.low %v1138, %v1146
        %v1174 = vcombine.high %v1138, %v1146
        %v1176 = vunpack.c.l.s4 1983009808
        %v1177 = vunpack.c.0.s8 %v1176
        %v1178 = vlaneseq
        %v1179 = vshrl.u32 %v1178, 7
        %v1180 = vsub.s32 %v1177, %v1179
        %v1181 = vrot.slane %v1173, %v1180
        %v1183 = vunpack.c.l.s4 1983009808
        %v1184 = vunpack.c.0.s8 %v1183
        %v1185 = vlaneseq
        %v1186 = vshrl.u32 %v1185, 7
        %v1187 = vsub.s32 %v1184, %v1186
        %v1188 = vrot.slane %v1174, %v1187
        %v1189 = vcombine.low %v1165, %v1181
        %v1190 = vcombine.high %v1165, %v1181
        %v1192 = vunpack.c.l.s4 1934713408
        %v1193 = vunpack.c.0.s8 %v1192
        %v1194 = vlaneseq
        %v1195 = vshrl.u32 %v1194, 7
        %v1196 = vsub.s32 %v1193, %v1195
        %v1197 = vrot.slane %v1189, %v1196
        %v1199 = vunpack.c.l.s4 1934713408
        %v1200 = vunpack.c.0.s8 %v1199
        %v1201 = vlaneseq
        %v1202 = vshrl.u32 %v1201, 7
        %v1203 = vsub.s32 %v1200, %v1202
        %v1204 = vrot.slane %v1190, %v1203
        %v1205 = vcombine.low %v1172, %v1188
        %v1206 = vcombine.high %v1172, %v1188
        %v1208 = vunpack.c.l.s4 1934713408
        %v1209 = vunpack.c.0.s8 %v1208
        %v1210 = vlaneseq
        %v1211 = vshrl.u32 %v1210, 7
        %v1212 = vsub.s32 %v1209, %v1211
        %v1213 = vrot.slane %v1205, %v1212
        %v1215 = vunpack.c.l.s4 1934713408
        %v1216 = vunpack.c.0.s8 %v1215
        %v1217 = vlaneseq
        %v1218 = vshrl.u32 %v1217, 7
        %v1219 = vsub.s32 %v1216, %v1218
        %v1220 = vrot.slane %v1206, %v1219
        %v1221 = vcombine.high %v1197, 0.0
        %v1222 = vcombine.high %v1204, 0.0
        %v1223 = vcombine.high %v1213, 0.0
        %v1224 = vcombine.high %v1220, 0.0
        %v1225 = vcombine.low %v1136, %v1144
        %v1226 = vcombine.high %v1136, %v1144
        %v1228 = vunpack.c.l.s4 1983009808
        %v1229 = vunpack.c.0.s8 %v1228
        %v1230 = vlaneseq
        %v1231 = vshrl.u32 %v1230, 7
        %v1232 = vsub.s32 %v1229, %v1231
        %v1233 = vrot.slane %v1225, %v1232
        %v1235 = vunpack.c.l.s4 1983009808
        %v1236 = vunpack.c.0.s8 %v1235
        %v1237 = vlaneseq
        %v1238 = vshrl.u32 %v1237, 7
        %v1239 = vsub.s32 %v1236, %v1238
        %v1240 = vrot.slane %v1226, %v1239
        %v1241 = vcombine.low %v1140, %v1148
        %v1242 = vcombine.high %v1140, %v1148
        %v1244 = vunpack.c.l.s4 1983009808
        %v1245 = vunpack.c.0.s8 %v1244
        %v1246 = vlaneseq
        %v1247 = vshrl.u32 %v1246, 7
        %v1248 = vsub.s32 %v1245, %v1247
        %v1249 = vrot.slane %v1241, %v1248
        %v1251 = vunpack.c.l.s4 1983009808
        %v1252 = vunpack.c.0.s8 %v1251
        %v1253 = vlaneseq
        %v1254 = vshrl.u32 %v1253, 7
        %v1255 = vsub.s32 %v1252, %v1254
        %v1256 = vrot.slane %v1242, %v1255
        %v1257 = vcombine.low %v1233, %v1249
        %v1258 = vcombine.high %v1233, %v1249
        %v1260 = vunpack.c.l.s4 1934713408
        %v1261 = vunpack.c.0.s8 %v1260
        %v1262 = vlaneseq
        %v1263 = vshrl.u32 %v1262, 7
        %v1264 = vsub.s32 %v1261, %v1263
        %v1265 = vrot.slane %v1257, %v1264
        %v1267 = vunpack.c.l.s4 1934713408
        %v1268 = vunpack.c.0.s8 %v1267
        %v1269 = vlaneseq
        %v1270 = vshrl.u32 %v1269, 7
        %v1271 = vsub.s32 %v1268, %v1270
        %v1272 = vrot.slane %v1258, %v1271
        %v1273 = vcombine.low %v1240, %v1256
        %v1274 = vcombine.high %v1240, %v1256
        %v1276 = vunpack.c.l.s4 1934713408
        %v1277 = vunpack.c.0.s8 %v1276
        %v1278 = vlaneseq
        %v1279 = vshrl.u32 %v1278, 7
        %v1280 = vsub.s32 %v1277, %v1279
        %v1281 = vrot.slane %v1273, %v1280
        %v1283 = vunpack.c.l.s4 1934713408
        %v1284 = vunpack.c.0.s8 %v1283
        %v1285 = vlaneseq
        %v1286 = vshrl.u32 %v1285, 7
        %v1287 = vsub.s32 %v1284, %v1286
        %v1288 = vrot.slane %v1274, %v1287
        %v1289 = vcombine.high %v1265, 0.0
        %v1290 = vcombine.high %v1272, 0.0
        %v1291 = vcombine.high %v1281, 0.0
        %v1292 = vcombine.high %v1288, 0.0
        %v1293 = vcombine.low %v1197, %v1204
        %v1295 = vunpack.c.l.s4 1983009808
        %v1296 = vunpack.c.0.s8 %v1295
        %v1297 = vlaneseq
        %v1298 = vshrl.u32 %v1297, 7
        %v1299 = vsub.s32 %v1296, %v1298
        %v1300 = vrot.slane %v1293, %v1299
        %v1301 = vcombine.low %v1221, %v1222
        %v1303 = vunpack.c.l.s4 1983009808
        %v1304 = vunpack.c.0.s8 %v1303
        %v1305 = vlaneseq
        %v1306 = vshrl.u32 %v1305, 7
        %v1307 = vsub.s32 %v1304, %v1306
        %v1308 = vrot.slane %v1301, %v1307
        %v1309 = vcombine.low %v1213, %v1220
        %v1311 = vunpack.c.l.s4 1983009808
        %v1312 = vunpack.c.0.s8 %v1311
        %v1313 = vlaneseq
        %v1314 = vshrl.u32 %v1313, 7
        %v1315 = vsub.s32 %v1312, %v1314
        %v1316 = vrot.slane %v1309, %v1315
        %v1317 = vcombine.low %v1223, %v1224
        %v1319 = vunpack.c.l.s4 1983009808
        %v1320 = vunpack.c.0.s8 %v1319
        %v1321 = vlaneseq
        %v1322 = vshrl.u32 %v1321, 7
        %v1323 = vsub.s32 %v1320, %v1322
        %v1324 = vrot.slane %v1317, %v1323
        %v1325 = vcombine.low %v1300, %v1308
        %v1326 = vcombine.high %v1300, %v1308
        %v1328 = vunpack.c.l.s4 1934713408
        %v1329 = vunpack.c.0.s8 %v1328
        %v1330 = vlaneseq
        %v1331 = vshrl.u32 %v1330, 7
        %v1332 = vsub.s32 %v1329, %v1331
        %v1333 = vrot.slane %v1325, %v1332
        %v1335 = vunpack.c.l.s4 1934713408
        %v1336 = vunpack.c.0.s8 %v1335
        %v1337 = vlaneseq
        %v1338 = vshrl.u32 %v1337, 7
        %v1339 = vsub.s32 %v1336, %v1338
        %v1340 = vrot.slane %v1326, %v1339
        %v1341 = vcombine.low %v1316, %v1324
        %v1342 = vcombine.high %v1316, %v1324
        %v1344 = vunpack.c.l.s4 1934713408
        %v1345 = vunpack.c.0.s8 %v1344
        %v1346 = vlaneseq
        %v1347 = vshrl.u32 %v1346, 7
        %v1348 = vsub.s32 %v1345, %v1347
        %v1349 = vrot.slane %v1341, %v1348
        %v1351 = vunpack.c.l.s4 1934713408
        %v1352 = vunpack.c.0.s8 %v1351
        %v1353 = vlaneseq
        %v1354 = vshrl.u32 %v1353, 7
        %v1355 = vsub.s32 %v1352, %v1354
        %v1356 = vrot.slane %v1342, %v1355
        %v1357 = vcombine.low %v1333, %v1349
        %v1358 = vcombine.high %v1333, %v1349
        %v1359 = vcombine.low %v1340, %v1356
        %v1360 = vcombine.high %v1340, %v1356
        %v1361 = vcombine.low %v1265, %v1272
        %v1363 = vunpack.c.l.s4 1983009808
        %v1364 = vunpack.c.0.s8 %v1363
        %v1365 = vlaneseq
        %v1366 = vshrl.u32 %v1365, 7
        %v1367 = vsub.s32 %v1364, %v1366
        %v1368 = vrot.slane %v1361, %v1367
        %v1369 = vcombine.low %v1289, %v1290
        %v1371 = vunpack.c.l.s4 1983009808
        %v1372 = vunpack.c.0.s8 %v1371
        %v1373 = vlaneseq
        %v1374 = vshrl.u32 %v1373, 7
        %v1375 = vsub.s32 %v1372, %v1374
        %v1376 = vrot.slane %v1369, %v1375
        %v1377 = vcombine.low %v1281, %v1288
        %v1379 = vunpack.c.l.s4 1983009808
        %v1380 = vunpack.c.0.s8 %v1379
        %v1381 = vlaneseq
        %v1382 = vshrl.u32 %v1381, 7
        %v1383 = vsub.s32 %v1380, %v1382
        %v1384 = vrot.slane %v1377, %v1383
        %v1385 = vcombine.low %v1291, %v1292
        %v1387 = vunpack.c.l.s4 1983009808
        %v1388 = vunpack.c.0.s8 %v1387
        %v1389 = vlaneseq
        %v1390 = vshrl.u32 %v1389, 7
        %v1391 = vsub.s32 %v1388, %v1390
        %v1392 = vrot.slane %v1385, %v1391
        %v1393 = vcombine.low %v1368, %v1376
        %v1394 = vcombine.high %v1368, %v1376
        %v1396 = vunpack.c.l.s4 1934713408
        %v1397 = vunpack.c.0.s8 %v1396
        %v1398 = vlaneseq
        %v1399 = vshrl.u32 %v1398, 7
        %v1400 = vsub.s32 %v1397, %v1399
        %v1401 = vrot.slane %v1393, %v1400
        %v1403 = vunpack.c.l.s4 1934713408
        %v1404 = vunpack.c.0.s8 %v1403
        %v1405 = vlaneseq
        %v1406 = vshrl.u32 %v1405, 7
        %v1407 = vsub.s32 %v1404, %v1406
        %v1408 = vrot.slane %v1394, %v1407
        %v1409 = vcombine.low %v1384, %v1392
        %v1410 = vcombine.high %v1384, %v1392
        %v1412 = vunpack.c.l.s4 1934713408
        %v1413 = vunpack.c.0.s8 %v1412
        %v1414 = vlaneseq
        %v1415 = vshrl.u32 %v1414, 7
        %v1416 = vsub.s32 %v1413, %v1415
        %v1417 = vrot.slane %v1409, %v1416
        %v1419 = vunpack.c.l.s4 1934713408
        %v1420 = vunpack.c.0.s8 %v1419
        %v1421 = vlaneseq
        %v1422 = vshrl.u32 %v1421, 7
        %v1423 = vsub.s32 %v1420, %v1422
        %v1424 = vrot.slane %v1410, %v1423
        %v1425 = vcombine.low %v1401, %v1417
        %v1426 = vcombine.high %v1401, %v1417
        %v1427 = vcombine.low %v1408, %v1424
        %v1428 = vcombine.high %v1408, %v1424
        %v1429 = vpack.c.bf16 %v1425, %v1357
        %v1430 = vpack.c.bf16 %v1426, %v1358
        %v1431 = vpack.c.bf16 %v1427, %v1359
        %v1432 = vpack.c.bf16 %v1428, %v1360
        %v1437 = vunpack.c.l.b16 %v1429
        %v1438 = vunpack.c.h.b16 %v1429
        %v1439 = vunpack.c.l.b16 %v1430
        %v1440 = vunpack.c.h.b16 %v1430
        %v1441 = vunpack.c.l.b16 %v1431
        %v1442 = vunpack.c.h.b16 %v1431
        %v1443 = vunpack.c.l.b16 %v1432
        %v1444 = vunpack.c.h.b16 %v1432
        %v1445 = vpack.c.b16 %v1437, %v1437
        %v1446 = vpack.c.b16 %v1438, %v1438
        %v1447 = vpack.c.b16 %v1439, %v1439
        %v1448 = vpack.c.b16 %v1440, %v1440
        %v1449 = vpack.c.b16 %v1441, %v1441
        %v1450 = vpack.c.b16 %v1442, %v1442
        %v1451 = vpack.c.b16 %v1443, %v1443
        %v1452 = vpack.c.b16 %v1444, %v1444
        %1461 = vst.msk [vmem:[%s342] sm:$0xf] %vm788, %v1445
        %1462 = vst.msk [vmem:[%s342 + $0x4] sm:$0xf] %vm788, %v1446
        %1463 = vst.msk [vmem:[%s342 + $0x8] sm:$0xf] %vm788, %v1447
        %1464 = vst.msk [vmem:[%s342 + $0xc] sm:$0xf] %vm788, %v1448
        %1465 = vst.msk [vmem:[%s342 + $0x10] sm:$0xf] %vm788, %v1449
        %1466 = vst.msk [vmem:[%s342 + $0x14] sm:$0xf] %vm788, %v1450
        %1467 = vst.msk [vmem:[%s342 + $0x18] sm:$0xf] %vm788, %v1451
        %1468 = vst.msk [vmem:[%s342 + $0x1c] sm:$0xf] %vm788, %v1452
        %s1469 = sand.u32 %s157, 1
        %s1470 = sand.u32 %s157, 1
        %s1471 = smul.addr %s1470, 32
        %s1472 = scalar_lea.vmem [#allocation6], %s1471
        %s1473 = sand.u32 %s185, 1
        %s1474 = sand.u32 %s185, 1
        %s1475 = smul.addr %s1474, 32
        %s1476 = scalar_lea.vmem [#allocation7], %s1475
        %s1477 = sand.u32 %s213, 1
        %s1478 = sand.u32 %s213, 1
        %s1479 = smul.addr %s1478, 32
        %s1480 = scalar_lea.vmem [#allocation8], %s1479
        // Predicated region
        $region49: #{tpu_custom_call.1} parent=39 // pred_check
          %p1481 = pneg %p167
        $region50: #{tpu_custom_call.1} parent=39 // pred_check_branch
          %1483 = sbr.rel (%p1481) target = $region52
        $region51: #{tpu_custom_call.1} parent=39 // pred_region
          %s1484 = smul.u32 2, %s28
          %s1485 = smul.addr %s27, 16
          %s1486 = sadd.s32 %s1484, %s1485
          %s1487 = smul.addr %s1486, 4
          %s1488 = scalar_lea.vmem %s5, %s1487
          // Predicated region
          $region53: #{tpu_custom_call.1} parent=51 // pred_check
            _
          $region54: #{tpu_custom_call.1} parent=51 // pred_check_branch
            %1490 = sbr.rel (0) target = $region56
          $region55: #{tpu_custom_call.1} parent=51 // pred_region
            // Predicated region
            $region57: #{tpu_custom_call.1} parent=55 // pred_check
              _
            $region58: #{tpu_custom_call.1} parent=55 // pred_check_branch
              %1492 = sbr.rel target = $region60
            $region59: #{tpu_custom_call.1} parent=55 // pred_region
              // Predicated region
              $region72: #{tpu_custom_call.1} parent=59 // pred_check
                _
              $region73: #{tpu_custom_call.1} parent=59 // pred_check_branch
                %1521 = sbr.rel (0) target = $region75
              $region74: #{tpu_custom_call.1} parent=59 // pred_region
                loop: start=0, step=1, limit=1
                $region76: #{tpu_custom_call.1} parent=74 // loop_pre_header
                  _
                $region77: #{tpu_custom_call.1} parent=74 // loop_header
                  %s1523 = sphi 0, %s1527
                  %p1524 = scmp.ge.s32.totalorder %s1523, 1
                  %s1528 = sphi %s1472, %s1472
                  %s1529 = sphi %s1488, %s1488
                $region78: #{tpu_custom_call.1} parent=74 // loop_header_branch
                  %1526 = sbr.rel (%p1524) target = $region82
                $region79: #{tpu_custom_call.1} parent=74 // loop_body
                  _
                $region80: #{tpu_custom_call.1} parent=74 // loop_footer
                  %s1527 = sadd.s32 1, %s1523
                $region81: #{tpu_custom_call.1} parent=74 // loop_footer_branch
                  %1522 = sbr.rel target = $region77
                $region82: #{tpu_custom_call.1} parent=74 // loop_exit
                  _
                loop: start=0, step=1, limit=1
                $region83: #{tpu_custom_call.1} parent=74 // loop_pre_header
                  _
                $region84: #{tpu_custom_call.1} parent=74 // loop_header
                  %s1532 = sphi 0, %s1536
                  %p1533 = scmp.ge.s32.totalorder %s1532, 1
                  %s1537 = sphi %s1472, %s1472
                  %s1538 = sphi %s1488, %s1488
                $region85: #{tpu_custom_call.1} parent=74 // loop_header_branch
                  %1535 = sbr.rel (%p1533) target = $region89
                $region86: #{tpu_custom_call.1} parent=74 // loop_body
                  %v1539 = vld [vmem:[%s1537] sm:$0xf]
                  %1540 = vst [vmem:[%s1538] sm:$0xf] %v1539
                  %v1541 = vld [vmem:[%s1537 + $0x4] sm:$0xf]
                  %1542 = vst [vmem:[%s1538 + $0x4] sm:$0xf] %v1541
                  %v1543 = vld [vmem:[%s1537 + $0x8] sm:$0xf]
                  %1544 = vst [vmem:[%s1538 + $0x10] sm:$0xf] %v1543
                  %v1545 = vld [vmem:[%s1537 + $0xc] sm:$0xf]
                  %1546 = vst [vmem:[%s1538 + $0x14] sm:$0xf] %v1545
                  %v1547 = vld [vmem:[%s1537 + $0x10] sm:$0xf]
                  %1548 = vst [vmem:[%s1538 + $0x20] sm:$0xf] %v1547
                  %v1549 = vld [vmem:[%s1537 + $0x14] sm:$0xf]
                  %1550 = vst [vmem:[%s1538 + $0x24] sm:$0xf] %v1549
                  %v1551 = vld [vmem:[%s1537 + $0x18] sm:$0xf]
                  %1552 = vst [vmem:[%s1538 + $0x30] sm:$0xf] %v1551
                  %v1553 = vld [vmem:[%s1537 + $0x1c] sm:$0xf]
                  %1554 = vst [vmem:[%s1538 + $0x34] sm:$0xf] %v1553
                $region87: #{tpu_custom_call.1} parent=74 // loop_footer
                  %s1536 = sadd.s32 1, %s1532
                $region88: #{tpu_custom_call.1} parent=74 // loop_footer_branch
                  %1531 = sbr.rel target = $region84
                $region89: #{tpu_custom_call.1} parent=74 // loop_exit
                  _
              $region75: #{tpu_custom_call.1} parent=59 // pred_fallthru
                _
            $region60: #{tpu_custom_call.1} parent=55 // pred_fallthru
              _
            // Predicated region
            $region61: #{tpu_custom_call.1} parent=55 // pred_check
              _
            $region62: #{tpu_custom_call.1} parent=55 // pred_check_branch
              %1494 = sbr.rel (0) target = $region64
            $region63: #{tpu_custom_call.1} parent=55 // pred_region
              loop: start=0, step=1, limit=1
              $region65: #{tpu_custom_call.1} parent=63 // loop_pre_header
                _
              $region66: #{tpu_custom_call.1} parent=63 // loop_header
                %s1497 = sphi 0, %s1501
                %p1498 = scmp.ge.s32.totalorder %s1497, 1
                %s1502 = sphi %s1472, %s1472
                %s1503 = sphi %s1488, %s1488
              $region67: #{tpu_custom_call.1} parent=63 // loop_header_branch
                %1500 = sbr.rel (%p1498) target = $region71
              $region68: #{tpu_custom_call.1} parent=63 // loop_body
                %v1504 = vld [vmem:[%s1502] sm:$0xf]
                %1505 = vst [vmem:[%s1503] sm:$0xf] %v1504
                %v1506 = vld [vmem:[%s1502 + $0x4] sm:$0xf]
                %1507 = vst [vmem:[%s1503 + $0x4] sm:$0xf] %v1506
                %v1508 = vld [vmem:[%s1502 + $0x8] sm:$0xf]
                %1509 = vst [vmem:[%s1503 + $0x10] sm:$0xf] %v1508
                %v1510 = vld [vmem:[%s1502 + $0xc] sm:$0xf]
                %1511 = vst [vmem:[%s1503 + $0x14] sm:$0xf] %v1510
                %v1512 = vld [vmem:[%s1502 + $0x10] sm:$0xf]
                %1513 = vst [vmem:[%s1503 + $0x20] sm:$0xf] %v1512
                %v1514 = vld [vmem:[%s1502 + $0x14] sm:$0xf]
                %1515 = vst [vmem:[%s1503 + $0x24] sm:$0xf] %v1514
                %v1516 = vld [vmem:[%s1502 + $0x18] sm:$0xf]
                %1517 = vst [vmem:[%s1503 + $0x30] sm:$0xf] %v1516
                %v1518 = vld [vmem:[%s1502 + $0x1c] sm:$0xf]
                %1519 = vst [vmem:[%s1503 + $0x34] sm:$0xf] %v1518
              $region69: #{tpu_custom_call.1} parent=63 // loop_footer
                %s1501 = sadd.s32 1, %s1497
              $region70: #{tpu_custom_call.1} parent=63 // loop_footer_branch
                %1496 = sbr.rel target = $region66
              $region71: #{tpu_custom_call.1} parent=63 // loop_exit
                _
            $region64: #{tpu_custom_call.1} parent=55 // pred_fallthru
              _
          $region56: #{tpu_custom_call.1} parent=51 // pred_fallthru
            _
          %1555 = vnop
        $region52: #{tpu_custom_call.1} parent=39 // pred_fallthru
          _
        // Predicated region
        $region90: #{tpu_custom_call.1} parent=39 // pred_check
          %p1556 = pneg %p195
        $region91: #{tpu_custom_call.1} parent=39 // pred_check_branch
          %1558 = sbr.rel (%p1556) target = $region93
        $region92: #{tpu_custom_call.1} parent=39 // pred_region
          %s1559 = smul.u32 2, %s28
          %s1560 = smul.addr %s27, 16
          %s1561 = sadd.s32 %s1559, %s1560
          %s1562 = smul.addr %s1561, 4
          %s1563 = scalar_lea.vmem %s6, %s1562
          // Predicated region
          $region94: #{tpu_custom_call.1} parent=92 // pred_check
            _
          $region95: #{tpu_custom_call.1} parent=92 // pred_check_branch
            %1565 = sbr.rel (0) target = $region97
          $region96: #{tpu_custom_call.1} parent=92 // pred_region
            // Predicated region
            $region98: #{tpu_custom_call.1} parent=96 // pred_check
              _
            $region99: #{tpu_custom_call.1} parent=96 // pred_check_branch
              %1567 = sbr.rel target = $region101
            $region100: #{tpu_custom_call.1} parent=96 // pred_region
              // Predicated region
              $region113: #{tpu_custom_call.1} parent=100 // pred_check
                _
              $region114: #{tpu_custom_call.1} parent=100 // pred_check_branch
                %1596 = sbr.rel (0) target = $region116
              $region115: #{tpu_custom_call.1} parent=100 // pred_region
                loop: start=0, step=1, limit=1
                $region117: #{tpu_custom_call.1} parent=115 // loop_pre_header
                  _
                $region118: #{tpu_custom_call.1} parent=115 // loop_header
                  %s1598 = sphi 0, %s1602
                  %p1599 = scmp.ge.s32.totalorder %s1598, 1
                  %s1603 = sphi %s1476, %s1476
                  %s1604 = sphi %s1563, %s1563
                $region119: #{tpu_custom_call.1} parent=115 // loop_header_branch
                  %1601 = sbr.rel (%p1599) target = $region123
                $region120: #{tpu_custom_call.1} parent=115 // loop_body
                  _
                $region121: #{tpu_custom_call.1} parent=115 // loop_footer
                  %s1602 = sadd.s32 1, %s1598
                $region122: #{tpu_custom_call.1} parent=115 // loop_footer_branch
                  %1597 = sbr.rel target = $region118
                $region123: #{tpu_custom_call.1} parent=115 // loop_exit
                  _
                loop: start=0, step=1, limit=1
                $region124: #{tpu_custom_call.1} parent=115 // loop_pre_header
                  _
                $region125: #{tpu_custom_call.1} parent=115 // loop_header
                  %s1607 = sphi 0, %s1611
                  %p1608 = scmp.ge.s32.totalorder %s1607, 1
                  %s1612 = sphi %s1476, %s1476
                  %s1613 = sphi %s1563, %s1563
                $region126: #{tpu_custom_call.1} parent=115 // loop_header_branch
                  %1610 = sbr.rel (%p1608) target = $region130
                $region127: #{tpu_custom_call.1} parent=115 // loop_body
                  %v1614 = vld [vmem:[%s1612] sm:$0xf]
                  %1615 = vst [vmem:[%s1613] sm:$0xf] %v1614
                  %v1616 = vld [vmem:[%s1612 + $0x4] sm:$0xf]
                  %1617 = vst [vmem:[%s1613 + $0x4] sm:$0xf] %v1616
                  %v1618 = vld [vmem:[%s1612 + $0x8] sm:$0xf]
                  %1619 = vst [vmem:[%s1613 + $0x10] sm:$0xf] %v1618
                  %v1620 = vld [vmem:[%s1612 + $0xc] sm:$0xf]
                  %1621 = vst [vmem:[%s1613 + $0x14] sm:$0xf] %v1620
                  %v1622 = vld [vmem:[%s1612 + $0x10] sm:$0xf]
                  %1623 = vst [vmem:[%s1613 + $0x20] sm:$0xf] %v1622
                  %v1624 = vld [vmem:[%s1612 + $0x14] sm:$0xf]
                  %1625 = vst [vmem:[%s1613 + $0x24] sm:$0xf] %v1624
                  %v1626 = vld [vmem:[%s1612 + $0x18] sm:$0xf]
                  %1627 = vst [vmem:[%s1613 + $0x30] sm:$0xf] %v1626
                  %v1628 = vld [vmem:[%s1612 + $0x1c] sm:$0xf]
                  %1629 = vst [vmem:[%s1613 + $0x34] sm:$0xf] %v1628
                $region128: #{tpu_custom_call.1} parent=115 // loop_footer
                  %s1611 = sadd.s32 1, %s1607
                $region129: #{tpu_custom_call.1} parent=115 // loop_footer_branch
                  %1606 = sbr.rel target = $region125
                $region130: #{tpu_custom_call.1} parent=115 // loop_exit
                  _
              $region116: #{tpu_custom_call.1} parent=100 // pred_fallthru
                _
            $region101: #{tpu_custom_call.1} parent=96 // pred_fallthru
              _
            // Predicated region
            $region102: #{tpu_custom_call.1} parent=96 // pred_check
              _
            $region103: #{tpu_custom_call.1} parent=96 // pred_check_branch
              %1569 = sbr.rel (0) target = $region105
            $region104: #{tpu_custom_call.1} parent=96 // pred_region
              loop: start=0, step=1, limit=1
              $region106: #{tpu_custom_call.1} parent=104 // loop_pre_header
                _
              $region107: #{tpu_custom_call.1} parent=104 // loop_header
                %s1572 = sphi 0, %s1576
                %p1573 = scmp.ge.s32.totalorder %s1572, 1
                %s1577 = sphi %s1476, %s1476
                %s1578 = sphi %s1563, %s1563
              $region108: #{tpu_custom_call.1} parent=104 // loop_header_branch
                %1575 = sbr.rel (%p1573) target = $region112
              $region109: #{tpu_custom_call.1} parent=104 // loop_body
                %v1579 = vld [vmem:[%s1577] sm:$0xf]
                %1580 = vst [vmem:[%s1578] sm:$0xf] %v1579
                %v1581 = vld [vmem:[%s1577 + $0x4] sm:$0xf]
                %1582 = vst [vmem:[%s1578 + $0x4] sm:$0xf] %v1581
                %v1583 = vld [vmem:[%s1577 + $0x8] sm:$0xf]
                %1584 = vst [vmem:[%s1578 + $0x10] sm:$0xf] %v1583
                %v1585 = vld [vmem:[%s1577 + $0xc] sm:$0xf]
                %1586 = vst [vmem:[%s1578 + $0x14] sm:$0xf] %v1585
                %v1587 = vld [vmem:[%s1577 + $0x10] sm:$0xf]
                %1588 = vst [vmem:[%s1578 + $0x20] sm:$0xf] %v1587
                %v1589 = vld [vmem:[%s1577 + $0x14] sm:$0xf]
                %1590 = vst [vmem:[%s1578 + $0x24] sm:$0xf] %v1589
                %v1591 = vld [vmem:[%s1577 + $0x18] sm:$0xf]
                %1592 = vst [vmem:[%s1578 + $0x30] sm:$0xf] %v1591
                %v1593 = vld [vmem:[%s1577 + $0x1c] sm:$0xf]
                %1594 = vst [vmem:[%s1578 + $0x34] sm:$0xf] %v1593
              $region110: #{tpu_custom_call.1} parent=104 // loop_footer
                %s1576 = sadd.s32 1, %s1572
              $region111: #{tpu_custom_call.1} parent=104 // loop_footer_branch
                %1571 = sbr.rel target = $region107
              $region112: #{tpu_custom_call.1} parent=104 // loop_exit
                _
            $region105: #{tpu_custom_call.1} parent=96 // pred_fallthru
              _
          $region97: #{tpu_custom_call.1} parent=92 // pred_fallthru
            _
          %1630 = vnop
        $region93: #{tpu_custom_call.1} parent=39 // pred_fallthru
          _
        // Predicated region
        $region131: #{tpu_custom_call.1} parent=39 // pred_check
          %p1631 = pneg %p223
        $region132: #{tpu_custom_call.1} parent=39 // pred_check_branch
          %1633 = sbr.rel (%p1631) target = $region134
        $region133: #{tpu_custom_call.1} parent=39 // pred_region
          %s1634 = smul.u32 2, %s28
          %s1635 = smul.addr %s27, 16
          %s1636 = sadd.s32 %s1634, %s1635
          %s1637 = smul.addr %s1636, 4
          %s1638 = scalar_lea.vmem %s7, %s1637
          // Predicated region
          $region135: #{tpu_custom_call.1} parent=133 // pred_check
            _
          $region136: #{tpu_custom_call.1} parent=133 // pred_check_branch
            %1640 = sbr.rel (0) target = $region138
          $region137: #{tpu_custom_call.1} parent=133 // pred_region
            // Predicated region
            $region139: #{tpu_custom_call.1} parent=137 // pred_check
              _
            $region140: #{tpu_custom_call.1} parent=137 // pred_check_branch
              %1642 = sbr.rel target = $region142
            $region141: #{tpu_custom_call.1} parent=137 // pred_region
              // Predicated region
              $region154: #{tpu_custom_call.1} parent=141 // pred_check
                _
              $region155: #{tpu_custom_call.1} parent=141 // pred_check_branch
                %1671 = sbr.rel (0) target = $region157
              $region156: #{tpu_custom_call.1} parent=141 // pred_region
                loop: start=0, step=1, limit=1
                $region158: #{tpu_custom_call.1} parent=156 // loop_pre_header
                  _
                $region159: #{tpu_custom_call.1} parent=156 // loop_header
                  %s1673 = sphi 0, %s1677
                  %p1674 = scmp.ge.s32.totalorder %s1673, 1
                  %s1678 = sphi %s1480, %s1480
                  %s1679 = sphi %s1638, %s1638
                $region160: #{tpu_custom_call.1} parent=156 // loop_header_branch
                  %1676 = sbr.rel (%p1674) target = $region164
                $region161: #{tpu_custom_call.1} parent=156 // loop_body
                  _
                $region162: #{tpu_custom_call.1} parent=156 // loop_footer
                  %s1677 = sadd.s32 1, %s1673
                $region163: #{tpu_custom_call.1} parent=156 // loop_footer_branch
                  %1672 = sbr.rel target = $region159
                $region164: #{tpu_custom_call.1} parent=156 // loop_exit
                  _
                loop: start=0, step=1, limit=1
                $region165: #{tpu_custom_call.1} parent=156 // loop_pre_header
                  _
                $region166: #{tpu_custom_call.1} parent=156 // loop_header
                  %s1682 = sphi 0, %s1686
                  %p1683 = scmp.ge.s32.totalorder %s1682, 1
                  %s1687 = sphi %s1480, %s1480
                  %s1688 = sphi %s1638, %s1638
                $region167: #{tpu_custom_call.1} parent=156 // loop_header_branch
                  %1685 = sbr.rel (%p1683) target = $region171
                $region168: #{tpu_custom_call.1} parent=156 // loop_body
                  %v1689 = vld [vmem:[%s1687] sm:$0xf]
                  %1690 = vst [vmem:[%s1688] sm:$0xf] %v1689
                  %v1691 = vld [vmem:[%s1687 + $0x4] sm:$0xf]
                  %1692 = vst [vmem:[%s1688 + $0x4] sm:$0xf] %v1691
                  %v1693 = vld [vmem:[%s1687 + $0x8] sm:$0xf]
                  %1694 = vst [vmem:[%s1688 + $0x10] sm:$0xf] %v1693
                  %v1695 = vld [vmem:[%s1687 + $0xc] sm:$0xf]
                  %1696 = vst [vmem:[%s1688 + $0x14] sm:$0xf] %v1695
                  %v1697 = vld [vmem:[%s1687 + $0x10] sm:$0xf]
                  %1698 = vst [vmem:[%s1688 + $0x20] sm:$0xf] %v1697
                  %v1699 = vld [vmem:[%s1687 + $0x14] sm:$0xf]
                  %1700 = vst [vmem:[%s1688 + $0x24] sm:$0xf] %v1699
                  %v1701 = vld [vmem:[%s1687 + $0x18] sm:$0xf]
                  %1702 = vst [vmem:[%s1688 + $0x30] sm:$0xf] %v1701
                  %v1703 = vld [vmem:[%s1687 + $0x1c] sm:$0xf]
                  %1704 = vst [vmem:[%s1688 + $0x34] sm:$0xf] %v1703
                $region169: #{tpu_custom_call.1} parent=156 // loop_footer
                  %s1686 = sadd.s32 1, %s1682
                $region170: #{tpu_custom_call.1} parent=156 // loop_footer_branch
                  %1681 = sbr.rel target = $region166
                $region171: #{tpu_custom_call.1} parent=156 // loop_exit
                  _
              $region157: #{tpu_custom_call.1} parent=141 // pred_fallthru
                _
            $region142: #{tpu_custom_call.1} parent=137 // pred_fallthru
              _
            // Predicated region
            $region143: #{tpu_custom_call.1} parent=137 // pred_check
              _
            $region144: #{tpu_custom_call.1} parent=137 // pred_check_branch
              %1644 = sbr.rel (0) target = $region146
            $region145: #{tpu_custom_call.1} parent=137 // pred_region
              loop: start=0, step=1, limit=1
              $region147: #{tpu_custom_call.1} parent=145 // loop_pre_header
                _
              $region148: #{tpu_custom_call.1} parent=145 // loop_header
                %s1647 = sphi 0, %s1651
                %p1648 = scmp.ge.s32.totalorder %s1647, 1
                %s1652 = sphi %s1480, %s1480
                %s1653 = sphi %s1638, %s1638
              $region149: #{tpu_custom_call.1} parent=145 // loop_header_branch
                %1650 = sbr.rel (%p1648) target = $region153
              $region150: #{tpu_custom_call.1} parent=145 // loop_body
                %v1654 = vld [vmem:[%s1652] sm:$0xf]
                %1655 = vst [vmem:[%s1653] sm:$0xf] %v1654
                %v1656 = vld [vmem:[%s1652 + $0x4] sm:$0xf]
                %1657 = vst [vmem:[%s1653 + $0x4] sm:$0xf] %v1656
                %v1658 = vld [vmem:[%s1652 + $0x8] sm:$0xf]
                %1659 = vst [vmem:[%s1653 + $0x10] sm:$0xf] %v1658
                %v1660 = vld [vmem:[%s1652 + $0xc] sm:$0xf]
                %1661 = vst [vmem:[%s1653 + $0x14] sm:$0xf] %v1660
                %v1662 = vld [vmem:[%s1652 + $0x10] sm:$0xf]
                %1663 = vst [vmem:[%s1653 + $0x20] sm:$0xf] %v1662
                %v1664 = vld [vmem:[%s1652 + $0x14] sm:$0xf]
                %1665 = vst [vmem:[%s1653 + $0x24] sm:$0xf] %v1664
                %v1666 = vld [vmem:[%s1652 + $0x18] sm:$0xf]
                %1667 = vst [vmem:[%s1653 + $0x30] sm:$0xf] %v1666
                %v1668 = vld [vmem:[%s1652 + $0x1c] sm:$0xf]
                %1669 = vst [vmem:[%s1653 + $0x34] sm:$0xf] %v1668
              $region151: #{tpu_custom_call.1} parent=145 // loop_footer
                %s1651 = sadd.s32 1, %s1647
              $region152: #{tpu_custom_call.1} parent=145 // loop_footer_branch
                %1646 = sbr.rel target = $region148
              $region153: #{tpu_custom_call.1} parent=145 // loop_exit
                _
            $region146: #{tpu_custom_call.1} parent=137 // pred_fallthru
              _
          $region138: #{tpu_custom_call.1} parent=133 // pred_fallthru
            _
          %1705 = vnop
        $region134: #{tpu_custom_call.1} parent=39 // pred_fallthru
          _
      $region40: #{tpu_custom_call.1} parent=5 // pred_fallthru
        _
      %p1706 = scmp.le.s32.totalorder 2, %s18
      // Predicated region
      $region172: #{tpu_custom_call.1} parent=5 // pred_check
        %p1707 = pneg %p1706
      $region173: #{tpu_custom_call.1} parent=5 // pred_check_branch
        %1709 = sbr.rel (%p1707) target = $region175
      $region174: #{tpu_custom_call.1} parent=5 // pred_region
        %s1710 = ssub.s32 %s18, 2
        // Predicated region
        $region176: #{tpu_custom_call.1} parent=174 // pred_check
          %p1711 = pneg %p173
        $region177: #{tpu_custom_call.1} parent=174 // pred_check_branch
          %1713 = sbr.rel (%p1711) target = $region179
        $region178: #{tpu_custom_call.1} parent=174 // pred_region
          %s1714 = sand.u32 %s158, 1
          %s1715 = sand.u32 %s158, 1
          %s1716 = smul.addr %s1715, 32
          %s1717 = scalar_lea.vmem [#allocation6], %s1716
        $region179: #{tpu_custom_call.1} parent=174 // pred_fallthru
          _
        // Predicated region
        $region180: #{tpu_custom_call.1} parent=174 // pred_check
          %p1718 = pneg %p201
        $region181: #{tpu_custom_call.1} parent=174 // pred_check_branch
          %1720 = sbr.rel (%p1718) target = $region183
        $region182: #{tpu_custom_call.1} parent=174 // pred_region
          %s1721 = sand.u32 %s186, 1
          %s1722 = sand.u32 %s186, 1
          %s1723 = smul.addr %s1722, 32
          %s1724 = scalar_lea.vmem [#allocation7], %s1723
        $region183: #{tpu_custom_call.1} parent=174 // pred_fallthru
          _
        // Predicated region
        $region184: #{tpu_custom_call.1} parent=174 // pred_check
          %p1725 = pneg %p229
        $region185: #{tpu_custom_call.1} parent=174 // pred_check_branch
          %1727 = sbr.rel (%p1725) target = $region187
        $region186: #{tpu_custom_call.1} parent=174 // pred_region
          %s1728 = sand.u32 %s214, 1
          %s1729 = sand.u32 %s214, 1
          %s1730 = smul.addr %s1729, 32
          %s1731 = scalar_lea.vmem [#allocation8], %s1730
        $region187: #{tpu_custom_call.1} parent=174 // pred_fallthru
          _
      $region175: #{tpu_custom_call.1} parent=5 // pred_fallthru
        _
    $region6: #{tpu_custom_call.1} parent=1 // loop_footer
      %s22 = sadd.s32 1, %s18
    $region7: #{tpu_custom_call.1} parent=1 // loop_footer_branch
      %17 = sbr.rel target = $region3
    $region8: #{tpu_custom_call.1} parent=1 // loop_exit
      _
    %1732 = vsyncpa [#allocation3], 1
    %s1733 = scalar_lea.sflag [#allocation3], 1
    %1734 = vsyncpa %s1733, 1
    %1735 = vsyncpa [#allocation5], 1

// kernel: tpu_custom_call.1
$region0: #{tpu_custom_call.1}
  #allocation0 [shape = 'u32[]', space=smem, size = 0x4, offset = 0x4, fixed_abs, tag = 'smem constant byte address 0x4 - core index']
  #allocation1 [shape = 'u32[144,128]{1,0:T(1,128)}', space=vmem, size = 0x12000, scoped, tag = 'internal scratch']
  %s0 = inlined_call_operand.hbm [shape: f32[2,32,32], index: 0, kind: input, shape index: {}]
  %s1 = inlined_call_operand.vmem [shape: f32[1,32], index: 1, kind: input, shape index: {}]
  %s2 = inlined_call_operand.vmem [shape: f32[1,32], index: 2, kind: input, shape index: {}]
  %s3 = inlined_call_operand.hbm [shape: bf16[32,96], index: 3, kind: input, shape index: {}]
  %s4 = inlined_call_operand.vmem [shape: f32[1,96], index: 4, kind: input, shape index: {}]
  %s5 = inlined_call_operand.vmem [shape: bf16[2,4,32,8], index: 5, kind: output, shape index: {0}]
  %s6 = inlined_call_operand.vmem [shape: bf16[2,4,32,8], index: 6, kind: output, shape index: {1}]
  %s7 = inlined_call_operand.vmem [shape: bf16[2,4,32,8], index: 7, kind: output, shape index: {2}]
  %8 = xla_tuple %s5, %s6, %s7
  %s9 = sld [smem:[#allocation0]]
  $region188: #{tpu_custom_call.1} parent=0
    _
  %s11 = ssub.s32 1, %s9
  %s12 = scalar_select 0, %s11, %s9
  $region1: #{tpu_custom_call.1} parent=0
    #allocation2 [shape = 'u8[16384]{0}', space=vmem, size = 0x4000, scoped, tag = 'input window, operand 0']
    #allocation3 [shape = 's32[2]{0}', space=sflag, size = 0x8, scoped, tag = 'scoped memory for tpu_custom_call.1']
    #allocation4 [shape = 'u8[8192]{0}', space=vmem, size = 0x2000, scoped, tag = 'input window, operand 3, single buffered']
    #allocation5 [shape = 's32[1]{0}', space=sflag, size = 0x4, scoped, tag = 'scoped memory for tpu_custom_call.1']
    #allocation6 [shape = 'u8[32768]{0}', space=vmem, size = 0x8000, scoped, tag = 'output window, operand 0']
    #allocation7 [shape = 'u8[32768]{0}', space=vmem, size = 0x8000, scoped, tag = 'output window, operand 1']
    #allocation8 [shape = 'u8[32768]{0}', space=vmem, size = 0x8000, scoped, tag = 'output window, operand 2']
    %13 = vsyncpa [#allocation3], 0
    %s14 = scalar_lea.sflag [#allocation3], 1
    %15 = vsyncpa %s14, 0
    %16 = vsyncpa [#allocation5], 0
    loop: start=0, step=1, limit=6
    $region2: #{tpu_custom_call.1} parent=1 // loop_pre_header
      _
    $region3: #{tpu_custom_call.1} parent=1 // loop_header
      %s18 = sphi 0, %s22
      %p19 = scmp.ge.s32.totalorder %s18, 6
      %s25 = sphi 0, %s37
      %s26 = sphi 0, %s33
      %s27 = sphi 0, %s25
      %s28 = sphi 0, %s26
      %s29 = sphi 0, %s27
      %s30 = sphi 0, %s28
      %s42 = sphi 0, %s44
      %s45 = sphi 0, %s42
      %s46 = sphi 0, %s45
      %s62 = sphi 0, %s46
      %s66 = sphi 0, %s66
      %s68 = sphi 0, %s66
      %s69 = sphi 0, %s68
      %s83 = sphi 0, %s69
      %s87 = sphi 0, %s87
      %s89 = sphi 0, %s87
      %s90 = sphi 0, %s89
      %s104 = sphi 0, %s90
      %s108 = sphi 0, %s108
      %s110 = sphi 0, %s108
      %s111 = sphi 0, %s110
      %s125 = sphi 0, %s111
      %s129 = sphi 0, %s129
      %s131 = sphi 0, %s129
      %s132 = sphi 0, %s131
      %s146 = sphi 0, %s132
      %s154 = sphi 0, %s156
      %s157 = sphi 0, %s154
      %s158 = sphi 0, %s157
      %s174 = sphi 0, %s158
      %s182 = sphi 0, %s184
      %s185 = sphi 0, %s182
      %s186 = sphi 0, %s185
      %s202 = sphi 0, %s186
      %s210 = sphi 0, %s212
      %s213 = sphi 0, %s210
      %s214 = sphi 0, %s213
      %s230 = sphi 0, %s214
    $region4: #{tpu_custom_call.1} parent=1 // loop_header_branch
      %21 = sbr.rel (%p19) target = $region8
    $region5: #{tpu_custom_call.1} parent=1 // loop_body
      %s23 = ssub.s32 %s18, 1
      %s24 = ssub.s32 %s18, 2
      %s31 = sadd.s32 1, %s26
      %p32 = scmp.ge.s32.totalorder %s31, 2
      %s33 = scalar_select %p32, 0, %s31
      %s34 = sadd.s32 1, %s25
      %s35 = scalar_select %p32, %s34, %s25
      %p36 = scmp.ge.s32.totalorder %s35, 2
      %s37 = scalar_select %p36, 0, %s35
      %s38 = ssub.s32 %s25, %s37
      %s39 = ssub.s32 %s26, %s33
      %s40 = sor.u32 %s38, %s39
      %p41 = scmp.eq.s32.totalorder %s40, 0
      %s43 = sadd.s32 %s42, 1
      %s44 = scalar_select %p41, %s42, %s43
      %p47 = pneg %p41
      %p48 = scmp.eq.s32.totalorder %s18, 3
      %p49 = por %p47, %p48
      %p50 = scmp.ne.s32.totalorder %s42, %s45
      %p51 = scmp.eq.s32.totalorder %s18, 0
      %p52 = por %p50, %p51
      %p53 = scmp.ne.s32.totalorder %s42, %s45
      %p54 = scmp.eq.s32.totalorder %s23, 3
      %p55 = por %p53, %p54
      %p56 = scmp.ne.s32.totalorder %s45, %s46
      %p57 = scmp.eq.s32.totalorder %s23, 0
      %p58 = por %p56, %p57
      %p59 = scmp.ne.s32.totalorder %s45, %s46
      %p60 = scmp.eq.s32.totalorder %s24, 3
      %p61 = por %p59, %p60
      %p63 = scmp.ne.s32.totalorder %s46, %s62
      %p64 = scmp.eq.s32.totalorder %s24, 0
      %p65 = por %p63, %p64
      %s67 = sadd.s32 %s66, 1
      %p70 = scmp.eq.s32.totalorder %s18, 3
      %p71 = scmp.ne.s32.totalorder %s66, %s68
      %p72 = scmp.eq.s32.totalorder %s18, 0
      %p73 = por %p71, %p72
      %p74 = scmp.ne.s32.totalorder %s66, %s68
      %p75 = scmp.eq.s32.totalorder %s23, 3
      %p76 = por %p74, %p75
      %p77 = scmp.ne.s32.totalorder %s68, %s69
      %p78 = scmp.eq.s32.totalorder %s23, 0
      %p79 = por %p77, %p78
      %p80 = scmp.ne.s32.totalorder %s68, %s69
      %p81 = scmp.eq.s32.totalorder %s24, 3
      %p82 = por %p80, %p81
      %p84 = scmp.ne.s32.totalorder %s69, %s83
      %p85 = scmp.eq.s32.totalorder %s24, 0
      %p86 = por %p84, %p85
      %s88 = sadd.s32 %s87, 1
      %p91 = scmp.eq.s32.totalorder %s18, 3
      %p92 = scmp.ne.s32.totalorder %s87, %s89
      %p93 = scmp.eq.s32.totalorder %s18, 0
      %p94 = por %p92, %p93
      %p95 = scmp.ne.s32.totalorder %s87, %s89
      %p96 = scmp.eq.s32.totalorder %s23, 3
      %p97 = por %p95, %p96
      %p98 = scmp.ne.s32.totalorder %s89, %s90
      %p99 = scmp.eq.s32.totalorder %s23, 0
      %p100 = por %p98, %p99
      %p101 = scmp.ne.s32.totalorder %s89, %s90
      %p102 = scmp.eq.s32.totalorder %s24, 3
      %p103 = por %p101, %p102
      %p105 = scmp.ne.s32.totalorder %s90, %s104
      %p106 = scmp.eq.s32.totalorder %s24, 0
      %p107 = por %p105, %p106
      %s109 = sadd.s32 %s108, 1
      %p112 = scmp.eq.s32.totalorder %s18, 3
      %p113 = scmp.ne.s32.totalorder %s108, %s110
      %p114 = scmp.eq.s32.totalorder %s18, 0
      %p115 = por %p113, %p114
      %p116 = scmp.ne.s32.totalorder %s108, %s110
      %p117 = scmp.eq.s32.totalorder %s23, 3
      %p118 = por %p116, %p117
      %p119 = scmp.ne.s32.totalorder %s110, %s111
      %p120 = scmp.eq.s32.totalorder %s23, 0
      %p121 = por %p119, %p120
      %p122 = scmp.ne.s32.totalorder %s110, %s111
      %p123 = scmp.eq.s32.totalorder %s24, 3
      %p124 = por %p122, %p123
      %p126 = scmp.ne.s32.totalorder %s111, %s125
      %p127 = scmp.eq.s32.totalorder %s24, 0
      %p128 = por %p126, %p127
      %s130 = sadd.s32 %s129, 1
      %p133 = scmp.eq.s32.totalorder %s18, 3
      %p134 = scmp.ne.s32.totalorder %s129, %s131
      %p135 = scmp.eq.s32.totalorder %s18, 0
      %p136 = por %p134, %p135
      %p137 = scmp.ne.s32.totalorder %s129, %s131
      %p138 = scmp.eq.s32.totalorder %s23, 3
      %p139 = por %p137, %p138
      %p140 = scmp.ne.s32.totalorder %s131, %s132
      %p141 = scmp.eq.s32.totalorder %s23, 0
      %p142 = por %p140, %p141
      %p143 = scmp.ne.s32.totalorder %s131, %s132
      %p144 = scmp.eq.s32.totalorder %s24, 3
      %p145 = por %p143, %p144
      %p147 = scmp.ne.s32.totalorder %s132, %s146
      %p148 = scmp.eq.s32.totalorder %s24, 0
      %p149 = por %p147, %p148
      %s150 = ssub.s32 %s25, %s37
      %s151 = ssub.s32 %s26, %s33
      %s152 = sor.u32 %s150, %s151
      %p153 = scmp.eq.s32.totalorder %s152, 0
      %s155 = sadd.s32 %s154, 1
      %s156 = scalar_select %p153, %s154, %s155
      %p159 = pneg %p153
      %p160 = scmp.eq.s32.totalorder %s18, 3
      %p161 = por %p159, %p160
      %p162 = scmp.ne.s32.totalorder %s154, %s157
      %p163 = scmp.eq.s32.totalorder %s18, 0
      %p164 = por %p162, %p163
      %p165 = scmp.ne.s32.totalorder %s154, %s157
      %p166 = scmp.eq.s32.totalorder %s23, 3
      %p167 = por %p165, %p166
      %p168 = scmp.ne.s32.totalorder %s157, %s158
      %p169 = scmp.eq.s32.totalorder %s23, 0
      %p170 = por %p168, %p169
      %p171 = scmp.ne.s32.totalorder %s157, %s158
      %p172 = scmp.eq.s32.totalorder %s24, 3
      %p173 = por %p171, %p172
      %p175 = scmp.ne.s32.totalorder %s158, %s174
      %p176 = scmp.eq.s32.totalorder %s24, 0
      %p177 = por %p175, %p176
      %s178 = ssub.s32 %s25, %s37
      %s179 = ssub.s32 %s26, %s33
      %s180 = sor.u32 %s178, %s179
      %p181 = scmp.eq.s32.totalorder %s180, 0
      %s183 = sadd.s32 %s182, 1
      %s184 = scalar_select %p181, %s182, %s183
      %p187 = pneg %p181
      %p188 = scmp.eq.s32.totalorder %s18, 3
      %p189 = por %p187, %p188
      %p190 = scmp.ne.s32.totalorder %s182, %s185
      %p191 = scmp.eq.s32.totalorder %s18, 0
      %p192 = por %p190, %p191
      %p193 = scmp.ne.s32.totalorder %s182, %s185
      %p194 = scmp.eq.s32.totalorder %s23, 3
      %p195 = por %p193, %p194
      %p196 = scmp.ne.s32.totalorder %s185, %s186
      %p197 = scmp.eq.s32.totalorder %s23, 0
      %p198 = por %p196, %p197
      %p199 = scmp.ne.s32.totalorder %s185, %s186
      %p200 = scmp.eq.s32.totalorder %s24, 3
      %p201 = por %p199, %p200
      %p203 = scmp.ne.s32.totalorder %s186, %s202
      %p204 = scmp.eq.s32.totalorder %s24, 0
      %p205 = por %p203, %p204
      %s206 = ssub.s32 %s25, %s37
      %s207 = ssub.s32 %s26, %s33
      %s208 = sor.u32 %s206, %s207
      %p209 = scmp.eq.s32.totalorder %s208, 0
      %s211 = sadd.s32 %s210, 1
      %s212 = scalar_select %p209, %s210, %s211
      %p215 = pneg %p209
      %p216 = scmp.eq.s32.totalorder %s18, 3
      %p217 = por %p215, %p216
      %p218 = scmp.ne.s32.totalorder %s210, %s213
      %p219 = scmp.eq.s32.totalorder %s18, 0
      %p220 = por %p218, %p219
      %p221 = scmp.ne.s32.totalorder %s210, %s213
      %p222 = scmp.eq.s32.totalorder %s23, 3
      %p223 = por %p221, %p222
      %p224 = scmp.ne.s32.totalorder %s213, %s214
      %p225 = scmp.eq.s32.totalorder %s23, 0
      %p226 = por %p224, %p225
      %p227 = scmp.ne.s32.totalorder %s213, %s214
      %p228 = scmp.eq.s32.totalorder %s24, 3
      %p229 = por %p227, %p228
      %p231 = scmp.ne.s32.totalorder %s214, %s230
      %p232 = scmp.eq.s32.totalorder %s24, 0
      %p233 = por %p231, %p232
      %p234 = scmp.le.s32.totalorder 1, %s18
      %p235 = scmp.lt.s32.totalorder %s18, 5
      %p236 = pnand %p234, %p235
      %p237 = pneg %p236
      // Predicated region
      $region9: #{tpu_custom_call.1} parent=5 // pred_check
        _
      $region10: #{tpu_custom_call.1} parent=5 // pred_check_branch
        %239 = sbr.rel (%p236) target = $region12
      $region11: #{tpu_custom_call.1} parent=5 // pred_region
        %s240 = ssub.s32 %s18, 1
        // Predicated region
        $region13: #{tpu_custom_call.1} parent=11 // pred_check
          %p241 = pneg %p79
        $region14: #{tpu_custom_call.1} parent=11 // pred_check_branch
          %243 = sbr.rel (%p241) target = $region16
        $region15: #{tpu_custom_call.1} parent=11 // pred_region
          _
        $region16: #{tpu_custom_call.1} parent=11 // pred_fallthru
          _
        // Predicated region
        $region17: #{tpu_custom_call.1} parent=11 // pred_check
          %p244 = pneg %p100
        $region18: #{tpu_custom_call.1} parent=11 // pred_check_branch
          %246 = sbr.rel (%p244) target = $region20
        $region19: #{tpu_custom_call.1} parent=11 // pred_region
          _
        $region20: #{tpu_custom_call.1} parent=11 // pred_fallthru
          _
        // Predicated region
        $region21: #{tpu_custom_call.1} parent=11 // pred_check
          %p247 = pneg %p121
        $region22: #{tpu_custom_call.1} parent=11 // pred_check_branch
          %249 = sbr.rel (%p247) target = $region24
        $region23: #{tpu_custom_call.1} parent=11 // pred_region
          %s251 = ssub.s32 256, 256
          %252 = vsyncadd [#allocation5], %s251
          %s253 = sshll.u32 [#allocation4], 4
          %s254 = int_to_ptr.vmem [resolvable:$true] %s253
          %259 = dma.hbm_to_vmem [thread:$0]  %s3, 256, %s254, [#allocation5], 64, 64, 4
        $region24: #{tpu_custom_call.1} parent=11 // pred_fallthru
          _
        // Predicated region
        $region25: #{tpu_custom_call.1} parent=11 // pred_check
          %p260 = pneg %p142
        $region26: #{tpu_custom_call.1} parent=11 // pred_check_branch
          %262 = sbr.rel (%p260) target = $region28
        $region27: #{tpu_custom_call.1} parent=11 // pred_region
          _
        $region28: #{tpu_custom_call.1} parent=11 // pred_fallthru
          _
      $region12: #{tpu_custom_call.1} parent=5 // pred_fallthru
        _
      %p263 = scmp.lt.s32.totalorder %s18, 4
      // Predicated region
      $region29: #{tpu_custom_call.1} parent=5 // pred_check
        %p264 = pneg %p263
      $region30: #{tpu_custom_call.1} parent=5 // pred_check_branch
        %266 = sbr.rel (%p264) target = $region32
      $region31: #{tpu_custom_call.1} parent=5 // pred_region
        // Predicated region
        $region33: #{tpu_custom_call.1} parent=31 // pred_check
          %p267 = pneg %p52
        $region34: #{tpu_custom_call.1} parent=31 // pred_check_branch
          %269 = sbr.rel (%p267) target = $region36
        $region35: #{tpu_custom_call.1} parent=31 // pred_region
          %s270 = sand.u32 %s42, 1
          %s271 = scalar_lea.sflag [#allocation3], %s270
          %s272 = sand.u32 %s42, 1
          %s273 = smul.addr %s272, 16
          %s274 = scalar_lea.vmem [#allocation2], %s273
          %s275 = smul.u32 2, %s26
          %s277 = ssub.s32 256, 256
          %278 = vsyncadd %s271, %s277
          %s279 = smul.addr %s25, 4
          %s280 = sadd.s32 %s275, %s279
          %s281 = smul.addr %s280, 128
          %s282 = scalar_lea.hbm %s0, %s281
          %s283 = sshll.u32 %s274, 4
          %s284 = int_to_ptr.vmem [resolvable:$true] %s283
          %289 = dma.hbm_to_vmem [thread:$0]  %s282, 256, %s284, %s271, 128, 128, 8
        $region36: #{tpu_custom_call.1} parent=31 // pred_fallthru
          _
      $region32: #{tpu_custom_call.1} parent=5 // pred_fallthru
        _
      %p290 = scmp.le.s32.totalorder 1, %s18
      %p291 = scmp.lt.s32.totalorder %s18, 5
      %p292 = pnand %p290, %p291
      %p293 = pneg %p292
      // Predicated region
      $region37: #{tpu_custom_call.1} parent=5 // pred_check
        _
      $region38: #{tpu_custom_call.1} parent=5 // pred_check_branch
        %295 = sbr.rel (%p292) target = $region40
      $region39: #{tpu_custom_call.1} parent=5 // pred_region
        %s296 = ssub.s32 %s18, 1
        %s297 = sand.u32 %s45, 1
        %s298 = scalar_lea.sflag [#allocation3], %s297
        %s299 = sand.u32 %s45, 1
        %s300 = smul.addr %s299, 16
        %s301 = scalar_lea.vmem [#allocation2], %s300
        // Predicated region
        $region41: #{tpu_custom_call.1} parent=39 // pred_check
          %p302 = pneg %p58
        $region42: #{tpu_custom_call.1} parent=39 // pred_check_branch
          %304 = sbr.rel (%p302) target = $region44
        $region43: #{tpu_custom_call.1} parent=39 // pred_region
          %305 = dma.done %s298, 256
        $region44: #{tpu_custom_call.1} parent=39 // pred_fallthru
          _
        // Predicated region
        $region45: #{tpu_custom_call.1} parent=39 // pred_check
          %p306 = pneg %p121
        $region46: #{tpu_custom_call.1} parent=39 // pred_check_branch
          %308 = sbr.rel (%p306) target = $region48
        $region47: #{tpu_custom_call.1} parent=39 // pred_region
          %309 = dma.done [#allocation5], 256
        $region48: #{tpu_custom_call.1} parent=39 // pred_fallthru
          _
        %s310 = sand.u32 %s45, 1
        %s311 = scalar_lea.sflag [#allocation3], %s310
        %s312 = sand.u32 %s45, 1
        %s313 = smul.addr %s312, 16
        %s314 = scalar_lea.vmem [#allocation2], %s313
        %p315 = pneg %p58
        %p316 = pneg %p55
        %p317 = pneg %p79
        %p318 = pneg %p76
        %p319 = pneg %p100
        %p320 = pneg %p97
        %p321 = pneg %p121
        %p322 = pneg %p118
        %p323 = pneg %p142
        %p324 = pneg %p139
        %p325 = pneg %p170
        %p326 = pneg %p167
        %s327 = sand.u32 %s157, 1
        %s328 = sand.u32 %s157, 1
        %s329 = smul.addr %s328, 32
        %s330 = scalar_lea.vmem [#allocation6], %s329
        %p331 = pneg %p198
        %p332 = pneg %p195
        %s333 = sand.u32 %s185, 1
        %s334 = sand.u32 %s185, 1
        %s335 = smul.addr %s334, 32
        %s336 = scalar_lea.vmem [#allocation7], %s335
        %p337 = pneg %p226
        %p338 = pneg %p223
        %s339 = sand.u32 %s213, 1
        %s340 = sand.u32 %s213, 1
        %s341 = smul.addr %s340, 32
        %s342 = scalar_lea.vmem [#allocation8], %s341
        %s343 = smul.u32 2, %s28
        %s344 = smul.u32 2, %s28
        %s345 = smul.u32 2, %s28
        %s346 = smul.u32 2, %s28
        %v348 = vld [vmem:[%s301] sm:$0xff]
        %v349 = vld [vmem:[%s301 + $0x8] sm:$0xff]
        %v350 = vld [vmem:[%s1] sm:$0x1]
        %v351 = vld [vmem:[%s2] sm:$0x1]
        %vm352 = vcmask 261120
        %v353 = vsel %vm352, %v348, 0.0
        %354 = vadd.xlane.f32.xlu0 %v353
        %v355 = vpop.xlane.xlu0 %354
        %v356 = vsel %vm352, %v349, 0.0
        %357 = vadd.xlane.f32.xlu0 %v356
        %v358 = vpop.xlane.xlu0 %357
        %v359 = vrcp.pop 32.0
        %v360 = vmul.f32 %v355, %v359
        %v361 = vmul.f32 %v358, %v359
        %v362 = vsub.f32 %v348, %v360
        %v363 = vsub.f32 %v349, %v361
        %v364 = vmul.f32 %v362, %v362
        %v365 = vmul.f32 %v363, %v363
        %v366 = vsel %vm352, %v364, 0.0
        %367 = vadd.xlane.f32.xlu0 %v366
        %v368 = vpop.xlane.xlu0 %367
        %v369 = vsel %vm352, %v365, 0.0
        %370 = vadd.xlane.f32.xlu0 %v369
        %v371 = vpop.xlane.xlu0 %370
        %v372 = vmul.f32 %v368, %v359
        %v373 = vmul.f32 %v371, %v359
        %v374 = vadd.f32 %v372, 1e-05
        %v375 = vadd.f32 %v373, 1e-05
        %v376 = vrsqrt.pop %v374
        %v377 = vrsqrt.pop %v375
        %v378 = vmul.f32 %v362, %v376
        %v379 = vmul.f32 %v363, %v377
        %v381 = vlaneseq
        %v382 = vshrl.u32 %v381, 7
        %v383 = vsub.s32 0, %v382
        %v384 = vrot.slane %v350, %v383
        %v386 = vmul.f32 %v378, %v384
        %v387 = vmul.f32 %v379, %v384
        %v389 = vlaneseq
        %v390 = vshrl.u32 %v389, 7
        %v391 = vsub.s32 0, %v390
        %v392 = vrot.slane %v351, %v391
        %v394 = vadd.f32 %v386, %v392
        %v395 = vadd.f32 %v387, %v392
        %v396 = vpack.c.bf16 %v395, %v394
        %v397 = vld [vmem:[#allocation4] sm:$0xf]
        %v398 = vld [vmem:[#allocation4 + $0x4] sm:$0xf]
        %v399 = vld [vmem:[#allocation4 + $0x8] sm:$0xf]
        %v400 = vld [vmem:[#allocation4 + $0xc] sm:$0xf]
        %v401 = vld [vmem:[%s4] sm:$0x1]
        %v403 = vlaneseq
        %v404 = vshrl.u32 %v403, 7
        %v405 = vsub.s32 0, %v404
        %v406 = vrot.slane %v401, %v405
        %v412 = vunpack.c.l.b16 %v397
        %v413 = vunpack.c.l.b16 %v398
        %v414 = vunpack.c.l.b16 %v399
        %v415 = vunpack.c.l.b16 %v400
        %v416 = vpack.c.b16 %v413, %v412
        %v417 = vpack.c.b16 %v415, %v414
        %v421 = vsel %vm352, %v396, 0
        %423 = vmatprep.subr.bf16.mxu0 0
        %424 = vmatpush1.bf16.msra.mxu0 %v416
        %425 = vmatprep.subr.bf16.mxu0 0
        %426 = vmatpush1.bf16.msra.mxu0 %v417
        %427 = vmatprep.subr.bf16.mxu0 0
        %428 = vmatpush1.bf16.msra.mxu0 0
        %429 = vmatprep.subr.bf16.mxu0 0
        %430 = vmatpush1.bf16.msra.mxu0 0
        %431 = vmatprep.subr.bf16.mxu0 0
        %432 = vmatpush1.bf16.msra.mxu0 0
        %433 = vmatprep.subr.bf16.mxu0 0
        %434 = vmatpush1.bf16.msra.mxu0 0
        %435 = vmatprep.subr.bf16.mxu0 0
        %436 = vmatpush1.bf16.msra.mxu0 0
        %437 = vmatprep.subr.bf16.mxu0 0
        %438 = vmatpush1.bf16.msra.mxu0 0
        %439 = vmatprep.subr.bf16.mxu0 0
        %440 = vmatpush1.bf16.msra.mxu0 0
        %441 = vmatprep.subr.bf16.mxu0 0
        %442 = vmatpush1.bf16.msra.mxu0 0
        %443 = vmatprep.subr.bf16.mxu0 0
        %444 = vmatpush1.bf16.msra.mxu0 0
        %445 = vmatprep.subr.bf16.mxu0 0
        %446 = vmatpush1.bf16.msra.mxu0 0
        %447 = vmatprep.subr.bf16.mxu0 0
        %448 = vmatpush1.bf16.msra.mxu0 0
        %449 = vmatprep.subr.bf16.mxu0 0
        %450 = vmatpush1.bf16.msra.mxu0 0
        %451 = vmatprep.subr.bf16.mxu0 0
        %452 = vmatpush1.bf16.msra.mxu0 0
        %453 = vmatprep.subr.bf16.mxu0 0
        %454 = vmatpush1.bf16.msra.mxu0 0
        %455 = vmatprep.mubr.bf16.mxu0 0
        %456 = vmatmul.mubr.bf16.gmra.mrb[0].mxu0 %v421
        %v457 = vpop.f32.mrb[0].mxu0
        %v458 = vadd.f32 %v406, %v457
        %v459 = vpop.f32.mrb[0].mxu0
        %v460 = vpop.f32.mrb[0].mxu0
        %v461 = vadd.f32 %v406, %v460
        %v462 = vpop.f32.mrb[0].mxu0
        %463 = vdwg.mxu0
        %466 = vrot.lane.b32.xlu0 %v458, 120
        %v467 = vpop.permute.xlu0 %466
        %468 = vrot.lane.b32.xlu0 %v461, 120
        %v469 = vpop.permute.xlu0 %468
        %472 = vrot.lane.b32.xlu0 %v458, 112
        %v473 = vpop.permute.xlu0 %472
        %474 = vrot.lane.b32.xlu0 %v461, 112
        %v475 = vpop.permute.xlu0 %474
        %478 = vrot.lane.b32.xlu0 %v458, 104
        %v479 = vpop.permute.xlu0 %478
        %480 = vrot.lane.b32.xlu0 %v461, 104
        %v481 = vpop.permute.xlu0 %480
        %v484 = vcombine.low %v458, %v473
        %v485 = vcombine.high %v458, %v473
        %v487 = vunpack.c.l.s4 1983009808
        %v488 = vunpack.c.0.s8 %v487
        %v489 = vlaneseq
        %v490 = vshrl.u32 %v489, 7
        %v491 = vsub.s32 %v488, %v490
        %v492 = vrot.slane %v484, %v491
        %v494 = vunpack.c.l.s4 1983009808
        %v495 = vunpack.c.0.s8 %v494
        %v496 = vlaneseq
        %v497 = vshrl.u32 %v496, 7
        %v498 = vsub.s32 %v495, %v497
        %v499 = vrot.slane %v485, %v498
        %v500 = vcombine.low %v467, %v479
        %v501 = vcombine.high %v467, %v479
        %v503 = vunpack.c.l.s4 1983009808
        %v504 = vunpack.c.0.s8 %v503
        %v505 = vlaneseq
        %v506 = vshrl.u32 %v505, 7
        %v507 = vsub.s32 %v504, %v506
        %v508 = vrot.slane %v500, %v507
        %v510 = vunpack.c.l.s4 1983009808
        %v511 = vunpack.c.0.s8 %v510
        %v512 = vlaneseq
        %v513 = vshrl.u32 %v512, 7
        %v514 = vsub.s32 %v511, %v513
        %v515 = vrot.slane %v501, %v514
        %v516 = vcombine.low %v492, %v508
        %v517 = vcombine.high %v492, %v508
        %v519 = vunpack.c.l.s4 1934713408
        %v520 = vunpack.c.0.s8 %v519
        %v521 = vlaneseq
        %v522 = vshrl.u32 %v521, 7
        %v523 = vsub.s32 %v520, %v522
        %v524 = vrot.slane %v516, %v523
        %v526 = vunpack.c.l.s4 1934713408
        %v527 = vunpack.c.0.s8 %v526
        %v528 = vlaneseq
        %v529 = vshrl.u32 %v528, 7
        %v530 = vsub.s32 %v527, %v529
        %v531 = vrot.slane %v517, %v530
        %v532 = vcombine.low %v499, %v515
        %v533 = vcombine.high %v499, %v515
        %v535 = vunpack.c.l.s4 1934713408
        %v536 = vunpack.c.0.s8 %v535
        %v537 = vlaneseq
        %v538 = vshrl.u32 %v537, 7
        %v539 = vsub.s32 %v536, %v538
        %v540 = vrot.slane %v532, %v539
        %v542 = vunpack.c.l.s4 1934713408
        %v543 = vunpack.c.0.s8 %v542
        %v544 = vlaneseq
        %v545 = vshrl.u32 %v544, 7
        %v546 = vsub.s32 %v543, %v545
        %v547 = vrot.slane %v533, %v546
        %v548 = vcombine.high %v524, 0.0
        %v549 = vcombine.high %v531, 0.0
        %v550 = vcombine.high %v540, 0.0
        %v551 = vcombine.high %v547, 0.0
        %v552 = vcombine.low %v461, %v475
        %v553 = vcombine.high %v461, %v475
        %v555 = vunpack.c.l.s4 1983009808
        %v556 = vunpack.c.0.s8 %v555
        %v557 = vlaneseq
        %v558 = vshrl.u32 %v557, 7
        %v559 = vsub.s32 %v556, %v558
        %v560 = vrot.slane %v552, %v559
        %v562 = vunpack.c.l.s4 1983009808
        %v563 = vunpack.c.0.s8 %v562
        %v564 = vlaneseq
        %v565 = vshrl.u32 %v564, 7
        %v566 = vsub.s32 %v563, %v565
        %v567 = vrot.slane %v553, %v566
        %v568 = vcombine.low %v469, %v481
        %v569 = vcombine.high %v469, %v481
        %v571 = vunpack.c.l.s4 1983009808
        %v572 = vunpack.c.0.s8 %v571
        %v573 = vlaneseq
        %v574 = vshrl.u32 %v573, 7
        %v575 = vsub.s32 %v572, %v574
        %v576 = vrot.slane %v568, %v575
        %v578 = vunpack.c.l.s4 1983009808
        %v579 = vunpack.c.0.s8 %v578
        %v580 = vlaneseq
        %v581 = vshrl.u32 %v580, 7
        %v582 = vsub.s32 %v579, %v581
        %v583 = vrot.slane %v569, %v582
        %v584 = vcombine.low %v560, %v576
        %v585 = vcombine.high %v560, %v576
        %v587 = vunpack.c.l.s4 1934713408
        %v588 = vunpack.c.0.s8 %v587
        %v589 = vlaneseq
        %v590 = vshrl.u32 %v589, 7
        %v591 = vsub.s32 %v588, %v590
        %v592 = vrot.slane %v584, %v591
        %v594 = vunpack.c.l.s4 1934713408
        %v595 = vunpack.c.0.s8 %v594
        %v596 = vlaneseq
        %v597 = vshrl.u32 %v596, 7
        %v598 = vsub.s32 %v595, %v597
        %v599 = vrot.slane %v585, %v598
        %v600 = vcombine.low %v567, %v583
        %v601 = vcombine.high %v567, %v583
        %v603 = vunpack.c.l.s4 1934713408
        %v604 = vunpack.c.0.s8 %v603
        %v605 = vlaneseq
        %v606 = vshrl.u32 %v605, 7
        %v607 = vsub.s32 %v604, %v606
        %v608 = vrot.slane %v600, %v607
        %v610 = vunpack.c.l.s4 1934713408
        %v611 = vunpack.c.0.s8 %v610
        %v612 = vlaneseq
        %v613 = vshrl.u32 %v612, 7
        %v614 = vsub.s32 %v611, %v613
        %v615 = vrot.slane %v601, %v614
        %v616 = vcombine.high %v592, 0.0
        %v617 = vcombine.high %v599, 0.0
        %v618 = vcombine.high %v608, 0.0
        %v619 = vcombine.high %v615, 0.0
        %v620 = vcombine.low %v524, %v531
        %v622 = vunpack.c.l.s4 1983009808
        %v623 = vunpack.c.0.s8 %v622
        %v624 = vlaneseq
        %v625 = vshrl.u32 %v624, 7
        %v626 = vsub.s32 %v623, %v625
        %v627 = vrot.slane %v620, %v626
        %v628 = vcombine.low %v548, %v549
        %v630 = vunpack.c.l.s4 1983009808
        %v631 = vunpack.c.0.s8 %v630
        %v632 = vlaneseq
        %v633 = vshrl.u32 %v632, 7
        %v634 = vsub.s32 %v631, %v633
        %v635 = vrot.slane %v628, %v634
        %v636 = vcombine.low %v540, %v547
        %v638 = vunpack.c.l.s4 1983009808
        %v639 = vunpack.c.0.s8 %v638
        %v640 = vlaneseq
        %v641 = vshrl.u32 %v640, 7
        %v642 = vsub.s32 %v639, %v641
        %v643 = vrot.slane %v636, %v642
        %v644 = vcombine.low %v550, %v551
        %v646 = vunpack.c.l.s4 1983009808
        %v647 = vunpack.c.0.s8 %v646
        %v648 = vlaneseq
        %v649 = vshrl.u32 %v648, 7
        %v650 = vsub.s32 %v647, %v649
        %v651 = vrot.slane %v644, %v650
        %v652 = vcombine.low %v627, %v635
        %v653 = vcombine.high %v627, %v635
        %v655 = vunpack.c.l.s4 1934713408
        %v656 = vunpack.c.0.s8 %v655
        %v657 = vlaneseq
        %v658 = vshrl.u32 %v657, 7
        %v659 = vsub.s32 %v656, %v658
        %v660 = vrot.slane %v652, %v659
        %v662 = vunpack.c.l.s4 1934713408
        %v663 = vunpack.c.0.s8 %v662
        %v664 = vlaneseq
        %v665 = vshrl.u32 %v664, 7
        %v666 = vsub.s32 %v663, %v665
        %v667 = vrot.slane %v653, %v666
        %v668 = vcombine.low %v643, %v651
        %v669 = vcombine.high %v643, %v651
        %v671 = vunpack.c.l.s4 1934713408
        %v672 = vunpack.c.0.s8 %v671
        %v673 = vlaneseq
        %v674 = vshrl.u32 %v673, 7
        %v675 = vsub.s32 %v672, %v674
        %v676 = vrot.slane %v668, %v675
        %v678 = vunpack.c.l.s4 1934713408
        %v679 = vunpack.c.0.s8 %v678
        %v680 = vlaneseq
        %v681 = vshrl.u32 %v680, 7
        %v682 = vsub.s32 %v679, %v681
        %v683 = vrot.slane %v669, %v682
        %v684 = vcombine.low %v660, %v676
        %v685 = vcombine.high %v660, %v676
        %v686 = vcombine.low %v667, %v683
        %v687 = vcombine.high %v667, %v683
        %v688 = vcombine.low %v592, %v599
        %v690 = vunpack.c.l.s4 1983009808
        %v691 = vunpack.c.0.s8 %v690
        %v692 = vlaneseq
        %v693 = vshrl.u32 %v692, 7
        %v694 = vsub.s32 %v691, %v693
        %v695 = vrot.slane %v688, %v694
        %v696 = vcombine.low %v616, %v617
        %v698 = vunpack.c.l.s4 1983009808
        %v699 = vunpack.c.0.s8 %v698
        %v700 = vlaneseq
        %v701 = vshrl.u32 %v700, 7
        %v702 = vsub.s32 %v699, %v701
        %v703 = vrot.slane %v696, %v702
        %v704 = vcombine.low %v608, %v615
        %v706 = vunpack.c.l.s4 1983009808
        %v707 = vunpack.c.0.s8 %v706
        %v708 = vlaneseq
        %v709 = vshrl.u32 %v708, 7
        %v710 = vsub.s32 %v707, %v709
        %v711 = vrot.slane %v704, %v710
        %v712 = vcombine.low %v618, %v619
        %v714 = vunpack.c.l.s4 1983009808
        %v715 = vunpack.c.0.s8 %v714
        %v716 = vlaneseq
        %v717 = vshrl.u32 %v716, 7
        %v718 = vsub.s32 %v715, %v717
        %v719 = vrot.slane %v712, %v718
        %v720 = vcombine.low %v695, %v703
        %v721 = vcombine.high %v695, %v703
        %v723 = vunpack.c.l.s4 1934713408
        %v724 = vunpack.c.0.s8 %v723
        %v725 = vlaneseq
        %v726 = vshrl.u32 %v725, 7
        %v727 = vsub.s32 %v724, %v726
        %v728 = vrot.slane %v720, %v727
        %v730 = vunpack.c.l.s4 1934713408
        %v731 = vunpack.c.0.s8 %v730
        %v732 = vlaneseq
        %v733 = vshrl.u32 %v732, 7
        %v734 = vsub.s32 %v731, %v733
        %v735 = vrot.slane %v721, %v734
        %v736 = vcombine.low %v711, %v719
        %v737 = vcombine.high %v711, %v719
        %v739 = vunpack.c.l.s4 1934713408
        %v740 = vunpack.c.0.s8 %v739
        %v741 = vlaneseq
        %v742 = vshrl.u32 %v741, 7
        %v743 = vsub.s32 %v740, %v742
        %v744 = vrot.slane %v736, %v743
        %v746 = vunpack.c.l.s4 1934713408
        %v747 = vunpack.c.0.s8 %v746
        %v748 = vlaneseq
        %v749 = vshrl.u32 %v748, 7
        %v750 = vsub.s32 %v747, %v749
        %v751 = vrot.slane %v737, %v750
        %v752 = vcombine.low %v728, %v744
        %v753 = vcombine.high %v728, %v744
        %v754 = vcombine.low %v735, %v751
        %v755 = vcombine.high %v735, %v751
        %v756 = vpack.c.bf16 %v752, %v684
        %v757 = vpack.c.bf16 %v753, %v685
        %v758 = vpack.c.bf16 %v754, %v686
        %v759 = vpack.c.bf16 %v755, %v687
        %v764 = vunpack.c.l.b16 %v756
        %v765 = vunpack.c.h.b16 %v756
        %v766 = vunpack.c.l.b16 %v757
        %v767 = vunpack.c.h.b16 %v757
        %v768 = vunpack.c.l.b16 %v758
        %v769 = vunpack.c.h.b16 %v758
        %v770 = vunpack.c.l.b16 %v759
        %v771 = vunpack.c.h.b16 %v759
        %v772 = vpack.c.b16 %v764, %v764
        %v773 = vpack.c.b16 %v765, %v765
        %v774 = vpack.c.b16 %v766, %v766
        %v775 = vpack.c.b16 %v767, %v767
        %v776 = vpack.c.b16 %v768, %v768
        %v777 = vpack.c.b16 %v769, %v769
        %v778 = vpack.c.b16 %v770, %v770
        %v779 = vpack.c.b16 %v771, %v771
        %vm788 = vcmask 60416
        %789 = vst.msk [vmem:[%s330] sm:$0xf] %vm788, %v772
        %790 = vst.msk [vmem:[%s330 + $0x4] sm:$0xf] %vm788, %v773
        %791 = vst.msk [vmem:[%s330 + $0x8] sm:$0xf] %vm788, %v774
        %792 = vst.msk [vmem:[%s330 + $0xc] sm:$0xf] %vm788, %v775
        %793 = vst.msk [vmem:[%s330 + $0x10] sm:$0xf] %vm788, %v776
        %794 = vst.msk [vmem:[%s330 + $0x14] sm:$0xf] %vm788, %v777
        %795 = vst.msk [vmem:[%s330 + $0x18] sm:$0xf] %vm788, %v778
        %796 = vst.msk [vmem:[%s330 + $0x1c] sm:$0xf] %vm788, %v779
        %797 = vrot.lane.b32.xlu0 %v458, 96
        %v798 = vpop.permute.xlu0 %797
        %799 = vrot.lane.b32.xlu0 %v461, 96
        %v800 = vpop.permute.xlu0 %799
        %801 = vrot.lane.b32.xlu0 %v467, 96
        %v802 = vpop.permute.xlu0 %801
        %803 = vrot.lane.b32.xlu0 %v469, 96
        %v804 = vpop.permute.xlu0 %803
        %805 = vrot.lane.b32.xlu0 %v473, 96
        %v806 = vpop.permute.xlu0 %805
        %807 = vrot.lane.b32.xlu0 %v475, 96
        %v808 = vpop.permute.xlu0 %807
        %809 = vrot.lane.b32.xlu0 %v479, 96
        %v810 = vpop.permute.xlu0 %809
        %811 = vrot.lane.b32.xlu0 %v481, 96
        %v812 = vpop.permute.xlu0 %811
        %v821 = vcombine.low %v798, %v806
        %v822 = vcombine.high %v798, %v806
        %v824 = vunpack.c.l.s4 1983009808
        %v825 = vunpack.c.0.s8 %v824
        %v826 = vlaneseq
        %v827 = vshrl.u32 %v826, 7
        %v828 = vsub.s32 %v825, %v827
        %v829 = vrot.slane %v821, %v828
        %v831 = vunpack.c.l.s4 1983009808
        %v832 = vunpack.c.0.s8 %v831
        %v833 = vlaneseq
        %v834 = vshrl.u32 %v833, 7
        %v835 = vsub.s32 %v832, %v834
        %v836 = vrot.slane %v822, %v835
        %v837 = vcombine.low %v802, %v810
        %v838 = vcombine.high %v802, %v810
        %v840 = vunpack.c.l.s4 1983009808
        %v841 = vunpack.c.0.s8 %v840
        %v842 = vlaneseq
        %v843 = vshrl.u32 %v842, 7
        %v844 = vsub.s32 %v841, %v843
        %v845 = vrot.slane %v837, %v844
        %v847 = vunpack.c.l.s4 1983009808
        %v848 = vunpack.c.0.s8 %v847
        %v849 = vlaneseq
        %v850 = vshrl.u32 %v849, 7
        %v851 = vsub.s32 %v848, %v850
        %v852 = vrot.slane %v838, %v851
        %v853 = vcombine.low %v829, %v845
        %v854 = vcombine.high %v829, %v845
        %v856 = vunpack.c.l.s4 1934713408
        %v857 = vunpack.c.0.s8 %v856
        %v858 = vlaneseq
        %v859 = vshrl.u32 %v858, 7
        %v860 = vsub.s32 %v857, %v859
        %v861 = vrot.slane %v853, %v860
        %v863 = vunpack.c.l.s4 1934713408
        %v864 = vunpack.c.0.s8 %v863
        %v865 = vlaneseq
        %v866 = vshrl.u32 %v865, 7
        %v867 = vsub.s32 %v864, %v866
        %v868 = vrot.slane %v854, %v867
        %v869 = vcombine.low %v836, %v852
        %v870 = vcombine.high %v836, %v852
        %v872 = vunpack.c.l.s4 1934713408
        %v873 = vunpack.c.0.s8 %v872
        %v874 = vlaneseq
        %v875 = vshrl.u32 %v874, 7
        %v876 = vsub.s32 %v873, %v875
        %v877 = vrot.slane %v869, %v876
        %v879 = vunpack.c.l.s4 1934713408
        %v880 = vunpack.c.0.s8 %v879
        %v881 = vlaneseq
        %v882 = vshrl.u32 %v881, 7
        %v883 = vsub.s32 %v880, %v882
        %v884 = vrot.slane %v870, %v883
        %v885 = vcombine.high %v861, 0.0
        %v886 = vcombine.high %v868, 0.0
        %v887 = vcombine.high %v877, 0.0
        %v888 = vcombine.high %v884, 0.0
        %v889 = vcombine.low %v800, %v808
        %v890 = vcombine.high %v800, %v808
        %v892 = vunpack.c.l.s4 1983009808
        %v893 = vunpack.c.0.s8 %v892
        %v894 = vlaneseq
        %v895 = vshrl.u32 %v894, 7
        %v896 = vsub.s32 %v893, %v895
        %v897 = vrot.slane %v889, %v896
        %v899 = vunpack.c.l.s4 1983009808
        %v900 = vunpack.c.0.s8 %v899
        %v901 = vlaneseq
        %v902 = vshrl.u32 %v901, 7
        %v903 = vsub.s32 %v900, %v902
        %v904 = vrot.slane %v890, %v903
        %v905 = vcombine.low %v804, %v812
        %v906 = vcombine.high %v804, %v812
        %v908 = vunpack.c.l.s4 1983009808
        %v909 = vunpack.c.0.s8 %v908
        %v910 = vlaneseq
        %v911 = vshrl.u32 %v910, 7
        %v912 = vsub.s32 %v909, %v911
        %v913 = vrot.slane %v905, %v912
        %v915 = vunpack.c.l.s4 1983009808
        %v916 = vunpack.c.0.s8 %v915
        %v917 = vlaneseq
        %v918 = vshrl.u32 %v917, 7
        %v919 = vsub.s32 %v916, %v918
        %v920 = vrot.slane %v906, %v919
        %v921 = vcombine.low %v897, %v913
        %v922 = vcombine.high %v897, %v913
        %v924 = vunpack.c.l.s4 1934713408
        %v925 = vunpack.c.0.s8 %v924
        %v926 = vlaneseq
        %v927 = vshrl.u32 %v926, 7
        %v928 = vsub.s32 %v925, %v927
        %v929 = vrot.slane %v921, %v928
        %v931 = vunpack.c.l.s4 1934713408
        %v932 = vunpack.c.0.s8 %v931
        %v933 = vlaneseq
        %v934 = vshrl.u32 %v933, 7
        %v935 = vsub.s32 %v932, %v934
        %v936 = vrot.slane %v922, %v935
        %v937 = vcombine.low %v904, %v920
        %v938 = vcombine.high %v904, %v920
        %v940 = vunpack.c.l.s4 1934713408
        %v941 = vunpack.c.0.s8 %v940
        %v942 = vlaneseq
        %v943 = vshrl.u32 %v942, 7
        %v944 = vsub.s32 %v941, %v943
        %v945 = vrot.slane %v937, %v944
        %v947 = vunpack.c.l.s4 1934713408
        %v948 = vunpack.c.0.s8 %v947
        %v949 = vlaneseq
        %v950 = vshrl.u32 %v949, 7
        %v951 = vsub.s32 %v948, %v950
        %v952 = vrot.slane %v938, %v951
        %v953 = vcombine.high %v929, 0.0
        %v954 = vcombine.high %v936, 0.0
        %v955 = vcombine.high %v945, 0.0
        %v956 = vcombine.high %v952, 0.0
        %v957 = vcombine.low %v861, %v868
        %v959 = vunpack.c.l.s4 1983009808
        %v960 = vunpack.c.0.s8 %v959
        %v961 = vlaneseq
        %v962 = vshrl.u32 %v961, 7
        %v963 = vsub.s32 %v960, %v962
        %v964 = vrot.slane %v957, %v963
        %v965 = vcombine.low %v885, %v886
        %v967 = vunpack.c.l.s4 1983009808
        %v968 = vunpack.c.0.s8 %v967
        %v969 = vlaneseq
        %v970 = vshrl.u32 %v969, 7
        %v971 = vsub.s32 %v968, %v970
        %v972 = vrot.slane %v965, %v971
        %v973 = vcombine.low %v877, %v884
        %v975 = vunpack.c.l.s4 1983009808
        %v976 = vunpack.c.0.s8 %v975
        %v977 = vlaneseq
        %v978 = vshrl.u32 %v977, 7
        %v979 = vsub.s32 %v976, %v978
        %v980 = vrot.slane %v973, %v979
        %v981 = vcombine.low %v887, %v888
        %v983 = vunpack.c.l.s4 1983009808
        %v984 = vunpack.c.0.s8 %v983
        %v985 = vlaneseq
        %v986 = vshrl.u32 %v985, 7
        %v987 = vsub.s32 %v984, %v986
        %v988 = vrot.slane %v981, %v987
        %v989 = vcombine.low %v964, %v972
        %v990 = vcombine.high %v964, %v972
        %v992 = vunpack.c.l.s4 1934713408
        %v993 = vunpack.c.0.s8 %v992
        %v994 = vlaneseq
        %v995 = vshrl.u32 %v994, 7
        %v996 = vsub.s32 %v993, %v995
        %v997 = vrot.slane %v989, %v996
        %v999 = vunpack.c.l.s4 1934713408
        %v1000 = vunpack.c.0.s8 %v999
        %v1001 = vlaneseq
        %v1002 = vshrl.u32 %v1001, 7
        %v1003 = vsub.s32 %v1000, %v1002
        %v1004 = vrot.slane %v990, %v1003
        %v1005 = vcombine.low %v980, %v988
        %v1006 = vcombine.high %v980, %v988
        %v1008 = vunpack.c.l.s4 1934713408
        %v1009 = vunpack.c.0.s8 %v1008
        %v1010 = vlaneseq
        %v1011 = vshrl.u32 %v1010, 7
        %v1012 = vsub.s32 %v1009, %v1011
        %v1013 = vrot.slane %v1005, %v1012
        %v1015 = vunpack.c.l.s4 1934713408
        %v1016 = vunpack.c.0.s8 %v1015
        %v1017 = vlaneseq
        %v1018 = vshrl.u32 %v1017, 7
        %v1019 = vsub.s32 %v1016, %v1018
        %v1020 = vrot.slane %v1006, %v1019
        %v1021 = vcombine.low %v997, %v1013
        %v1022 = vcombine.high %v997, %v1013
        %v1023 = vcombine.low %v1004, %v1020
        %v1024 = vcombine.high %v1004, %v1020
        %v1025 = vcombine.low %v929, %v936
        %v1027 = vunpack.c.l.s4 1983009808
        %v1028 = vunpack.c.0.s8 %v1027
        %v1029 = vlaneseq
        %v1030 = vshrl.u32 %v1029, 7
        %v1031 = vsub.s32 %v1028, %v1030
        %v1032 = vrot.slane %v1025, %v1031
        %v1033 = vcombine.low %v953, %v954
        %v1035 = vunpack.c.l.s4 1983009808
        %v1036 = vunpack.c.0.s8 %v1035
        %v1037 = vlaneseq
        %v1038 = vshrl.u32 %v1037, 7
        %v1039 = vsub.s32 %v1036, %v1038
        %v1040 = vrot.slane %v1033, %v1039
        %v1041 = vcombine.low %v945, %v952
        %v1043 = vunpack.c.l.s4 1983009808
        %v1044 = vunpack.c.0.s8 %v1043
        %v1045 = vlaneseq
        %v1046 = vshrl.u32 %v1045, 7
        %v1047 = vsub.s32 %v1044, %v1046
        %v1048 = vrot.slane %v1041, %v1047
        %v1049 = vcombine.low %v955, %v956
        %v1051 = vunpack.c.l.s4 1983009808
        %v1052 = vunpack.c.0.s8 %v1051
        %v1053 = vlaneseq
        %v1054 = vshrl.u32 %v1053, 7
        %v1055 = vsub.s32 %v1052, %v1054
        %v1056 = vrot.slane %v1049, %v1055
        %v1057 = vcombine.low %v1032, %v1040
        %v1058 = vcombine.high %v1032, %v1040
        %v1060 = vunpack.c.l.s4 1934713408
        %v1061 = vunpack.c.0.s8 %v1060
        %v1062 = vlaneseq
        %v1063 = vshrl.u32 %v1062, 7
        %v1064 = vsub.s32 %v1061, %v1063
        %v1065 = vrot.slane %v1057, %v1064
        %v1067 = vunpack.c.l.s4 1934713408
        %v1068 = vunpack.c.0.s8 %v1067
        %v1069 = vlaneseq
        %v1070 = vshrl.u32 %v1069, 7
        %v1071 = vsub.s32 %v1068, %v1070
        %v1072 = vrot.slane %v1058, %v1071
        %v1073 = vcombine.low %v1048, %v1056
        %v1074 = vcombine.high %v1048, %v1056
        %v1076 = vunpack.c.l.s4 1934713408
        %v1077 = vunpack.c.0.s8 %v1076
        %v1078 = vlaneseq
        %v1079 = vshrl.u32 %v1078, 7
        %v1080 = vsub.s32 %v1077, %v1079
        %v1081 = vrot.slane %v1073, %v1080
        %v1083 = vunpack.c.l.s4 1934713408
        %v1084 = vunpack.c.0.s8 %v1083
        %v1085 = vlaneseq
        %v1086 = vshrl.u32 %v1085, 7
        %v1087 = vsub.s32 %v1084, %v1086
        %v1088 = vrot.slane %v1074, %v1087
        %v1089 = vcombine.low %v1065, %v1081
        %v1090 = vcombine.high %v1065, %v1081
        %v1091 = vcombine.low %v1072, %v1088
        %v1092 = vcombine.high %v1072, %v1088
        %v1093 = vpack.c.bf16 %v1089, %v1021
        %v1094 = vpack.c.bf16 %v1090, %v1022
        %v1095 = vpack.c.bf16 %v1091, %v1023
        %v1096 = vpack.c.bf16 %v1092, %v1024
        %v1101 = vunpack.c.l.b16 %v1093
        %v1102 = vunpack.c.h.b16 %v1093
        %v1103 = vunpack.c.l.b16 %v1094
        %v1104 = vunpack.c.h.b16 %v1094
        %v1105 = vunpack.c.l.b16 %v1095
        %v1106 = vunpack.c.h.b16 %v1095
        %v1107 = vunpack.c.l.b16 %v1096
        %v1108 = vunpack.c.h.b16 %v1096
        %v1109 = vpack.c.b16 %v1101, %v1101
        %v1110 = vpack.c.b16 %v1102, %v1102
        %v1111 = vpack.c.b16 %v1103, %v1103
        %v1112 = vpack.c.b16 %v1104, %v1104
        %v1113 = vpack.c.b16 %v1105, %v1105
        %v1114 = vpack.c.b16 %v1106, %v1106
        %v1115 = vpack.c.b16 %v1107, %v1107
        %v1116 = vpack.c.b16 %v1108, %v1108
        %1125 = vst.msk [vmem:[%s336] sm:$0xf] %vm788, %v1109
        %1126 = vst.msk [vmem:[%s336 + $0x4] sm:$0xf] %vm788, %v1110
        %1127 = vst.msk [vmem:[%s336 + $0x8] sm:$0xf] %vm788, %v1111
        %1128 = vst.msk [vmem:[%s336 + $0xc] sm:$0xf] %vm788, %v1112
        %1129 = vst.msk [vmem:[%s336 + $0x10] sm:$0xf] %vm788, %v1113
        %1130 = vst.msk [vmem:[%s336 + $0x14] sm:$0xf] %vm788, %v1114
        %1131 = vst.msk [vmem:[%s336 + $0x18] sm:$0xf] %vm788, %v1115
        %1132 = vst.msk [vmem:[%s336 + $0x1c] sm:$0xf] %vm788, %v1116
        %1133 = vrot.lane.b32.xlu0 %v458, 64
        %v1134 = vpop.permute.xlu0 %1133
        %1135 = vrot.lane.b32.xlu0 %v461, 64
        %v1136 = vpop.permute.xlu0 %1135
        %1137 = vrot.lane.b32.xlu0 %v467, 64
        %v1138 = vpop.permute.xlu0 %1137
        %1139 = vrot.lane.b32.xlu0 %v469, 64
        %v1140 = vpop.permute.xlu0 %1139
        %1141 = vrot.lane.b32.xlu0 %v473, 64
        %v1142 = vpop.permute.xlu0 %1141
        %1143 = vrot.lane.b32.xlu0 %v475, 64
        %v1144 = vpop.permute.xlu0 %1143
        %1145 = vrot.lane.b32.xlu0 %v479, 64
        %v1146 = vpop.permute.xlu0 %1145
        %1147 = vrot.lane.b32.xlu0 %v481, 64
        %v1148 = vpop.permute.xlu0 %1147
        %v1157 = vcombine.low %v1134, %v1142
        %v1158 = vcombine.high %v1134, %v1142
        %v1160 = vunpack.c.l.s4 1983009808
        %v1161 = vunpack.c.0.s8 %v1160
        %v1162 = vlaneseq
        %v1163 = vshrl.u32 %v1162, 7
        %v1164 = vsub.s32 %v1161, %v1163
        %v1165 = vrot.slane %v1157, %v1164
        %v1167 = vunpack.c.l.s4 1983009808
        %v1168 = vunpack.c.0.s8 %v1167
        %v1169 = vlaneseq
        %v1170 = vshrl.u32 %v1169, 7
        %v1171 = vsub.s32 %v1168, %v1170
        %v1172 = vrot.slane %v1158, %v1171
        %v1173 = vcombine.low %v1138, %v1146
        %v1174 = vcombine.high %v1138, %v1146
        %v1176 = vunpack.c.l.s4 1983009808
        %v1177 = vunpack.c.0.s8 %v1176
        %v1178 = vlaneseq
        %v1179 = vshrl.u32 %v1178, 7
        %v1180 = vsub.s32 %v1177, %v1179
        %v1181 = vrot.slane %v1173, %v1180
        %v1183 = vunpack.c.l.s4 1983009808
        %v1184 = vunpack.c.0.s8 %v1183
        %v1185 = vlaneseq
        %v1186 = vshrl.u32 %v1185, 7
        %v1187 = vsub.s32 %v1184, %v1186
        %v1188 = vrot.slane %v1174, %v1187
        %v1189 = vcombine.low %v1165, %v1181
        %v1190 = vcombine.high %v1165, %v1181
        %v1192 = vunpack.c.l.s4 1934713408
        %v1193 = vunpack.c.0.s8 %v1192
        %v1194 = vlaneseq
        %v1195 = vshrl.u32 %v1194, 7
        %v1196 = vsub.s32 %v1193, %v1195
        %v1197 = vrot.slane %v1189, %v1196
        %v1199 = vunpack.c.l.s4 1934713408
        %v1200 = vunpack.c.0.s8 %v1199
        %v1201 = vlaneseq
        %v1202 = vshrl.u32 %v1201, 7
        %v1203 = vsub.s32 %v1200, %v1202
        %v1204 = vrot.slane %v1190, %v1203
        %v1205 = vcombine.low %v1172, %v1188
        %v1206 = vcombine.high %v1172, %v1188
        %v1208 = vunpack.c.l.s4 1934713408
        %v1209 = vunpack.c.0.s8 %v1208
        %v1210 = vlaneseq
        %v1211 = vshrl.u32 %v1210, 7
        %v1212 = vsub.s32 %v1209, %v1211
        %v1213 = vrot.slane %v1205, %v1212
        %v1215 = vunpack.c.l.s4 1934713408
        %v1216 = vunpack.c.0.s8 %v1215
        %v1217 = vlaneseq
        %v1218 = vshrl.u32 %v1217, 7
        %v1219 = vsub.s32 %v1216, %v1218
        %v1220 = vrot.slane %v1206, %v1219
        %v1221 = vcombine.high %v1197, 0.0
        %v1222 = vcombine.high %v1204, 0.0
        %v1223 = vcombine.high %v1213, 0.0
        %v1224 = vcombine.high %v1220, 0.0
        %v1225 = vcombine.low %v1136, %v1144
        %v1226 = vcombine.high %v1136, %v1144
        %v1228 = vunpack.c.l.s4 1983009808
        %v1229 = vunpack.c.0.s8 %v1228
        %v1230 = vlaneseq
        %v1231 = vshrl.u32 %v1230, 7
        %v1232 = vsub.s32 %v1229, %v1231
        %v1233 = vrot.slane %v1225, %v1232
        %v1235 = vunpack.c.l.s4 1983009808
        %v1236 = vunpack.c.0.s8 %v1235
        %v1237 = vlaneseq
        %v1238 = vshrl.u32 %v1237, 7
        %v1239 = vsub.s32 %v1236, %v1238
        %v1240 = vrot.slane %v1226, %v1239
        %v1241 = vcombine.low %v1140, %v1148
        %v1242 = vcombine.high %v1140, %v1148
        %v1244 = vunpack.c.l.s4 1983009808
        %v1245 = vunpack.c.0.s8 %v1244
        %v1246 = vlaneseq
        %v1247 = vshrl.u32 %v1246, 7
        %v1248 = vsub.s32 %v1245, %v1247
        %v1249 = vrot.slane %v1241, %v1248
        %v1251 = vunpack.c.l.s4 1983009808
        %v1252 = vunpack.c.0.s8 %v1251
        %v1253 = vlaneseq
        %v1254 = vshrl.u32 %v1253, 7
        %v1255 = vsub.s32 %v1252, %v1254
        %v1256 = vrot.slane %v1242, %v1255
        %v1257 = vcombine.low %v1233, %v1249
        %v1258 = vcombine.high %v1233, %v1249
        %v1260 = vunpack.c.l.s4 1934713408
        %v1261 = vunpack.c.0.s8 %v1260
        %v1262 = vlaneseq
        %v1263 = vshrl.u32 %v1262, 7
        %v1264 = vsub.s32 %v1261, %v1263
        %v1265 = vrot.slane %v1257, %v1264
        %v1267 = vunpack.c.l.s4 1934713408
        %v1268 = vunpack.c.0.s8 %v1267
        %v1269 = vlaneseq
        %v1270 = vshrl.u32 %v1269, 7
        %v1271 = vsub.s32 %v1268, %v1270
        %v1272 = vrot.slane %v1258, %v1271
        %v1273 = vcombine.low %v1240, %v1256
        %v1274 = vcombine.high %v1240, %v1256
        %v1276 = vunpack.c.l.s4 1934713408
        %v1277 = vunpack.c.0.s8 %v1276
        %v1278 = vlaneseq
        %v1279 = vshrl.u32 %v1278, 7
        %v1280 = vsub.s32 %v1277, %v1279
        %v1281 = vrot.slane %v1273, %v1280
        %v1283 = vunpack.c.l.s4 1934713408
        %v1284 = vunpack.c.0.s8 %v1283
        %v1285 = vlaneseq
        %v1286 = vshrl.u32 %v1285, 7
        %v1287 = vsub.s32 %v1284, %v1286
        %v1288 = vrot.slane %v1274, %v1287
        %v1289 = vcombine.high %v1265, 0.0
        %v1290 = vcombine.high %v1272, 0.0
        %v1291 = vcombine.high %v1281, 0.0
        %v1292 = vcombine.high %v1288, 0.0
        %v1293 = vcombine.low %v1197, %v1204
        %v1295 = vunpack.c.l.s4 1983009808
        %v1296 = vunpack.c.0.s8 %v1295
        %v1297 = vlaneseq
        %v1298 = vshrl.u32 %v1297, 7
        %v1299 = vsub.s32 %v1296, %v1298
        %v1300 = vrot.slane %v1293, %v1299
        %v1301 = vcombine.low %v1221, %v1222
        %v1303 = vunpack.c.l.s4 1983009808
        %v1304 = vunpack.c.0.s8 %v1303
        %v1305 = vlaneseq
        %v1306 = vshrl.u32 %v1305, 7
        %v1307 = vsub.s32 %v1304, %v1306
        %v1308 = vrot.slane %v1301, %v1307
        %v1309 = vcombine.low %v1213, %v1220
        %v1311 = vunpack.c.l.s4 1983009808
        %v1312 = vunpack.c.0.s8 %v1311
        %v1313 = vlaneseq
        %v1314 = vshrl.u32 %v1313, 7
        %v1315 = vsub.s32 %v1312, %v1314
        %v1316 = vrot.slane %v1309, %v1315
        %v1317 = vcombine.low %v1223, %v1224
        %v1319 = vunpack.c.l.s4 1983009808
        %v1320 = vunpack.c.0.s8 %v1319
        %v1321 = vlaneseq
        %v1322 = vshrl.u32 %v1321, 7
        %v1323 = vsub.s32 %v1320, %v1322
        %v1324 = vrot.slane %v1317, %v1323
        %v1325 = vcombine.low %v1300, %v1308
        %v1326 = vcombine.high %v1300, %v1308
        %v1328 = vunpack.c.l.s4 1934713408
        %v1329 = vunpack.c.0.s8 %v1328
        %v1330 = vlaneseq
        %v1331 = vshrl.u32 %v1330, 7
        %v1332 = vsub.s32 %v1329, %v1331
        %v1333 = vrot.slane %v1325, %v1332
        %v1335 = vunpack.c.l.s4 1934713408
        %v1336 = vunpack.c.0.s8 %v1335
        %v1337 = vlaneseq
        %v1338 = vshrl.u32 %v1337, 7
        %v1339 = vsub.s32 %v1336, %v1338
        %v1340 = vrot.slane %v1326, %v1339
        %v1341 = vcombine.low %v1316, %v1324
        %v1342 = vcombine.high %v1316, %v1324
        %v1344 = vunpack.c.l.s4 1934713408
        %v1345 = vunpack.c.0.s8 %v1344
        %v1346 = vlaneseq
        %v1347 = vshrl.u32 %v1346, 7
        %v1348 = vsub.s32 %v1345, %v1347
        %v1349 = vrot.slane %v1341, %v1348
        %v1351 = vunpack.c.l.s4 1934713408
        %v1352 = vunpack.c.0.s8 %v1351
        %v1353 = vlaneseq
        %v1354 = vshrl.u32 %v1353, 7
        %v1355 = vsub.s32 %v1352, %v1354
        %v1356 = vrot.slane %v1342, %v1355
        %v1357 = vcombine.low %v1333, %v1349
        %v1358 = vcombine.high %v1333, %v1349
        %v1359 = vcombine.low %v1340, %v1356
        %v1360 = vcombine.high %v1340, %v1356
        %v1361 = vcombine.low %v1265, %v1272
        %v1363 = vunpack.c.l.s4 1983009808
        %v1364 = vunpack.c.0.s8 %v1363
        %v1365 = vlaneseq
        %v1366 = vshrl.u32 %v1365, 7
        %v1367 = vsub.s32 %v1364, %v1366
        %v1368 = vrot.slane %v1361, %v1367
        %v1369 = vcombine.low %v1289, %v1290
        %v1371 = vunpack.c.l.s4 1983009808
        %v1372 = vunpack.c.0.s8 %v1371
        %v1373 = vlaneseq
        %v1374 = vshrl.u32 %v1373, 7
        %v1375 = vsub.s32 %v1372, %v1374
        %v1376 = vrot.slane %v1369, %v1375
        %v1377 = vcombine.low %v1281, %v1288
        %v1379 = vunpack.c.l.s4 1983009808
        %v1380 = vunpack.c.0.s8 %v1379
        %v1381 = vlaneseq
        %v1382 = vshrl.u32 %v1381, 7
        %v1383 = vsub.s32 %v1380, %v1382
        %v1384 = vrot.slane %v1377, %v1383
        %v1385 = vcombine.low %v1291, %v1292
        %v1387 = vunpack.c.l.s4 1983009808
        %v1388 = vunpack.c.0.s8 %v1387
        %v1389 = vlaneseq
        %v1390 = vshrl.u32 %v1389, 7
        %v1391 = vsub.s32 %v1388, %v1390
        %v1392 = vrot.slane %v1385, %v1391
        %v1393 = vcombine.low %v1368, %v1376
        %v1394 = vcombine.high %v1368, %v1376
        %v1396 = vunpack.c.l.s4 1934713408
        %v1397 = vunpack.c.0.s8 %v1396
        %v1398 = vlaneseq
        %v1399 = vshrl.u32 %v1398, 7
        %v1400 = vsub.s32 %v1397, %v1399
        %v1401 = vrot.slane %v1393, %v1400
        %v1403 = vunpack.c.l.s4 1934713408
        %v1404 = vunpack.c.0.s8 %v1403
        %v1405 = vlaneseq
        %v1406 = vshrl.u32 %v1405, 7
        %v1407 = vsub.s32 %v1404, %v1406
        %v1408 = vrot.slane %v1394, %v1407
        %v1409 = vcombine.low %v1384, %v1392
        %v1410 = vcombine.high %v1384, %v1392
        %v1412 = vunpack.c.l.s4 1934713408
        %v1413 = vunpack.c.0.s8 %v1412
        %v1414 = vlaneseq
        %v1415 = vshrl.u32 %v1414, 7
        %v1416 = vsub.s32 %v1413, %v1415
        %v1417 = vrot.slane %v1409, %v1416
        %v1419 = vunpack.c.l.s4 1934713408
        %v1420 = vunpack.c.0.s8 %v1419
        %v1421 = vlaneseq
        %v1422 = vshrl.u32 %v1421, 7
        %v1423 = vsub.s32 %v1420, %v1422
        %v1424 = vrot.slane %v1410, %v1423
        %v1425 = vcombine.low %v1401, %v1417
        %v1426 = vcombine.high %v1401, %v1417
        %v1427 = vcombine.low %v1408, %v1424
        %v1428 = vcombine.high %v1408, %v1424
        %v1429 = vpack.c.bf16 %v1425, %v1357
        %v1430 = vpack.c.bf16 %v1426, %v1358
        %v1431 = vpack.c.bf16 %v1427, %v1359
        %v1432 = vpack.c.bf16 %v1428, %v1360
        %v1437 = vunpack.c.l.b16 %v1429
        %v1438 = vunpack.c.h.b16 %v1429
        %v1439 = vunpack.c.l.b16 %v1430
        %v1440 = vunpack.c.h.b16 %v1430
        %v1441 = vunpack.c.l.b16 %v1431
        %v1442 = vunpack.c.h.b16 %v1431
        %v1443 = vunpack.c.l.b16 %v1432
        %v1444 = vunpack.c.h.b16 %v1432
        %v1445 = vpack.c.b16 %v1437, %v1437
        %v1446 = vpack.c.b16 %v1438, %v1438
        %v1447 = vpack.c.b16 %v1439, %v1439
        %v1448 = vpack.c.b16 %v1440, %v1440
        %v1449 = vpack.c.b16 %v1441, %v1441
        %v1450 = vpack.c.b16 %v1442, %v1442
        %v1451 = vpack.c.b16 %v1443, %v1443
        %v1452 = vpack.c.b16 %v1444, %v1444
        %1461 = vst.msk [vmem:[%s342] sm:$0xf] %vm788, %v1445
        %1462 = vst.msk [vmem:[%s342 + $0x4] sm:$0xf] %vm788, %v1446
        %1463 = vst.msk [vmem:[%s342 + $0x8] sm:$0xf] %vm788, %v1447
        %1464 = vst.msk [vmem:[%s342 + $0xc] sm:$0xf] %vm788, %v1448
        %1465 = vst.msk [vmem:[%s342 + $0x10] sm:$0xf] %vm788, %v1449
        %1466 = vst.msk [vmem:[%s342 + $0x14] sm:$0xf] %vm788, %v1450
        %1467 = vst.msk [vmem:[%s342 + $0x18] sm:$0xf] %vm788, %v1451
        %1468 = vst.msk [vmem:[%s342 + $0x1c] sm:$0xf] %vm788, %v1452
        %s1469 = sand.u32 %s157, 1
        %s1470 = sand.u32 %s157, 1
        %s1471 = smul.addr %s1470, 32
        %s1472 = scalar_lea.vmem [#allocation6], %s1471
        %s1473 = sand.u32 %s185, 1
        %s1474 = sand.u32 %s185, 1
        %s1475 = smul.addr %s1474, 32
        %s1476 = scalar_lea.vmem [#allocation7], %s1475
        %s1477 = sand.u32 %s213, 1
        %s1478 = sand.u32 %s213, 1
        %s1479 = smul.addr %s1478, 32
        %s1480 = scalar_lea.vmem [#allocation8], %s1479
        // Predicated region
        $region49: #{tpu_custom_call.1} parent=39 // pred_check
          %p1481 = pneg %p167
        $region50: #{tpu_custom_call.1} parent=39 // pred_check_branch
          %1483 = sbr.rel (%p1481) target = $region52
        $region51: #{tpu_custom_call.1} parent=39 // pred_region
          %s1484 = smul.u32 2, %s28
          %s1485 = smul.addr %s27, 16
          %s1486 = sadd.s32 %s1484, %s1485
          %s1487 = smul.addr %s1486, 4
          %s1488 = scalar_lea.vmem %s5, %s1487
          // Predicated region
          $region53: #{tpu_custom_call.1} parent=51 // pred_check
            _
          $region54: #{tpu_custom_call.1} parent=51 // pred_check_branch
            %1490 = sbr.rel (0) target = $region56
          $region55: #{tpu_custom_call.1} parent=51 // pred_region
            // Predicated region
            $region57: #{tpu_custom_call.1} parent=55 // pred_check
              _
            $region58: #{tpu_custom_call.1} parent=55 // pred_check_branch
              %1492 = sbr.rel target = $region60
            $region59: #{tpu_custom_call.1} parent=55 // pred_region
              // Predicated region
              $region72: #{tpu_custom_call.1} parent=59 // pred_check
                _
              $region73: #{tpu_custom_call.1} parent=59 // pred_check_branch
                %1521 = sbr.rel (0) target = $region75
              $region74: #{tpu_custom_call.1} parent=59 // pred_region
                loop: start=0, step=1, limit=1
                $region76: #{tpu_custom_call.1} parent=74 // loop_pre_header
                  _
                $region77: #{tpu_custom_call.1} parent=74 // loop_header
                  %s1523 = sphi 0, %s1527
                  %p1524 = scmp.ge.s32.totalorder %s1523, 1
                  %s1528 = sphi %s1472, %s1472
                  %s1529 = sphi %s1488, %s1488
                $region78: #{tpu_custom_call.1} parent=74 // loop_header_branch
                  %1526 = sbr.rel (%p1524) target = $region82
                $region79: #{tpu_custom_call.1} parent=74 // loop_body
                  _
                $region80: #{tpu_custom_call.1} parent=74 // loop_footer
                  %s1527 = sadd.s32 1, %s1523
                $region81: #{tpu_custom_call.1} parent=74 // loop_footer_branch
                  %1522 = sbr.rel target = $region77
                $region82: #{tpu_custom_call.1} parent=74 // loop_exit
                  _
                loop: start=0, step=1, limit=1
                $region83: #{tpu_custom_call.1} parent=74 // loop_pre_header
                  _
                $region84: #{tpu_custom_call.1} parent=74 // loop_header
                  %s1532 = sphi 0, %s1536
                  %p1533 = scmp.ge.s32.totalorder %s1532, 1
                  %s1537 = sphi %s1472, %s1472
                  %s1538 = sphi %s1488, %s1488
                $region85: #{tpu_custom_call.1} parent=74 // loop_header_branch
                  %1535 = sbr.rel (%p1533) target = $region89
                $region86: #{tpu_custom_call.1} parent=74 // loop_body
                  %v1539 = vld [vmem:[%s1537] sm:$0xf]
                  %1540 = vst [vmem:[%s1538] sm:$0xf] %v1539
                  %v1541 = vld [vmem:[%s1537 + $0x4] sm:$0xf]
                  %1542 = vst [vmem:[%s1538 + $0x4] sm:$0xf] %v1541
                  %v1543 = vld [vmem:[%s1537 + $0x8] sm:$0xf]
                  %1544 = vst [vmem:[%s1538 + $0x10] sm:$0xf] %v1543
                  %v1545 = vld [vmem:[%s1537 + $0xc] sm:$0xf]
                  %1546 = vst [vmem:[%s1538 + $0x14] sm:$0xf] %v1545
                  %v1547 = vld [vmem:[%s1537 + $0x10] sm:$0xf]
                  %1548 = vst [vmem:[%s1538 + $0x20] sm:$0xf] %v1547
                  %v1549 = vld [vmem:[%s1537 + $0x14] sm:$0xf]
                  %1550 = vst [vmem:[%s1538 + $0x24] sm:$0xf] %v1549
                  %v1551 = vld [vmem:[%s1537 + $0x18] sm:$0xf]
                  %1552 = vst [vmem:[%s1538 + $0x30] sm:$0xf] %v1551
                  %v1553 = vld [vmem:[%s1537 + $0x1c] sm:$0xf]
                  %1554 = vst [vmem:[%s1538 + $0x34] sm:$0xf] %v1553
                $region87: #{tpu_custom_call.1} parent=74 // loop_footer
                  %s1536 = sadd.s32 1, %s1532
                $region88: #{tpu_custom_call.1} parent=74 // loop_footer_branch
                  %1531 = sbr.rel target = $region84
                $region89: #{tpu_custom_call.1} parent=74 // loop_exit
                  _
              $region75: #{tpu_custom_call.1} parent=59 // pred_fallthru
                _
            $region60: #{tpu_custom_call.1} parent=55 // pred_fallthru
              _
            // Predicated region
            $region61: #{tpu_custom_call.1} parent=55 // pred_check
              _
            $region62: #{tpu_custom_call.1} parent=55 // pred_check_branch
              %1494 = sbr.rel (0) target = $region64
            $region63: #{tpu_custom_call.1} parent=55 // pred_region
              loop: start=0, step=1, limit=1
              $region65: #{tpu_custom_call.1} parent=63 // loop_pre_header
                _
              $region66: #{tpu_custom_call.1} parent=63 // loop_header
                %s1497 = sphi 0, %s1501
                %p1498 = scmp.ge.s32.totalorder %s1497, 1
                %s1502 = sphi %s1472, %s1472
                %s1503 = sphi %s1488, %s1488
              $region67: #{tpu_custom_call.1} parent=63 // loop_header_branch
                %1500 = sbr.rel (%p1498) target = $region71
              $region68: #{tpu_custom_call.1} parent=63 // loop_body
                %v1504 = vld [vmem:[%s1502] sm:$0xf]
                %1505 = vst [vmem:[%s1503] sm:$0xf] %v1504
                %v1506 = vld [vmem:[%s1502 + $0x4] sm:$0xf]
                %1507 = vst [vmem:[%s1503 + $0x4] sm:$0xf] %v1506
                %v1508 = vld [vmem:[%s1502 + $0x8] sm:$0xf]
                %1509 = vst [vmem:[%s1503 + $0x10] sm:$0xf] %v1508
                %v1510 = vld [vmem:[%s1502 + $0xc] sm:$0xf]
                %1511 = vst [vmem:[%s1503 + $0x14] sm:$0xf] %v1510
                %v1512 = vld [vmem:[%s1502 + $0x10] sm:$0xf]
                %1513 = vst [vmem:[%s1503 + $0x20] sm:$0xf] %v1512
                %v1514 = vld [vmem:[%s1502 + $0x14] sm:$0xf]
                %1515 = vst [vmem:[%s1503 + $0x24] sm:$0xf] %v1514
                %v1516 = vld [vmem:[%s1502 + $0x18] sm:$0xf]
                %1517 = vst [vmem:[%s1503 + $0x30] sm:$0xf] %v1516
                %v1518 = vld [vmem:[%s1502 + $0x1c] sm:$0xf]
                %1519 = vst [vmem:[%s1503 + $0x34] sm:$0xf] %v1518
              $region69: #{tpu_custom_call.1} parent=63 // loop_footer
                %s1501 = sadd.s32 1, %s1497
              $region70: #{tpu_custom_call.1} parent=63 // loop_footer_branch
                %1496 = sbr.rel target = $region66
              $region71: #{tpu_custom_call.1} parent=63 // loop_exit
                _
            $region64: #{tpu_custom_call.1} parent=55 // pred_fallthru
              _
          $region56: #{tpu_custom_call.1} parent=51 // pred_fallthru
            _
          %1555 = vnop
        $region52: #{tpu_custom_call.1} parent=39 // pred_fallthru
          _
        // Predicated region
        $region90: #{tpu_custom_call.1} parent=39 // pred_check
          %p1556 = pneg %p195
        $region91: #{tpu_custom_call.1} parent=39 // pred_check_branch
          %1558 = sbr.rel (%p1556) target = $region93
        $region92: #{tpu_custom_call.1} parent=39 // pred_region
          %s1559 = smul.u32 2, %s28
          %s1560 = smul.addr %s27, 16
          %s1561 = sadd.s32 %s1559, %s1560
          %s1562 = smul.addr %s1561, 4
          %s1563 = scalar_lea.vmem %s6, %s1562
          // Predicated region
          $region94: #{tpu_custom_call.1} parent=92 // pred_check
            _
          $region95: #{tpu_custom_call.1} parent=92 // pred_check_branch
            %1565 = sbr.rel (0) target = $region97
          $region96: #{tpu_custom_call.1} parent=92 // pred_region
            // Predicated region
            $region98: #{tpu_custom_call.1} parent=96 // pred_check
              _
            $region99: #{tpu_custom_call.1} parent=96 // pred_check_branch
              %1567 = sbr.rel target = $region101
            $region100: #{tpu_custom_call.1} parent=96 // pred_region
              // Predicated region
              $region113: #{tpu_custom_call.1} parent=100 // pred_check
                _
              $region114: #{tpu_custom_call.1} parent=100 // pred_check_branch
                %1596 = sbr.rel (0) target = $region116
              $region115: #{tpu_custom_call.1} parent=100 // pred_region
                loop: start=0, step=1, limit=1
                $region117: #{tpu_custom_call.1} parent=115 // loop_pre_header
                  _
                $region118: #{tpu_custom_call.1} parent=115 // loop_header
                  %s1598 = sphi 0, %s1602
                  %p1599 = scmp.ge.s32.totalorder %s1598, 1
                  %s1603 = sphi %s1476, %s1476
                  %s1604 = sphi %s1563, %s1563
                $region119: #{tpu_custom_call.1} parent=115 // loop_header_branch
                  %1601 = sbr.rel (%p1599) target = $region123
                $region120: #{tpu_custom_call.1} parent=115 // loop_body
                  _
                $region121: #{tpu_custom_call.1} parent=115 // loop_footer
                  %s1602 = sadd.s32 1, %s1598
                $region122: #{tpu_custom_call.1} parent=115 // loop_footer_branch
                  %1597 = sbr.rel target = $region118
                $region123: #{tpu_custom_call.1} parent=115 // loop_exit
                  _
                loop: start=0, step=1, limit=1
                $region124: #{tpu_custom_call.1} parent=115 // loop_pre_header
                  _
                $region125: #{tpu_custom_call.1} parent=115 // loop_header
                  %s1607 = sphi 0, %s1611
                  %p1608 = scmp.ge.s32.totalorder %s1607, 1
                  %s1612 = sphi %s1476, %s1476
                  %s1613 = sphi %s1563, %s1563
                $region126: #{tpu_custom_call.1} parent=115 // loop_header_branch
                  %1610 = sbr.rel (%p1608) target = $region130
                $region127: #{tpu_custom_call.1} parent=115 // loop_body
                  %v1614 = vld [vmem:[%s1612] sm:$0xf]
                  %1615 = vst [vmem:[%s1613] sm:$0xf] %v1614
                  %v1616 = vld [vmem:[%s1612 + $0x4] sm:$0xf]
                  %1617 = vst [vmem:[%s1613 + $0x4] sm:$0xf] %v1616
                  %v1618 = vld [vmem:[%s1612 + $0x8] sm:$0xf]
                  %1619 = vst [vmem:[%s1613 + $0x10] sm:$0xf] %v1618
                  %v1620 = vld [vmem:[%s1612 + $0xc] sm:$0xf]
                  %1621 = vst [vmem:[%s1613 + $0x14] sm:$0xf] %v1620
                  %v1622 = vld [vmem:[%s1612 + $0x10] sm:$0xf]
                  %1623 = vst [vmem:[%s1613 + $0x20] sm:$0xf] %v1622
                  %v1624 = vld [vmem:[%s1612 + $0x14] sm:$0xf]
                  %1625 = vst [vmem:[%s1613 + $0x24] sm:$0xf] %v1624
                  %v1626 = vld [vmem:[%s1612 + $0x18] sm:$0xf]
                  %1627 = vst [vmem:[%s1613 + $0x30] sm:$0xf] %v1626
                  %v1628 = vld [vmem:[%s1612 + $0x1c] sm:$0xf]
                  %1629 = vst [vmem:[%s1613 + $0x34] sm:$0xf] %v1628
                $region128: #{tpu_custom_call.1} parent=115 // loop_footer
                  %s1611 = sadd.s32 1, %s1607
                $region129: #{tpu_custom_call.1} parent=115 // loop_footer_branch
                  %1606 = sbr.rel target = $region125
                $region130: #{tpu_custom_call.1} parent=115 // loop_exit
                  _
              $region116: #{tpu_custom_call.1} parent=100 // pred_fallthru
                _
            $region101: #{tpu_custom_call.1} parent=96 // pred_fallthru
              _
            // Predicated region
            $region102: #{tpu_custom_call.1} parent=96 // pred_check
              _
            $region103: #{tpu_custom_call.1} parent=96 // pred_check_branch
              %1569 = sbr.rel (0) target = $region105
            $region104: #{tpu_custom_call.1} parent=96 // pred_region
              loop: start=0, step=1, limit=1
              $region106: #{tpu_custom_call.1} parent=104 // loop_pre_header
                _
              $region107: #{tpu_custom_call.1} parent=104 // loop_header
                %s1572 = sphi 0, %s1576
                %p1573 = scmp.ge.s32.totalorder %s1572, 1
                %s1577 = sphi %s1476, %s1476
                %s1578 = sphi %s1563, %s1563
              $region108: #{tpu_custom_call.1} parent=104 // loop_header_branch
                %1575 = sbr.rel (%p1573) target = $region112
              $region109: #{tpu_custom_call.1} parent=104 // loop_body
                %v1579 = vld [vmem:[%s1577] sm:$0xf]
                %1580 = vst [vmem:[%s1578] sm:$0xf] %v1579
                %v1581 = vld [vmem:[%s1577 + $0x4] sm:$0xf]
                %1582 = vst [vmem:[%s1578 + $0x4] sm:$0xf] %v1581
                %v1583 = vld [vmem:[%s1577 + $0x8] sm:$0xf]
                %1584 = vst [vmem:[%s1578 + $0x10] sm:$0xf] %v1583
                %v1585 = vld [vmem:[%s1577 + $0xc] sm:$0xf]
                %1586 = vst [vmem:[%s1578 + $0x14] sm:$0xf] %v1585
                %v1587 = vld [vmem:[%s1577 + $0x10] sm:$0xf]
                %1588 = vst [vmem:[%s1578 + $0x20] sm:$0xf] %v1587
                %v1589 = vld [vmem:[%s1577 + $0x14] sm:$0xf]
                %1590 = vst [vmem:[%s1578 + $0x24] sm:$0xf] %v1589
                %v1591 = vld [vmem:[%s1577 + $0x18] sm:$0xf]
                %1592 = vst [vmem:[%s1578 + $0x30] sm:$0xf] %v1591
                %v1593 = vld [vmem:[%s1577 + $0x1c] sm:$0xf]
                %1594 = vst [vmem:[%s1578 + $0x34] sm:$0xf] %v1593
              $region110: #{tpu_custom_call.1} parent=104 // loop_footer
                %s1576 = sadd.s32 1, %s1572
              $region111: #{tpu_custom_call.1} parent=104 // loop_footer_branch
                %1571 = sbr.rel target = $region107
              $region112: #{tpu_custom_call.1} parent=104 // loop_exit
                _
            $region105: #{tpu_custom_call.1} parent=96 // pred_fallthru
              _
          $region97: #{tpu_custom_call.1} parent=92 // pred_fallthru
            _
          %1630 = vnop
        $region93: #{tpu_custom_call.1} parent=39 // pred_fallthru
          _
        // Predicated region
        $region131: #{tpu_custom_call.1} parent=39 // pred_check
          %p1631 = pneg %p223
        $region132: #{tpu_custom_call.1} parent=39 // pred_check_branch
          %1633 = sbr.rel (%p1631) target = $region134
        $region133: #{tpu_custom_call.1} parent=39 // pred_region
          %s1634 = smul.u32 2, %s28
          %s1635 = smul.addr %s27, 16
          %s1636 = sadd.s32 %s1634, %s1635
          %s1637 = smul.addr %s1636, 4
          %s1638 = scalar_lea.vmem %s7, %s1637
          // Predicated region
          $region135: #{tpu_custom_call.1} parent=133 // pred_check
            _
          $region136: #{tpu_custom_call.1} parent=133 // pred_check_branch
            %1640 = sbr.rel (0) target = $region138
          $region137: #{tpu_custom_call.1} parent=133 // pred_region
            // Predicated region
            $region139: #{tpu_custom_call.1} parent=137 // pred_check
              _
            $region140: #{tpu_custom_call.1} parent=137 // pred_check_branch
              %1642 = sbr.rel target = $region142
            $region141: #{tpu_custom_call.1} parent=137 // pred_region
              // Predicated region
              $region154: #{tpu_custom_call.1} parent=141 // pred_check
                _
              $region155: #{tpu_custom_call.1} parent=141 // pred_check_branch
                %1671 = sbr.rel (0) target = $region157
              $region156: #{tpu_custom_call.1} parent=141 // pred_region
                loop: start=0, step=1, limit=1
                $region158: #{tpu_custom_call.1} parent=156 // loop_pre_header
                  _
                $region159: #{tpu_custom_call.1} parent=156 // loop_header
                  %s1673 = sphi 0, %s1677
                  %p1674 = scmp.ge.s32.totalorder %s1673, 1
                  %s1678 = sphi %s1480, %s1480
                  %s1679 = sphi %s1638, %s1638
                $region160: #{tpu_custom_call.1} parent=156 // loop_header_branch
                  %1676 = sbr.rel (%p1674) target = $region164
                $region161: #{tpu_custom_call.1} parent=156 // loop_body
                  _
                $region162: #{tpu_custom_call.1} parent=156 // loop_footer
                  %s1677 = sadd.s32 1, %s1673
                $region163: #{tpu_custom_call.1} parent=156 // loop_footer_branch
                  %1672 = sbr.rel target = $region159
                $region164: #{tpu_custom_call.1} parent=156 // loop_exit
                  _
                loop: start=0, step=1, limit=1
                $region165: #{tpu_custom_call.1} parent=156 // loop_pre_header
                  _
                $region166: #{tpu_custom_call.1} parent=156 // loop_header
                  %s1682 = sphi 0, %s1686
                  %p1683 = scmp.ge.s32.totalorder %s1682, 1
                  %s1687 = sphi %s1480, %s1480
                  %s1688 = sphi %s1638, %s1638
                $region167: #{tpu_custom_call.1} parent=156 // loop_header_branch
                  %1685 = sbr.rel (%p1683) target = $region171
                $region168: #{tpu_custom_call.1} parent=156 // loop_body
                  %v1689 = vld [vmem:[%s1687] sm:$0xf]
                  %1690 = vst [vmem:[%s1688] sm:$0xf] %v1689
                  %v1691 = vld [vmem:[%s1687 + $0x4] sm:$0xf]
                  %1692 = vst [vmem:[%s1688 + $0x4] sm:$0xf] %v1691
                  %v1693 = vld [vmem:[%s1687 + $0x8] sm:$0xf]
                  %1694 = vst [vmem:[%s1688 + $0x10] sm:$0xf] %v1693
                  %v1695 = vld [vmem:[%s1687 + $0xc] sm:$0xf]
                  %1696 = vst [vmem:[%s1688 + $0x14] sm:$0xf] %v1695
                  %v1697 = vld [vmem:[%s1687 + $0x10] sm:$0xf]
                  %1698 = vst [vmem:[%s1688 + $0x20] sm:$0xf] %v1697
                  %v1699 = vld [vmem:[%s1687 + $0x14] sm:$0xf]
                  %1700 = vst [vmem:[%s1688 + $0x24] sm:$0xf] %v1699
                  %v1701 = vld [vmem:[%s1687 + $0x18] sm:$0xf]
                  %1702 = vst [vmem:[%s1688 + $0x30] sm:$0xf] %v1701
                  %v1703 = vld [vmem:[%s1687 + $0x1c] sm:$0xf]
                  %1704 = vst [vmem:[%s1688 + $0x34] sm:$0xf] %v1703
                $region169: #{tpu_custom_call.1} parent=156 // loop_footer
                  %s1686 = sadd.s32 1, %s1682
                $region170: #{tpu_custom_call.1} parent=156 // loop_footer_branch
                  %1681 = sbr.rel target = $region166
                $region171: #{tpu_custom_call.1} parent=156 // loop_exit
                  _
              $region157: #{tpu_custom_call.1} parent=141 // pred_fallthru
                _
            $region142: #{tpu_custom_call.1} parent=137 // pred_fallthru
              _
            // Predicated region
            $region143: #{tpu_custom_call.1} parent=137 // pred_check
              _
            $region144: #{tpu_custom_call.1} parent=137 // pred_check_branch
              %1644 = sbr.rel (0) target = $region146
            $region145: #{tpu_custom_call.1} parent=137 // pred_region
              loop: start=0, step=1, limit=1
              $region147: #{tpu_custom_call.1} parent=145 // loop_pre_header
                _
              $region148: #{tpu_custom_call.1} parent=145 // loop_header
                %s1647 = sphi 0, %s1651
                %p1648 = scmp.ge.s32.totalorder %s1647, 1
                %s1652 = sphi %s1480, %s1480
                %s1653 = sphi %s1638, %s1638
              $region149: #{tpu_custom_call.1} parent=145 // loop_header_branch
                %1650 = sbr.rel (%p1648) target = $region153
              $region150: #{tpu_custom_call.1} parent=145 // loop_body
                %v1654 = vld [vmem:[%s1652] sm:$0xf]
                %1655 = vst [vmem:[%s1653] sm:$0xf] %v1654
                %v1656 = vld [vmem:[%s1652 + $0x4] sm:$0xf]
                %1657 = vst [vmem:[%s1653 + $0x4] sm:$0xf] %v1656
                %v1658 = vld [vmem:[%s1652 + $0x8] sm:$0xf]
                %1659 = vst [vmem:[%s1653 + $0x10] sm:$0xf] %v1658
                %v1660 = vld [vmem:[%s1652 + $0xc] sm:$0xf]
                %1661 = vst [vmem:[%s1653 + $0x14] sm:$0xf] %v1660
                %v1662 = vld [vmem:[%s1652 + $0x10] sm:$0xf]
                %1663 = vst [vmem:[%s1653 + $0x20] sm:$0xf] %v1662
                %v1664 = vld [vmem:[%s1652 + $0x14] sm:$0xf]
                %1665 = vst [vmem:[%s1653 + $0x24] sm:$0xf] %v1664
                %v1666 = vld [vmem:[%s1652 + $0x18] sm:$0xf]
                %1667 = vst [vmem:[%s1653 + $0x30] sm:$0xf] %v1666
                %v1668 = vld [vmem:[%s1652 + $0x1c] sm:$0xf]
                %1669 = vst [vmem:[%s1653 + $0x34] sm:$0xf] %v1668
              $region151: #{tpu_custom_call.1} parent=145 // loop_footer
                %s1651 = sadd.s32 1, %s1647
              $region152: #{tpu_custom_call.1} parent=145 // loop_footer_branch
                %1646 = sbr.rel target = $region148
              $region153: #{tpu_custom_call.1} parent=145 // loop_exit
                _
            $region146: #{tpu_custom_call.1} parent=137 // pred_fallthru
              _
          $region138: #{tpu_custom_call.1} parent=133 // pred_fallthru
            _
          %1705 = vnop
        $region134: #{tpu_custom_call.1} parent=39 // pred_fallthru
          _
      $region40: #{tpu_custom_call.1} parent=5 // pred_fallthru
        _
      %p1706 = scmp.le.s32.totalorder 2, %s18
      // Predicated region
      $region172: #{tpu_custom_call.1} parent=5 // pred_check
        %p1707 = pneg %p1706
      $region173: #{tpu_custom_call.1} parent=5 // pred_check_branch
        %1709 = sbr.rel (%p1707) target = $region175
      $region174: #{tpu_custom_call.1} parent=5 // pred_region
        %s1710 = ssub.s32 %s18, 2
        // Predicated region
        $region176: #{tpu_custom_call.1} parent=174 // pred_check
          %p1711 = pneg %p173
        $region177: #{tpu_custom_call.1} parent=174 // pred_check_branch
          %1713 = sbr.rel (%p1711) target = $region179
        $region178: #{tpu_custom_call.1} parent=174 // pred_region
          %s1714 = sand.u32 %s158, 1
          %s1715 = sand.u32 %s158, 1
          %s1716 = smul.addr %s1715, 32
          %s1717 = scalar_lea.vmem [#allocation6], %s1716
        $region179: #{tpu_custom_call.1} parent=174 // pred_fallthru
          _
        // Predicated region
        $region180: #{tpu_custom_call.1} parent=174 // pred_check
          %p1718 = pneg %p201
        $region181: #{tpu_custom_call.1} parent=174 // pred_check_branch
          %1720 = sbr.rel (%p1718) target = $region183
        $region182: #{tpu_custom_call.1} parent=174 // pred_region
          %s1721 = sand.u32 %s186, 1
          %s1722 = sand.u32 %s186, 1
          %s1723 = smul.addr %s1722, 32
          %s1724 = scalar_lea.vmem [#allocation7], %s1723
        $region183: #{tpu_custom_call.1} parent=174 // pred_fallthru
          _
        // Predicated region
        $region184: #{tpu_custom_call.1} parent=174 // pred_check
          %p1725 = pneg %p229
        $region185: #{tpu_custom_call.1} parent=174 // pred_check_branch
          %1727 = sbr.rel (%p1725) target = $region187
        $region186: #{tpu_custom_call.1} parent=174 // pred_region
          %s1728 = sand.u32 %s214, 1
          %s1729 = sand.u32 %s214, 1
          %s1730 = smul.addr %s1729, 32
          %s1731 = scalar_lea.vmem [#allocation8], %s1730
        $region187: #{tpu_custom_call.1} parent=174 // pred_fallthru
          _
      $region175: #{tpu_custom_call.1} parent=5 // pred_fallthru
        _
    $region6: #{tpu_custom_call.1} parent=1 // loop_footer
      %s22 = sadd.s32 1, %s18
    $region7: #{tpu_custom_call.1} parent=1 // loop_footer_branch
      %17 = sbr.rel target = $region3
    $region8: #{tpu_custom_call.1} parent=1 // loop_exit
      _
    %1732 = vsyncpa [#allocation3], 1
    %s1733 = scalar_lea.sflag [#allocation3], 1
    %1734 = vsyncpa %s1733, 1
    %1735 = vsyncpa [#allocation5], 1

</llo_original>
